<compile_context>
chip_gen: v7x
topology: tpu7x:2x2x1
jax: 0.10.0
libtpu: 0.0.40
codegen_flags: <defaults>
</compile_context>

<pallas_src>
import functools

import jax
import jax.numpy as jnp
from jax import lax
from jax.experimental import pallas as pl
from jax.experimental.pallas import tpu as pltpu

EPS = 1e-5
_VMEM_LIMIT = 32 * 1024 * 1024          # safe scoped-VMEM cap on v5e/v6e/v7x
_BLOCK_BUDGET_BYTES = 4 * 1024 * 1024   # per-grid-step working-set target


def _pick_batch_tile(n, per_image_bytes):
    """Largest divisor of n whose per-step working set stays under the budget."""
    cap = max(1, min(n, _BLOCK_BUDGET_BYTES // max(per_image_bytes, 1)))
    for d in range(cap, 0, -1):
        if n % d == 0:
            return d
    return 1


# ----------------------------------------------------------------------------
# Pallas kernel 1: per-channel sum / sum-of-squares over lane-dense (bt, C, M)
# blocks.  Grid iterates over batch chunks ("arbitrary" reduction axis); the
# (C, 1) accumulators stay resident in VMEM and are initialized at step 0.
# ----------------------------------------------------------------------------
def _bn_stats_kernel(x_ref, sum_ref, ssq_ref):
    @pl.when(pl.program_id(0) == 0)
    def _():
        sum_ref[...] = jnp.zeros_like(sum_ref)
        ssq_ref[...] = jnp.zeros_like(ssq_ref)

    x = x_ref[...].astype(jnp.float32)                    # (bt, C, M)
    s = jnp.sum(x, axis=0)                                # (C, M)
    q = jnp.sum(x * x, axis=0)                            # (C, M)
    sum_ref[...] += jnp.sum(s, axis=-1, keepdims=True)    # (C, 1)
    ssq_ref[...] += jnp.sum(q, axis=-1, keepdims=True)


def bn_batch_stats(x_cf):
    """x_cf: (N, C, M) channel-first.  Returns per-channel (mean, biased var) f32."""
    n, c, m = x_cf.shape
    bt = _pick_batch_tile(n, c * m * 4)
    # TODO(synk): for very large images, additionally chunk the lane (M) axis.
    s, ss = pl.pallas_call(
        _bn_stats_kernel,
        out_shape=(jax.ShapeDtypeStruct((c, 1), jnp.float32),
                   jax.ShapeDtypeStruct((c, 1), jnp.float32)),
        grid=(n // bt,),
        in_specs=[pl.BlockSpec((bt, c, m), lambda i: (i, 0, 0))],
        out_specs=(pl.BlockSpec((c, 1), lambda i: (0, 0)),
                   pl.BlockSpec((c, 1), lambda i: (0, 0))),
        compiler_params=pltpu.CompilerParams(
            dimension_semantics=("arbitrary",),
            vmem_limit_bytes=_VMEM_LIMIT),
    )(x_cf)
    cnt = n * m
    # TODO(synk): single-pass E[x^2]-E[x]^2 can cancel when |mean| >> std; fine here.
    mean = s[:, 0] / cnt
    var = ss[:, 0] / cnt - mean * mean
    return mean, var


# ----------------------------------------------------------------------------
# Pallas kernel 2: 3x3 valid convolution, channel-first, BN folded into (w, b).
#
# The input image is the flat plane (Cin, M_in) with row stride `stride_w`.
# For output flat index m = r*stride_w + c (c < out_w), tap (kh, kw) contributes
# w[kh,kw] @ x[:, m + kh*stride_w + kw], so the whole conv is 9 shifted
# (Cout, Cin) @ (Cin, M_out) matmuls with M_out = (out_h-1)*stride_w + out_w on
# the lane axis.  Columns c >= out_w of the flat output are "wrapped" garbage;
# they are masked out of the fused statistics and dropped at the very end.
# ----------------------------------------------------------------------------
def _conv3x3_kernel(x_ref, w_ref, b_ref, y_ref, *stat_refs,
                    stride_w, out_w, with_stats):
    bt, cout, m_out = y_ref.shape
    bias = b_ref[...]                                     # (Cout, 1)

    if with_stats:
        sum_ref, ssq_ref = stat_refs

        @pl.when(pl.program_id(0) == 0)
        def _():
            sum_ref[...] = jnp.zeros_like(sum_ref)
            ssq_ref[...] = jnp.zeros_like(ssq_ref)

        # validity mask of the flat output columns, built in-kernel (no HBM operand)
        col = lax.broadcasted_iota(jnp.int32, (1, m_out), 1)
        mask = (col % stride_w < out_w).astype(jnp.float32)

    for b in range(bt):                                   # static unroll over batch tile
        acc = jnp.zeros((cout, m_out), jnp.float32)
        # TODO(synk): for larger Cin, one fat K=9*Cin matmul on an in-kernel im2col
        #             slab (or bf16 operands) would use the MXU better.
        for kh in range(3):
            for kw in range(3):
                off = kh * stride_w + kw                   # static offset
                xs = x_ref[b, :, pl.ds(off, m_out)]        # (Cin, M_out)
                acc = acc + jnp.dot(w_ref[kh, kw], xs,
                                    preferred_element_type=jnp.float32)
        y = acc + bias                                     # (Cout, M_out)
        y_ref[b] = y.astype(y_ref.dtype)

        if with_stats:
            yv = y * mask                                  # zero the wrapped columns
            sum_ref[...] += jnp.sum(yv, axis=-1, keepdims=True)
            ssq_ref[...] += jnp.sum(yv * yv, axis=-1, keepdims=True)


def conv3x3_flat(x_flat, w, b, *, stride_w, out_h, out_w, with_stats):
    """x_flat: (N, Cin, M_in) channel-first flat planes with row stride `stride_w`.
    w: (3, 3, Cout, Cin) (BN already folded); b: (Cout,) (BN already folded).

    Returns the flat output (N, Cout, M_out), M_out = (out_h-1)*stride_w + out_w,
    and (if with_stats) per-channel sum / sum-of-squares over the *valid* output
    positions of the whole batch (for the following BatchNorm).
    """
    n, cin, m_in = x_flat.shape
    cout = w.shape[2]
    m_out = (out_h - 1) * stride_w + out_w
    assert m_out + 2 * stride_w + 2 == m_in, (m_out, stride_w, m_in)

    per_image = (cin * m_in + 2 * cout * m_out) * 4
    bt = _pick_batch_tile(n, per_image)
    # TODO(synk): for images too large for a whole-plane block (esp. v7x 64 MiB
    #             VMEM), add H-tiling with a 2-row halo and a (batch x row) grid.

    y_shape = jax.ShapeDtypeStruct((n, cout, m_out), jnp.float32)
    y_spec = pl.BlockSpec((bt, cout, m_out), lambda i: (i, 0, 0))
    if with_stats:
        stat_shape = jax.ShapeDtypeStruct((cout, 1), jnp.float32)
        stat_spec = pl.BlockSpec((cout, 1), lambda i: (0, 0))
        out_shape = (y_shape, stat_shape, stat_shape)
        out_specs = (y_spec, stat_spec, stat_spec)
        semantics = ("arbitrary",)        # stats accumulate across the batch axis
    else:
        out_shape = y_shape
        out_specs = y_spec
        semantics = ("parallel",)         # independent per-image blocks

    res = pl.pallas_call(
        functools.partial(_conv3x3_kernel, stride_w=stride_w, out_w=out_w,
                          with_stats=with_stats),
        out_shape=out_shape,
        grid=(n // bt,),
        in_specs=[
            pl.BlockSpec((bt, cin, m_in), lambda i: (i, 0, 0)),
            pl.BlockSpec((3, 3, cout, cin), lambda i: (0, 0, 0, 0)),
            pl.BlockSpec((cout, 1), lambda i: (0, 0)),
        ],
        out_specs=out_specs,
        compiler_params=pltpu.CompilerParams(
            dimension_semantics=semantics,
            vmem_limit_bytes=_VMEM_LIMIT),
    )(x_flat, w, b.reshape(cout, 1))

    if with_stats:
        y, s, ss = res
        return y, s[:, 0], ss[:, 0]
    return res


def _fold_bn_into_conv(w, cb, gamma, beta, mean, var):
    """Exact fold of conv(BN(x)) into conv'(x); w is (3,3,Cout,Cin)."""
    scale = gamma * lax.rsqrt(var + EPS)
    shift = beta - mean * scale
    w_f = w * scale[None, None, None, :]
    b_f = cb + jnp.einsum("hwoi,i->o", w, shift)
    return w_f, b_f


# ----------------------------------------------------------------------------
# Full Bottom_Block forward (glue in plain JAX, hot path in Pallas).
# ----------------------------------------------------------------------------
def bottom_block_forward(x_nchw, params):
    n, cin, h, w = x_nchw.shape
    cout = params["w1"].shape[2]
    ho, wo = h - 2, w - 2
    ho2, wo2 = ho - 2, wo - 2

    x_cf = x_nchw.reshape(n, cin, h * w)        # native NCHW, free reshape

    # BN1 batch stats (Pallas reduction), folded into conv1 weights/bias.
    mean1, var1 = bn_batch_stats(x_cf)
    w1f, b1f = _fold_bn_into_conv(params["w1"], params["cb1"],
                                  params["g1"], params["b1"], mean1, var1)

    # conv1 + fused partial statistics of its valid outputs (for BN2).
    y1_flat, s2, ss2 = conv3x3_flat(x_cf, w1f, b1f, stride_w=w, out_h=ho,
                                    out_w=wo, with_stats=True)
    cnt2 = n * ho * wo
    mean2 = s2 / cnt2
    var2 = ss2 / cnt2 - mean2 * mean2
    w2f, b2f = _fold_bn_into_conv(params["w2"], params["cb2"],
                                  params["g2"], params["b2"], mean2, var2)

    # conv2 consumes conv1's flat output directly (row stride still `w`): no
    # pad/reshape/slice round trip of the intermediate tensor, no dead stats.
    y2_flat = conv3x3_flat(y1_flat, w2f, b2f, stride_w=w, out_h=ho2,
                           out_w=wo2, with_stats=False)

    # Un-flatten only the (small) final output; it is already NCHW.
    pad = ho2 * w - y2_flat.shape[-1]           # == w - wo2
    y2 = jnp.pad(y2_flat, ((0, 0), (0, 0), (0, pad)))
    return y2.reshape(n, cout, ho2, w)[:, :, :, :wo2]


# ----------------------------------------------------------------------------
# Pure-JAX reference (for correctness check).
# ----------------------------------------------------------------------------
def _reference(x_nchw, params):
    def bn(x, g, b):
        mean = jnp.mean(x, axis=(0, 2, 3), keepdims=True)
        var = jnp.mean((x - mean) ** 2, axis=(0, 2, 3), keepdims=True)
        return (x - mean) / jnp.sqrt(var + EPS) * g.reshape(1, -1, 1, 1) \
            + b.reshape(1, -1, 1, 1)

    def conv(x, w_hwoi, b):
        w_oihw = jnp.transpose(w_hwoi, (2, 3, 0, 1))
        y = lax.conv_general_dilated(
            x, w_oihw, window_strides=(1, 1), padding="VALID",
            dimension_numbers=("NCHW", "OIHW", "NCHW"))
        return y + b.reshape(1, -1, 1, 1)

    y = conv(bn(x_nchw, params["g1"], params["b1"]), params["w1"], params["cb1"])
    y = conv(bn(y, params["g2"], params["b2"]), params["w2"], params["cb2"])
    return y


# ----------------------------------------------------------------------------
# Deterministic parameter init (shapes follow nn.BatchNorm2d / nn.Conv2d).
# ----------------------------------------------------------------------------
def init_params(key, in_filters, out_filters):
    ks = jax.random.split(key, 8)
    k1 = 1.0 / jnp.sqrt(in_filters * 9.0)
    k2 = 1.0 / jnp.sqrt(out_filters * 9.0)
    return {
        # bn1 (gamma, beta)
        "g1": 1.0 + 0.1 * jax.random.normal(ks[0], (in_filters,), jnp.float32),
        "b1": 0.1 * jax.random.normal(ks[1], (in_filters,), jnp.float32),
        # conv1 weights stored channel-first per tap: (kh, kw, Cout, Cin)
        "w1": jax.random.uniform(ks[2], (3, 3, out_filters, in_filters),
                                 jnp.float32, -k1, k1),
        "cb1": jax.random.uniform(ks[3], (out_filters,), jnp.float32, -k1, k1),
        # bn2
        "g2": 1.0 + 0.1 * jax.random.normal(ks[4], (out_filters,), jnp.float32),
        "b2": 0.1 * jax.random.normal(ks[5], (out_filters,), jnp.float32),
        # conv2
        "w2": jax.random.uniform(ks[6], (3, 3, out_filters, out_filters),
                                 jnp.float32, -k2, k2),
        "cb2": jax.random.uniform(ks[7], (out_filters,), jnp.float32, -k2, k2),
    }


if __name__ == "__main__":
    key = jax.random.PRNGKey(0)
    kx, kp = jax.random.split(key)

    in_filters, out_filters = 4, 8
    x = jax.random.normal(kx, (2, in_filters, 16, 16), jnp.float32)  # NCHW like PyTorch
    params = init_params(kp, in_filters, out_filters)

    fwd = jax.jit(bottom_block_forward)
    out = jax.block_until_ready(fwd(x, params))
    ref = jax.block_until_ready(_reference(x, params))

    assert out.shape == (2, out_filters, 12, 12), out.shape
    assert jnp.allclose(out, ref, atol=1e-4, rtol=1e-4), \
        float(jnp.max(jnp.abs(out - ref)))
    print("KERNEL_OK")
</pallas_src>

<mosaic_0001>
module attributes {stable_mosaic.version = 11 : i64} {
  func.func @_bn_stats_kernel(%arg0: i32, %arg1: memref<2x4x256xf32, #tpu.memory_space<vmem>>, %arg2: memref<4x1xf32, #tpu.memory_space<vmem>>, %arg3: memref<4x1xf32, #tpu.memory_space<vmem>>) attributes {dimension_semantics = [#tpu.dimension_semantics<arbitrary>], iteration_bounds = array<i64: 1>, scalar_prefetch = 0 : i64, scratch_operands = 0 : i64, tpu.core_type = #tpu.core_type<tc>, window_params = [{transform_indices = @transform_0, window_bounds = array<i64: 2, 4, 256>}, {pipeline_mode = #tpu.pipeline_mode<synchronous>, transform_indices = @transform_1, window_bounds = array<i64: 4, 1>}, {pipeline_mode = #tpu.pipeline_mode<synchronous>, transform_indices = @transform_2, window_bounds = array<i64: 4, 1>}]} {
    %c0_i32 = arith.constant 0 : i32
    %0 = arith.cmpi eq, %arg0, %c0_i32 : i32
    %1 = arith.extui %0 : i1 to i32
    %c0_i32_0 = arith.constant 0 : i32
    %2 = arith.cmpi ne, %1, %c0_i32_0 : i32
    scf.if %2 {
      %cst_14 = arith.constant 0.000000e+00 : f32
      %17 = vector.broadcast %cst_14 : f32 to vector<4x1xf32>
      %c0_15 = arith.constant 0 : index
      %c0_16 = arith.constant 0 : index
      %18 = vector.load %arg2[%c0_15, %c0_16] : memref<4x1xf32, #tpu.memory_space<vmem>>, vector<4x1xf32>
      tpu.vector_store %arg2[%c0_15, %c0_16], %17 {strides = array<i32>} : memref<4x1xf32, #tpu.memory_space<vmem>>, vector<4x1xf32>,
      %cst_17 = arith.constant 0.000000e+00 : f32
      %19 = vector.broadcast %cst_17 : f32 to vector<4x1xf32>
      %c0_18 = arith.constant 0 : index
      %c0_19 = arith.constant 0 : index
      %20 = vector.load %arg3[%c0_18, %c0_19] : memref<4x1xf32, #tpu.memory_space<vmem>>, vector<4x1xf32>
      tpu.vector_store %arg3[%c0_18, %c0_19], %19 {strides = array<i32>} : memref<4x1xf32, #tpu.memory_space<vmem>>, vector<4x1xf32>,
    } else {
    }
    %c0 = arith.constant 0 : index
    %c0_1 = arith.constant 0 : index
    %c0_2 = arith.constant 0 : index
    %3 = vector.load %arg1[%c0, %c0_1, %c0_2] : memref<2x4x256xf32, #tpu.memory_space<vmem>>, vector<2x4x256xf32>
    %cst = arith.constant dense<0.000000e+00> : vector<4x256xf32>
    %4 = vector.multi_reduction <add>, %3, %cst [0] : vector<2x4x256xf32> to vector<4x256xf32>
    %5 = arith.mulf %3, %3 : vector<2x4x256xf32>
    %cst_3 = arith.constant dense<0.000000e+00> : vector<4x256xf32>
    %6 = vector.multi_reduction <add>, %5, %cst_3 [0] : vector<2x4x256xf32> to vector<4x256xf32>
    %c0_4 = arith.constant 0 : index
    %c0_5 = arith.constant 0 : index
    %7 = vector.load %arg2[%c0_4, %c0_5] : memref<4x1xf32, #tpu.memory_space<vmem>>, vector<4x1xf32>
    %cst_6 = arith.constant dense<0.000000e+00> : vector<4xf32>
    %8 = vector.multi_reduction <add>, %4, %cst_6 [1] : vector<4x256xf32> to vector<4xf32>
    %9 = vector.shape_cast %8 : vector<4xf32> to vector<4x1xf32>
    %10 = arith.addf %7, %9 : vector<4x1xf32>
    %c0_7 = arith.constant 0 : index
    %c0_8 = arith.constant 0 : index
    %11 = vector.load %arg2[%c0_7, %c0_8] : memref<4x1xf32, #tpu.memory_space<vmem>>, vector<4x1xf32>
    tpu.vector_store %arg2[%c0_7, %c0_8], %10 {strides = array<i32>} : memref<4x1xf32, #tpu.memory_space<vmem>>, vector<4x1xf32>,
    %c0_9 = arith.constant 0 : index
    %c0_10 = arith.constant 0 : index
    %12 = vector.load %arg3[%c0_9, %c0_10] : memref<4x1xf32, #tpu.memory_space<vmem>>, vector<4x1xf32>
    %cst_11 = arith.constant dense<0.000000e+00> : vector<4xf32>
    %13 = vector.multi_reduction <add>, %6, %cst_11 [1] : vector<4x256xf32> to vector<4xf32>
    %14 = vector.shape_cast %13 : vector<4xf32> to vector<4x1xf32>
    %15 = arith.addf %12, %14 : vector<4x1xf32>
    %c0_12 = arith.constant 0 : index
    %c0_13 = arith.constant 0 : index
    %16 = vector.load %arg3[%c0_12, %c0_13] : memref<4x1xf32, #tpu.memory_space<vmem>>, vector<4x1xf32>
    tpu.vector_store %arg3[%c0_12, %c0_13], %15 {strides = array<i32>} : memref<4x1xf32, #tpu.memory_space<vmem>>, vector<4x1xf32>,
    return
  }
  func.func @transform_0(%arg0: i32) -> (i32, i32, i32) {
    %c0_i32 = arith.constant 0 : i32
    %c0_i32_0 = arith.constant 0 : i32
    %c0_i32_1 = arith.constant 0 : i32
    return %arg0, %c0_i32, %c0_i32_0 : i32, i32, i32
  }
  func.func @transform_1(%arg0: i32) -> (i32, i32) {
    %c0_i32 = arith.constant 0 : i32
    %c0_i32_0 = arith.constant 0 : i32
    %c0_i32_1 = arith.constant 0 : i32
    return %c0_i32, %c0_i32_0 : i32, i32
  }
  func.func @transform_2(%arg0: i32) -> (i32, i32) {
    %c0_i32 = arith.constant 0 : i32
    %c0_i32_0 = arith.constant 0 : i32
    %c0_i32_1 = arith.constant 0 : i32
    return %c0_i32, %c0_i32_0 : i32, i32
  }
}

module attributes {stable_mosaic.version = 11 : i64} {
  func.func @_conv3x3_kernel(%arg0: i32, %arg1: memref<2x4x256xf32, #tpu.memory_space<vmem>>, %arg2: memref<3x3x8x4xf32, #tpu.memory_space<vmem>>, %arg3: memref<8x1xf32, #tpu.memory_space<vmem>>, %arg4: memref<2x8x222xf32, #tpu.memory_space<vmem>>, %arg5: memref<8x1xf32, #tpu.memory_space<vmem>>, %arg6: memref<8x1xf32, #tpu.memory_space<vmem>>) attributes {dimension_semantics = [#tpu.dimension_semantics<arbitrary>], iteration_bounds = array<i64: 1>, scalar_prefetch = 0 : i64, scratch_operands = 0 : i64, tpu.core_type = #tpu.core_type<tc>, window_params = [{transform_indices = @transform_0, window_bounds = array<i64: 2, 4, 256>}, {pipeline_mode = #tpu.pipeline_mode<synchronous>, transform_indices = @transform_1, window_bounds = array<i64: 3, 3, 8, 4>}, {pipeline_mode = #tpu.pipeline_mode<synchronous>, transform_indices = @transform_2, window_bounds = array<i64: 8, 1>}, {transform_indices = @transform_3, window_bounds = array<i64: 2, 8, 222>}, {pipeline_mode = #tpu.pipeline_mode<synchronous>, transform_indices = @transform_4, window_bounds = array<i64: 8, 1>}, {pipeline_mode = #tpu.pipeline_mode<synchronous>, transform_indices = @transform_5, window_bounds = array<i64: 8, 1>}]} {
    %c0 = arith.constant 0 : index
    %c0_0 = arith.constant 0 : index
    %0 = vector.load %arg3[%c0, %c0_0] : memref<8x1xf32, #tpu.memory_space<vmem>>, vector<8x1xf32>
    %c0_i32 = arith.constant 0 : i32
    %1 = arith.cmpi eq, %arg0, %c0_i32 : i32
    %2 = arith.extui %1 : i1 to i32
    %c0_i32_1 = arith.constant 0 : i32
    %3 = arith.cmpi ne, %2, %c0_i32_1 : i32
    scf.if %3 {
      %cst_169 = arith.constant 0.000000e+00 : f32
      %171 = vector.broadcast %cst_169 : f32 to vector<8x1xf32>
      %c0_170 = arith.constant 0 : index
      %c0_171 = arith.constant 0 : index
      %172 = vector.load %arg5[%c0_170, %c0_171] : memref<8x1xf32, #tpu.memory_space<vmem>>, vector<8x1xf32>
      tpu.vector_store %arg5[%c0_170, %c0_171], %171 {strides = array<i32>} : memref<8x1xf32, #tpu.memory_space<vmem>>, vector<8x1xf32>,
      %cst_172 = arith.constant 0.000000e+00 : f32
      %173 = vector.broadcast %cst_172 : f32 to vector<8x1xf32>
      %c0_173 = arith.constant 0 : index
      %c0_174 = arith.constant 0 : index
      %174 = vector.load %arg6[%c0_173, %c0_174] : memref<8x1xf32, #tpu.memory_space<vmem>>, vector<8x1xf32>
      tpu.vector_store %arg6[%c0_173, %c0_174], %173 {strides = array<i32>} : memref<8x1xf32, #tpu.memory_space<vmem>>, vector<8x1xf32>,
    } else {
    }
    %4 = tpu.iota {dimensions = array<i32: 1>} : vector<1x222xi32>
    %c16_i32 = arith.constant 16 : i32
    %c0_i32_2 = arith.constant 0 : i32
    %5 = arith.cmpi eq, %c16_i32, %c0_i32_2 : i32
    %c1_i32 = arith.constant 1 : i32
    %6 = arith.select %5, %c1_i32, %c16_i32 : i32
    %7 = vector.broadcast %6 : i32 to vector<1x222xi32>
    %8 = arith.remsi %4, %7 : vector<1x222xi32>
    %c0_i32_3 = arith.constant 0 : i32
    %9 = vector.broadcast %c0_i32_3 : i32 to vector<1x222xi32>
    %10 = arith.cmpi ne, %8, %9 : vector<1x222xi32>
    %c0_i32_4 = arith.constant 0 : i32
    %11 = vector.broadcast %c0_i32_4 : i32 to vector<1x222xi32>
    %12 = arith.cmpi slt, %8, %11 : vector<1x222xi32>
    %c0_i32_5 = arith.constant 0 : i32
    %13 = arith.cmpi slt, %6, %c0_i32_5 : i32
    %14 = vector.broadcast %13 : i1 to vector<1x222xi1>
    %15 = vector.broadcast %14 : vector<1x222xi1> to vector<1x222xi1>
    %16 = arith.xori %12, %15 : vector<1x222xi1>
    %17 = arith.andi %16, %10 : vector<1x222xi1>
    %18 = vector.broadcast %6 : i32 to vector<1x222xi32>
    %19 = arith.addi %8, %18 : vector<1x222xi32>
    %20 = arith.select %17, %19, %8 : vector<1x222xi1>, vector<1x222xi32>
    %c14_i32 = arith.constant 14 : i32
    %21 = vector.broadcast %c14_i32 : i32 to vector<1x222xi32>
    %22 = arith.cmpi slt, %20, %21 : vector<1x222xi32>
    %23 = arith.extui %22 : vector<1x222xi1> to vector<1x222xi32>
    %24 = arith.sitofp %23 : vector<1x222xi32> to vector<1x222xf32>
    %cst = arith.constant 0.000000e+00 : f32
    %25 = vector.broadcast %cst : f32 to vector<8x222xf32>
    %c0_6 = arith.constant 0 : index
    %c0_7 = arith.constant 0 : index
    %c0_8 = arith.constant 0 : index
    %26 = vector.load %arg1[%c0_6, %c0_7, %c0_8] : memref<2x4x256xf32, #tpu.memory_space<vmem>>, vector<1x4x222xf32>
    %27 = vector.shape_cast %26 : vector<1x4x222xf32> to vector<4x222xf32>
    %c0_9 = arith.constant 0 : index
    %c0_10 = arith.constant 0 : index
    %c0_11 = arith.constant 0 : index
    %c0_12 = arith.constant 0 : index
    %28 = vector.load %arg2[%c0_9, %c0_10, %c0_11, %c0_12] : memref<3x3x8x4xf32, #tpu.memory_space<vmem>>, vector<1x1x8x4xf32>
    %29 = vector.shape_cast %28 : vector<1x1x8x4xf32> to vector<8x4xf32>
    %cst_13 = arith.constant dense<0.000000e+00> : vector<8x222xf32>
    %30 = tpu.matmul %29, %27, %cst_13 {dimension_numbers = #tpu.dot_dimension_numbers<[1], [0], [0], [1], [0, 0, 1, 1], [], []>} : vector<8x4xf32>, vector<4x222xf32>, vector<8x222xf32> -> vector<8x222xf32>
    %31 = arith.addf %25, %30 : vector<8x222xf32>
    %c0_14 = arith.constant 0 : index
    %c0_15 = arith.constant 0 : index
    %c1 = arith.constant 1 : index
    %32 = vector.load %arg1[%c0_14, %c0_15, %c1] : memref<2x4x256xf32, #tpu.memory_space<vmem>>, vector<1x4x222xf32>
    %33 = vector.shape_cast %32 : vector<1x4x222xf32> to vector<4x222xf32>
    %c0_16 = arith.constant 0 : index
    %c1_17 = arith.constant 1 : index
    %c0_18 = arith.constant 0 : index
    %c0_19 = arith.constant 0 : index
    %34 = vector.load %arg2[%c0_16, %c1_17, %c0_18, %c0_19] : memref<3x3x8x4xf32, #tpu.memory_space<vmem>>, vector<1x1x8x4xf32>
    %35 = vector.shape_cast %34 : vector<1x1x8x4xf32> to vector<8x4xf32>
    %cst_20 = arith.constant dense<0.000000e+00> : vector<8x222xf32>
    %36 = tpu.matmul %35, %33, %cst_20 {dimension_numbers = #tpu.dot_dimension_numbers<[1], [0], [0], [1], [0, 0, 1, 1], [], []>} : vector<8x4xf32>, vector<4x222xf32>, vector<8x222xf32> -> vector<8x222xf32>
    %37 = arith.addf %31, %36 : vector<8x222xf32>
    %c0_21 = arith.constant 0 : index
    %c0_22 = arith.constant 0 : index
    %c2 = arith.constant 2 : index
    %38 = vector.load %arg1[%c0_21, %c0_22, %c2] : memref<2x4x256xf32, #tpu.memory_space<vmem>>, vector<1x4x222xf32>
    %39 = vector.shape_cast %38 : vector<1x4x222xf32> to vector<4x222xf32>
    %c0_23 = arith.constant 0 : index
    %c2_24 = arith.constant 2 : index
    %c0_25 = arith.constant 0 : index
    %c0_26 = arith.constant 0 : index
    %40 = vector.load %arg2[%c0_23, %c2_24, %c0_25, %c0_26] : memref<3x3x8x4xf32, #tpu.memory_space<vmem>>, vector<1x1x8x4xf32>
    %41 = vector.shape_cast %40 : vector<1x1x8x4xf32> to vector<8x4xf32>
    %cst_27 = arith.constant dense<0.000000e+00> : vector<8x222xf32>
    %42 = tpu.matmul %41, %39, %cst_27 {dimension_numbers = #tpu.dot_dimension_numbers<[1], [0], [0], [1], [0, 0, 1, 1], [], []>} : vector<8x4xf32>, vector<4x222xf32>, vector<8x222xf32> -> vector<8x222xf32>
    %43 = arith.addf %37, %42 : vector<8x222xf32>
    %c0_28 = arith.constant 0 : index
    %c0_29 = arith.constant 0 : index
    %c16 = arith.constant 16 : index
    %44 = vector.load %arg1[%c0_28, %c0_29, %c16] : memref<2x4x256xf32, #tpu.memory_space<vmem>>, vector<1x4x222xf32>
    %45 = vector.shape_cast %44 : vector<1x4x222xf32> to vector<4x222xf32>
    %c1_30 = arith.constant 1 : index
    %c0_31 = arith.constant 0 : index
    %c0_32 = arith.constant 0 : index
    %c0_33 = arith.constant 0 : index
    %46 = vector.load %arg2[%c1_30, %c0_31, %c0_32, %c0_33] : memref<3x3x8x4xf32, #tpu.memory_space<vmem>>, vector<1x1x8x4xf32>
    %47 = vector.shape_cast %46 : vector<1x1x8x4xf32> to vector<8x4xf32>
    %cst_34 = arith.constant dense<0.000000e+00> : vector<8x222xf32>
    %48 = tpu.matmul %47, %45, %cst_34 {dimension_numbers = #tpu.dot_dimension_numbers<[1], [0], [0], [1], [0, 0, 1, 1], [], []>} : vector<8x4xf32>, vector<4x222xf32>, vector<8x222xf32> -> vector<8x222xf32>
    %49 = arith.addf %43, %48 : vector<8x222xf32>
    %c0_35 = arith.constant 0 : index
    %c0_36 = arith.constant 0 : index
    %c17 = arith.constant 17 : index
    %50 = vector.load %arg1[%c0_35, %c0_36, %c17] : memref<2x4x256xf32, #tpu.memory_space<vmem>>, vector<1x4x222xf32>
    %51 = vector.shape_cast %50 : vector<1x4x222xf32> to vector<4x222xf32>
    %c1_37 = arith.constant 1 : index
    %c1_38 = arith.constant 1 : index
    %c0_39 = arith.constant 0 : index
    %c0_40 = arith.constant 0 : index
    %52 = vector.load %arg2[%c1_37, %c1_38, %c0_39, %c0_40] : memref<3x3x8x4xf32, #tpu.memory_space<vmem>>, vector<1x1x8x4xf32>
    %53 = vector.shape_cast %52 : vector<1x1x8x4xf32> to vector<8x4xf32>
    %cst_41 = arith.constant dense<0.000000e+00> : vector<8x222xf32>
    %54 = tpu.matmul %53, %51, %cst_41 {dimension_numbers = #tpu.dot_dimension_numbers<[1], [0], [0], [1], [0, 0, 1, 1], [], []>} : vector<8x4xf32>, vector<4x222xf32>, vector<8x222xf32> -> vector<8x222xf32>
    %55 = arith.addf %49, %54 : vector<8x222xf32>
    %c0_42 = arith.constant 0 : index
    %c0_43 = arith.constant 0 : index
    %c18 = arith.constant 18 : index
    %56 = vector.load %arg1[%c0_42, %c0_43, %c18] : memref<2x4x256xf32, #tpu.memory_space<vmem>>, vector<1x4x222xf32>
    %57 = vector.shape_cast %56 : vector<1x4x222xf32> to vector<4x222xf32>
    %c1_44 = arith.constant 1 : index
    %c2_45 = arith.constant 2 : index
    %c0_46 = arith.constant 0 : index
    %c0_47 = arith.constant 0 : index
    %58 = vector.load %arg2[%c1_44, %c2_45, %c0_46, %c0_47] : memref<3x3x8x4xf32, #tpu.memory_space<vmem>>, vector<1x1x8x4xf32>
    %59 = vector.shape_cast %58 : vector<1x1x8x4xf32> to vector<8x4xf32>
    %cst_48 = arith.constant dense<0.000000e+00> : vector<8x222xf32>
    %60 = tpu.matmul %59, %57, %cst_48 {dimension_numbers = #tpu.dot_dimension_numbers<[1], [0], [0], [1], [0, 0, 1, 1], [], []>} : vector<8x4xf32>, vector<4x222xf32>, vector<8x222xf32> -> vector<8x222xf32>
    %61 = arith.addf %55, %60 : vector<8x222xf32>
    %c0_49 = arith.constant 0 : index
    %c0_50 = arith.constant 0 : index
    %c32 = arith.constant 32 : index
    %62 = vector.load %arg1[%c0_49, %c0_50, %c32] : memref<2x4x256xf32, #tpu.memory_space<vmem>>, vector<1x4x222xf32>
    %63 = vector.shape_cast %62 : vector<1x4x222xf32> to vector<4x222xf32>
    %c2_51 = arith.constant 2 : index
    %c0_52 = arith.constant 0 : index
    %c0_53 = arith.constant 0 : index
    %c0_54 = arith.constant 0 : index
    %64 = vector.load %arg2[%c2_51, %c0_52, %c0_53, %c0_54] : memref<3x3x8x4xf32, #tpu.memory_space<vmem>>, vector<1x1x8x4xf32>
    %65 = vector.shape_cast %64 : vector<1x1x8x4xf32> to vector<8x4xf32>
    %cst_55 = arith.constant dense<0.000000e+00> : vector<8x222xf32>
    %66 = tpu.matmul %65, %63, %cst_55 {dimension_numbers = #tpu.dot_dimension_numbers<[1], [0], [0], [1], [0, 0, 1, 1], [], []>} : vector<8x4xf32>, vector<4x222xf32>, vector<8x222xf32> -> vector<8x222xf32>
    %67 = arith.addf %61, %66 : vector<8x222xf32>
    %c0_56 = arith.constant 0 : index
    %c0_57 = arith.constant 0 : index
    %c33 = arith.constant 33 : index
    %68 = vector.load %arg1[%c0_56, %c0_57, %c33] : memref<2x4x256xf32, #tpu.memory_space<vmem>>, vector<1x4x222xf32>
    %69 = vector.shape_cast %68 : vector<1x4x222xf32> to vector<4x222xf32>
    %c2_58 = arith.constant 2 : index
    %c1_59 = arith.constant 1 : index
    %c0_60 = arith.constant 0 : index
    %c0_61 = arith.constant 0 : index
    %70 = vector.load %arg2[%c2_58, %c1_59, %c0_60, %c0_61] : memref<3x3x8x4xf32, #tpu.memory_space<vmem>>, vector<1x1x8x4xf32>
    %71 = vector.shape_cast %70 : vector<1x1x8x4xf32> to vector<8x4xf32>
    %cst_62 = arith.constant dense<0.000000e+00> : vector<8x222xf32>
    %72 = tpu.matmul %71, %69, %cst_62 {dimension_numbers = #tpu.dot_dimension_numbers<[1], [0], [0], [1], [0, 0, 1, 1], [], []>} : vector<8x4xf32>, vector<4x222xf32>, vector<8x222xf32> -> vector<8x222xf32>
    %73 = arith.addf %67, %72 : vector<8x222xf32>
    %c0_63 = arith.constant 0 : index
    %c0_64 = arith.constant 0 : index
    %c34 = arith.constant 34 : index
    %74 = vector.load %arg1[%c0_63, %c0_64, %c34] : memref<2x4x256xf32, #tpu.memory_space<vmem>>, vector<1x4x222xf32>
    %75 = vector.shape_cast %74 : vector<1x4x222xf32> to vector<4x222xf32>
    %c2_65 = arith.constant 2 : index
    %c2_66 = arith.constant 2 : index
    %c0_67 = arith.constant 0 : index
    %c0_68 = arith.constant 0 : index
    %76 = vector.load %arg2[%c2_65, %c2_66, %c0_67, %c0_68] : memref<3x3x8x4xf32, #tpu.memory_space<vmem>>, vector<1x1x8x4xf32>
    %77 = vector.shape_cast %76 : vector<1x1x8x4xf32> to vector<8x4xf32>
    %cst_69 = arith.constant dense<0.000000e+00> : vector<8x222xf32>
    %78 = tpu.matmul %77, %75, %cst_69 {dimension_numbers = #tpu.dot_dimension_numbers<[1], [0], [0], [1], [0, 0, 1, 1], [], []>} : vector<8x4xf32>, vector<4x222xf32>, vector<8x222xf32> -> vector<8x222xf32>
    %79 = arith.addf %73, %78 : vector<8x222xf32>
    %80 = vector.broadcast %0 : vector<8x1xf32> to vector<8x222xf32>
    %81 = arith.addf %79, %80 : vector<8x222xf32>
    %c0_70 = arith.constant 0 : index
    %c0_71 = arith.constant 0 : index
    %c0_72 = arith.constant 0 : index
    %82 = vector.load %arg4[%c0_70, %c0_71, %c0_72] : memref<2x8x222xf32, #tpu.memory_space<vmem>>, vector<1x8x222xf32>
    %83 = vector.shape_cast %82 : vector<1x8x222xf32> to vector<8x222xf32>
    %84 = vector.shape_cast %81 : vector<8x222xf32> to vector<1x8x222xf32>
    tpu.vector_store %arg4[%c0_70, %c0_71, %c0_72], %84 {strides = array<i32>} : memref<2x8x222xf32, #tpu.memory_space<vmem>>, vector<1x8x222xf32>,
    %85 = vector.broadcast %24 : vector<1x222xf32> to vector<8x222xf32>
    %86 = arith.mulf %81, %85 : vector<8x222xf32>
    %c0_73 = arith.constant 0 : index
    %c0_74 = arith.constant 0 : index
    %87 = vector.load %arg5[%c0_73, %c0_74] : memref<8x1xf32, #tpu.memory_space<vmem>>, vector<8x1xf32>
    %cst_75 = arith.constant dense<0.000000e+00> : vector<8xf32>
    %88 = vector.multi_reduction <add>, %86, %cst_75 [1] : vector<8x222xf32> to vector<8xf32>
    %89 = vector.shape_cast %88 : vector<8xf32> to vector<8x1xf32>
    %90 = arith.addf %87, %89 : vector<8x1xf32>
    %c0_76 = arith.constant 0 : index
    %c0_77 = arith.constant 0 : index
    %91 = vector.load %arg5[%c0_76, %c0_77] : memref<8x1xf32, #tpu.memory_space<vmem>>, vector<8x1xf32>
    tpu.vector_store %arg5[%c0_76, %c0_77], %90 {strides = array<i32>} : memref<8x1xf32, #tpu.memory_space<vmem>>, vector<8x1xf32>,
    %c0_78 = arith.constant 0 : index
    %c0_79 = arith.constant 0 : index
    %92 = vector.load %arg6[%c0_78, %c0_79] : memref<8x1xf32, #tpu.memory_space<vmem>>, vector<8x1xf32>
    %93 = arith.mulf %86, %86 : vector<8x222xf32>
    %cst_80 = arith.constant dense<0.000000e+00> : vector<8xf32>
    %94 = vector.multi_reduction <add>, %93, %cst_80 [1] : vector<8x222xf32> to vector<8xf32>
    %95 = vector.shape_cast %94 : vector<8xf32> to vector<8x1xf32>
    %96 = arith.addf %92, %95 : vector<8x1xf32>
    %c0_81 = arith.constant 0 : index
    %c0_82 = arith.constant 0 : index
    %97 = vector.load %arg6[%c0_81, %c0_82] : memref<8x1xf32, #tpu.memory_space<vmem>>, vector<8x1xf32>
    tpu.vector_store %arg6[%c0_81, %c0_82], %96 {strides = array<i32>} : memref<8x1xf32, #tpu.memory_space<vmem>>, vector<8x1xf32>,
    %cst_83 = arith.constant 0.000000e+00 : f32
    %98 = vector.broadcast %cst_83 : f32 to vector<8x222xf32>
    %c1_84 = arith.constant 1 : index
    %c0_85 = arith.constant 0 : index
    %c0_86 = arith.constant 0 : index
    %99 = vector.load %arg1[%c1_84, %c0_85, %c0_86] : memref<2x4x256xf32, #tpu.memory_space<vmem>>, vector<1x4x222xf32>
    %100 = vector.shape_cast %99 : vector<1x4x222xf32> to vector<4x222xf32>
    %c0_87 = arith.constant 0 : index
    %c0_88 = arith.constant 0 : index
    %c0_89 = arith.constant 0 : index
    %c0_90 = arith.constant 0 : index
    %101 = vector.load %arg2[%c0_87, %c0_88, %c0_89, %c0_90] : memref<3x3x8x4xf32, #tpu.memory_space<vmem>>, vector<1x1x8x4xf32>
    %102 = vector.shape_cast %101 : vector<1x1x8x4xf32> to vector<8x4xf32>
    %cst_91 = arith.constant dense<0.000000e+00> : vector<8x222xf32>
    %103 = tpu.matmul %102, %100, %cst_91 {dimension_numbers = #tpu.dot_dimension_numbers<[1], [0], [0], [1], [0, 0, 1, 1], [], []>} : vector<8x4xf32>, vector<4x222xf32>, vector<8x222xf32> -> vector<8x222xf32>
    %104 = arith.addf %98, %103 : vector<8x222xf32>
    %c1_92 = arith.constant 1 : index
    %c0_93 = arith.constant 0 : index
    %c1_94 = arith.constant 1 : index
    %105 = vector.load %arg1[%c1_92, %c0_93, %c1_94] : memref<2x4x256xf32, #tpu.memory_space<vmem>>, vector<1x4x222xf32>
    %106 = vector.shape_cast %105 : vector<1x4x222xf32> to vector<4x222xf32>
    %c0_95 = arith.constant 0 : index
    %c1_96 = arith.constant 1 : index
    %c0_97 = arith.constant 0 : index
    %c0_98 = arith.constant 0 : index
    %107 = vector.load %arg2[%c0_95, %c1_96, %c0_97, %c0_98] : memref<3x3x8x4xf32, #tpu.memory_space<vmem>>, vector<1x1x8x4xf32>
    %108 = vector.shape_cast %107 : vector<1x1x8x4xf32> to vector<8x4xf32>
    %cst_99 = arith.constant dense<0.000000e+00> : vector<8x222xf32>
    %109 = tpu.matmul %108, %106, %cst_99 {dimension_numbers = #tpu.dot_dimension_numbers<[1], [0], [0], [1], [0, 0, 1, 1], [], []>} : vector<8x4xf32>, vector<4x222xf32>, vector<8x222xf32> -> vector<8x222xf32>
    %110 = arith.addf %104, %109 : vector<8x222xf32>
    %c1_100 = arith.constant 1 : index
    %c0_101 = arith.constant 0 : index
    %c2_102 = arith.constant 2 : index
    %111 = vector.load %arg1[%c1_100, %c0_101, %c2_102] : memref<2x4x256xf32, #tpu.memory_space<vmem>>, vector<1x4x222xf32>
    %112 = vector.shape_cast %111 : vector<1x4x222xf32> to vector<4x222xf32>
    %c0_103 = arith.constant 0 : index
    %c2_104 = arith.constant 2 : index
    %c0_105 = arith.constant 0 : index
    %c0_106 = arith.constant 0 : index
    %113 = vector.load %arg2[%c0_103, %c2_104, %c0_105, %c0_106] : memref<3x3x8x4xf32, #tpu.memory_space<vmem>>, vector<1x1x8x4xf32>
    %114 = vector.shape_cast %113 : vector<1x1x8x4xf32> to vector<8x4xf32>
    %cst_107 = arith.constant dense<0.000000e+00> : vector<8x222xf32>
    %115 = tpu.matmul %114, %112, %cst_107 {dimension_numbers = #tpu.dot_dimension_numbers<[1], [0], [0], [1], [0, 0, 1, 1], [], []>} : vector<8x4xf32>, vector<4x222xf32>, vector<8x222xf32> -> vector<8x222xf32>
    %116 = arith.addf %110, %115 : vector<8x222xf32>
    %c1_108 = arith.constant 1 : index
    %c0_109 = arith.constant 0 : index
    %c16_110 = arith.constant 16 : index
    %117 = vector.load %arg1[%c1_108, %c0_109, %c16_110] : memref<2x4x256xf32, #tpu.memory_space<vmem>>, vector<1x4x222xf32>
    %118 = vector.shape_cast %117 : vector<1x4x222xf32> to vector<4x222xf32>
    %c1_111 = arith.constant 1 : index
    %c0_112 = arith.constant 0 : index
    %c0_113 = arith.constant 0 : index
    %c0_114 = arith.constant 0 : index
    %119 = vector.load %arg2[%c1_111, %c0_112, %c0_113, %c0_114] : memref<3x3x8x4xf32, #tpu.memory_space<vmem>>, vector<1x1x8x4xf32>
    %120 = vector.shape_cast %119 : vector<1x1x8x4xf32> to vector<8x4xf32>
    %cst_115 = arith.constant dense<0.000000e+00> : vector<8x222xf32>
    %121 = tpu.matmul %120, %118, %cst_115 {dimension_numbers = #tpu.dot_dimension_numbers<[1], [0], [0], [1], [0, 0, 1, 1], [], []>} : vector<8x4xf32>, vector<4x222xf32>, vector<8x222xf32> -> vector<8x222xf32>
    %122 = arith.addf %116, %121 : vector<8x222xf32>
    %c1_116 = arith.constant 1 : index
    %c0_117 = arith.constant 0 : index
    %c17_118 = arith.constant 17 : index
    %123 = vector.load %arg1[%c1_116, %c0_117, %c17_118] : memref<2x4x256xf32, #tpu.memory_space<vmem>>, vector<1x4x222xf32>
    %124 = vector.shape_cast %123 : vector<1x4x222xf32> to vector<4x222xf32>
    %c1_119 = arith.constant 1 : index
    %c1_120 = arith.constant 1 : index
    %c0_121 = arith.constant 0 : index
    %c0_122 = arith.constant 0 : index
    %125 = vector.load %arg2[%c1_119, %c1_120, %c0_121, %c0_122] : memref<3x3x8x4xf32, #tpu.memory_space<vmem>>, vector<1x1x8x4xf32>
    %126 = vector.shape_cast %125 : vector<1x1x8x4xf32> to vector<8x4xf32>
    %cst_123 = arith.constant dense<0.000000e+00> : vector<8x222xf32>
    %127 = tpu.matmul %126, %124, %cst_123 {dimension_numbers = #tpu.dot_dimension_numbers<[1], [0], [0], [1], [0, 0, 1, 1], [], []>} : vector<8x4xf32>, vector<4x222xf32>, vector<8x222xf32> -> vector<8x222xf32>
    %128 = arith.addf %122, %127 : vector<8x222xf32>
    %c1_124 = arith.constant 1 : index
    %c0_125 = arith.constant 0 : index
    %c18_126 = arith.constant 18 : index
    %129 = vector.load %arg1[%c1_124, %c0_125, %c18_126] : memref<2x4x256xf32, #tpu.memory_space<vmem>>, vector<1x4x222xf32>
    %130 = vector.shape_cast %129 : vector<1x4x222xf32> to vector<4x222xf32>
    %c1_127 = arith.constant 1 : index
    %c2_128 = arith.constant 2 : index
    %c0_129 = arith.constant 0 : index
    %c0_130 = arith.constant 0 : index
    %131 = vector.load %arg2[%c1_127, %c2_128, %c0_129, %c0_130] : memref<3x3x8x4xf32, #tpu.memory_space<vmem>>, vector<1x1x8x4xf32>
    %132 = vector.shape_cast %131 : vector<1x1x8x4xf32> to vector<8x4xf32>
    %cst_131 = arith.constant dense<0.000000e+00> : vector<8x222xf32>
    %133 = tpu.matmul %132, %130, %cst_131 {dimension_numbers = #tpu.dot_dimension_numbers<[1], [0], [0], [1], [0, 0, 1, 1], [], []>} : vector<8x4xf32>, vector<4x222xf32>, vector<8x222xf32> -> vector<8x222xf32>
    %134 = arith.addf %128, %133 : vector<8x222xf32>
    %c1_132 = arith.constant 1 : index
    %c0_133 = arith.constant 0 : index
    %c32_134 = arith.constant 32 : index
    %135 = vector.load %arg1[%c1_132, %c0_133, %c32_134] : memref<2x4x256xf32, #tpu.memory_space<vmem>>, vector<1x4x222xf32>
    %136 = vector.shape_cast %135 : vector<1x4x222xf32> to vector<4x222xf32>
    %c2_135 = arith.constant 2 : index
    %c0_136 = arith.constant 0 : index
    %c0_137 = arith.constant 0 : index
    %c0_138 = arith.constant 0 : index
    %137 = vector.load %arg2[%c2_135, %c0_136, %c0_137, %c0_138] : memref<3x3x8x4xf32, #tpu.memory_space<vmem>>, vector<1x1x8x4xf32>
    %138 = vector.shape_cast %137 : vector<1x1x8x4xf32> to vector<8x4xf32>
    %cst_139 = arith.constant dense<0.000000e+00> : vector<8x222xf32>
    %139 = tpu.matmul %138, %136, %cst_139 {dimension_numbers = #tpu.dot_dimension_numbers<[1], [0], [0], [1], [0, 0, 1, 1], [], []>} : vector<8x4xf32>, vector<4x222xf32>, vector<8x222xf32> -> vector<8x222xf32>
    %140 = arith.addf %134, %139 : vector<8x222xf32>
    %c1_140 = arith.constant 1 : index
    %c0_141 = arith.constant 0 : index
    %c33_142 = arith.constant 33 : index
    %141 = vector.load %arg1[%c1_140, %c0_141, %c33_142] : memref<2x4x256xf32, #tpu.memory_space<vmem>>, vector<1x4x222xf32>
    %142 = vector.shape_cast %141 : vector<1x4x222xf32> to vector<4x222xf32>
    %c2_143 = arith.constant 2 : index
    %c1_144 = arith.constant 1 : index
    %c0_145 = arith.constant 0 : index
    %c0_146 = arith.constant 0 : index
    %143 = vector.load %arg2[%c2_143, %c1_144, %c0_145, %c0_146] : memref<3x3x8x4xf32, #tpu.memory_space<vmem>>, vector<1x1x8x4xf32>
    %144 = vector.shape_cast %143 : vector<1x1x8x4xf32> to vector<8x4xf32>
    %cst_147 = arith.constant dense<0.000000e+00> : vector<8x222xf32>
    %145 = tpu.matmul %144, %142, %cst_147 {dimension_numbers = #tpu.dot_dimension_numbers<[1], [0], [0], [1], [0, 0, 1, 1], [], []>} : vector<8x4xf32>, vector<4x222xf32>, vector<8x222xf32> -> vector<8x222xf32>
    %146 = arith.addf %140, %145 : vector<8x222xf32>
    %c1_148 = arith.constant 1 : index
    %c0_149 = arith.constant 0 : index
    %c34_150 = arith.constant 34 : index
    %147 = vector.load %arg1[%c1_148, %c0_149, %c34_150] : memref<2x4x256xf32, #tpu.memory_space<vmem>>, vector<1x4x222xf32>
    %148 = vector.shape_cast %147 : vector<1x4x222xf32> to vector<4x222xf32>
    %c2_151 = arith.constant 2 : index
    %c2_152 = arith.constant 2 : index
    %c0_153 = arith.constant 0 : index
    %c0_154 = arith.constant 0 : index
    %149 = vector.load %arg2[%c2_151, %c2_152, %c0_153, %c0_154] : memref<3x3x8x4xf32, #tpu.memory_space<vmem>>, vector<1x1x8x4xf32>
    %150 = vector.shape_cast %149 : vector<1x1x8x4xf32> to vector<8x4xf32>
    %cst_155 = arith.constant dense<0.000000e+00> : vector<8x222xf32>
    %151 = tpu.matmul %150, %148, %cst_155 {dimension_numbers = #tpu.dot_dimension_numbers<[1], [0], [0], [1], [0, 0, 1, 1], [], []>} : vector<8x4xf32>, vector<4x222xf32>, vector<8x222xf32> -> vector<8x222xf32>
    %152 = arith.addf %146, %151 : vector<8x222xf32>
    %153 = vector.broadcast %0 : vector<8x1xf32> to vector<8x222xf32>
    %154 = arith.addf %152, %153 : vector<8x222xf32>
    %c1_156 = arith.constant 1 : index
    %c0_157 = arith.constant 0 : index
    %c0_158 = arith.constant 0 : index
    %155 = vector.load %arg4[%c1_156, %c0_157, %c0_158] : memref<2x8x222xf32, #tpu.memory_space<vmem>>, vector<1x8x222xf32>
    %156 = vector.shape_cast %155 : vector<1x8x222xf32> to vector<8x222xf32>
    %157 = vector.shape_cast %154 : vector<8x222xf32> to vector<1x8x222xf32>
    tpu.vector_store %arg4[%c1_156, %c0_157, %c0_158], %157 {strides = array<i32>} : memref<2x8x222xf32, #tpu.memory_space<vmem>>, vector<1x8x222xf32>,
    %158 = vector.broadcast %24 : vector<1x222xf32> to vector<8x222xf32>
    %159 = arith.mulf %154, %158 : vector<8x222xf32>
    %c0_159 = arith.constant 0 : index
    %c0_160 = arith.constant 0 : index
    %160 = vector.load %arg5[%c0_159, %c0_160] : memref<8x1xf32, #tpu.memory_space<vmem>>, vector<8x1xf32>
    %cst_161 = arith.constant dense<0.000000e+00> : vector<8xf32>
    %161 = vector.multi_reduction <add>, %159, %cst_161 [1] : vector<8x222xf32> to vector<8xf32>
    %162 = vector.shape_cast %161 : vector<8xf32> to vector<8x1xf32>
    %163 = arith.addf %160, %162 : vector<8x1xf32>
    %c0_162 = arith.constant 0 : index
    %c0_163 = arith.constant 0 : index
    %164 = vector.load %arg5[%c0_162, %c0_163] : memref<8x1xf32, #tpu.memory_space<vmem>>, vector<8x1xf32>
    tpu.vector_store %arg5[%c0_162, %c0_163], %163 {strides = array<i32>} : memref<8x1xf32, #tpu.memory_space<vmem>>, vector<8x1xf32>,
    %c0_164 = arith.constant 0 : index
    %c0_165 = arith.constant 0 : index
    %165 = vector.load %arg6[%c0_164, %c0_165] : memref<8x1xf32, #tpu.memory_space<vmem>>, vector<8x1xf32>
    %166 = arith.mulf %159, %159 : vector<8x222xf32>
    %cst_166 = arith.constant dense<0.000000e+00> : vector<8xf32>
    %167 = vector.multi_reduction <add>, %166, %cst_166 [1] : vector<8x222xf32> to vector<8xf32>
    %168 = vector.shape_cast %167 : vector<8xf32> to vector<8x1xf32>
    %169 = arith.addf %165, %168 : vector<8x1xf32>
    %c0_167 = arith.constant 0 : index
    %c0_168 = arith.constant 0 : index
    %170 = vector.load %arg6[%c0_167, %c0_168] : memref<8x1xf32, #tpu.memory_space<vmem>>, vector<8x1xf32>
    tpu.vector_store %arg6[%c0_167, %c0_168], %169 {strides = array<i32>} : memref<8x1xf32, #tpu.memory_space<vmem>>, vector<8x1xf32>,
    return
  }
  func.func @transform_0(%arg0: i32) -> (i32, i32, i32) {
    %c0_i32 = arith.constant 0 : i32
    %c0_i32_0 = arith.constant 0 : i32
    %c0_i32_1 = arith.constant 0 : i32
    return %arg0, %c0_i32, %c0_i32_0 : i32, i32, i32
  }
  func.func @transform_1(%arg0: i32) -> (i32, i32, i32, i32) {
    %c0_i32 = arith.constant 0 : i32
    %c0_i32_0 = arith.constant 0 : i32
    %c0_i32_1 = arith.constant 0 : i32
    %c0_i32_2 = arith.constant 0 : i32
    %c0_i32_3 = arith.constant 0 : i32
    return %c0_i32, %c0_i32_0, %c0_i32_1, %c0_i32_2 : i32, i32, i32, i32
  }
  func.func @transform_2(%arg0: i32) -> (i32, i32) {
    %c0_i32 = arith.constant 0 : i32
    %c0_i32_0 = arith.constant 0 : i32
    %c0_i32_1 = arith.constant 0 : i32
    return %c0_i32, %c0_i32_0 : i32, i32
  }
  func.func @transform_3(%arg0: i32) -> (i32, i32, i32) {
    %c0_i32 = arith.constant 0 : i32
    %c0_i32_0 = arith.constant 0 : i32
    %c0_i32_1 = arith.constant 0 : i32
    return %arg0, %c0_i32, %c0_i32_0 : i32, i32, i32
  }
  func.func @transform_4(%arg0: i32) -> (i32, i32) {
    %c0_i32 = arith.constant 0 : i32
    %c0_i32_0 = arith.constant 0 : i32
    %c0_i32_1 = arith.constant 0 : i32
    return %c0_i32, %c0_i32_0 : i32, i32
  }
  func.func @transform_5(%arg0: i32) -> (i32, i32) {
    %c0_i32 = arith.constant 0 : i32
    %c0_i32_0 = arith.constant 0 : i32
    %c0_i32_1 = arith.constant 0 : i32
    return %c0_i32, %c0_i32_0 : i32, i32
  }
}

module attributes {stable_mosaic.version = 11 : i64} {
  func.func @_conv3x3_kernel(%arg0: i32, %arg1: memref<2x8x222xf32, #tpu.memory_space<vmem>>, %arg2: memref<3x3x8x8xf32, #tpu.memory_space<vmem>>, %arg3: memref<8x1xf32, #tpu.memory_space<vmem>>, %arg4: memref<2x8x188xf32, #tpu.memory_space<vmem>>) attributes {dimension_semantics = [#tpu.dimension_semantics<parallel>], iteration_bounds = array<i64: 1>, scalar_prefetch = 0 : i64, scratch_operands = 0 : i64, tpu.core_type = #tpu.core_type<tc>, window_params = [{transform_indices = @transform_0, window_bounds = array<i64: 2, 8, 222>}, {pipeline_mode = #tpu.pipeline_mode<synchronous>, transform_indices = @transform_1, window_bounds = array<i64: 3, 3, 8, 8>}, {pipeline_mode = #tpu.pipeline_mode<synchronous>, transform_indices = @transform_2, window_bounds = array<i64: 8, 1>}, {transform_indices = @transform_3, window_bounds = array<i64: 2, 8, 188>}]} {
    %c0 = arith.constant 0 : index
    %c0_0 = arith.constant 0 : index
    %0 = vector.load %arg3[%c0, %c0_0] : memref<8x1xf32, #tpu.memory_space<vmem>>, vector<8x1xf32>
    %cst = arith.constant 0.000000e+00 : f32
    %1 = vector.broadcast %cst : f32 to vector<8x188xf32>
    %c0_1 = arith.constant 0 : index
    %c0_2 = arith.constant 0 : index
    %c0_3 = arith.constant 0 : index
    %2 = vector.load %arg1[%c0_1, %c0_2, %c0_3] : memref<2x8x222xf32, #tpu.memory_space<vmem>>, vector<1x8x188xf32>
    %3 = vector.shape_cast %2 : vector<1x8x188xf32> to vector<8x188xf32>
    %c0_4 = arith.constant 0 : index
    %c0_5 = arith.constant 0 : index
    %c0_6 = arith.constant 0 : index
    %c0_7 = arith.constant 0 : index
    %4 = vector.load %arg2[%c0_4, %c0_5, %c0_6, %c0_7] : memref<3x3x8x8xf32, #tpu.memory_space<vmem>>, vector<1x1x8x8xf32>
    %5 = vector.shape_cast %4 : vector<1x1x8x8xf32> to vector<8x8xf32>
    %cst_8 = arith.constant dense<0.000000e+00> : vector<8x188xf32>
    %6 = tpu.matmul %5, %3, %cst_8 {dimension_numbers = #tpu.dot_dimension_numbers<[1], [0], [0], [1], [0, 0, 1, 1], [], []>} : vector<8x8xf32>, vector<8x188xf32>, vector<8x188xf32> -> vector<8x188xf32>
    %7 = arith.addf %1, %6 : vector<8x188xf32>
    %c0_9 = arith.constant 0 : index
    %c0_10 = arith.constant 0 : index
    %c1 = arith.constant 1 : index
    %8 = vector.load %arg1[%c0_9, %c0_10, %c1] : memref<2x8x222xf32, #tpu.memory_space<vmem>>, vector<1x8x188xf32>
    %9 = vector.shape_cast %8 : vector<1x8x188xf32> to vector<8x188xf32>
    %c0_11 = arith.constant 0 : index
    %c1_12 = arith.constant 1 : index
    %c0_13 = arith.constant 0 : index
    %c0_14 = arith.constant 0 : index
    %10 = vector.load %arg2[%c0_11, %c1_12, %c0_13, %c0_14] : memref<3x3x8x8xf32, #tpu.memory_space<vmem>>, vector<1x1x8x8xf32>
    %11 = vector.shape_cast %10 : vector<1x1x8x8xf32> to vector<8x8xf32>
    %cst_15 = arith.constant dense<0.000000e+00> : vector<8x188xf32>
    %12 = tpu.matmul %11, %9, %cst_15 {dimension_numbers = #tpu.dot_dimension_numbers<[1], [0], [0], [1], [0, 0, 1, 1], [], []>} : vector<8x8xf32>, vector<8x188xf32>, vector<8x188xf32> -> vector<8x188xf32>
    %13 = arith.addf %7, %12 : vector<8x188xf32>
    %c0_16 = arith.constant 0 : index
    %c0_17 = arith.constant 0 : index
    %c2 = arith.constant 2 : index
    %14 = vector.load %arg1[%c0_16, %c0_17, %c2] : memref<2x8x222xf32, #tpu.memory_space<vmem>>, vector<1x8x188xf32>
    %15 = vector.shape_cast %14 : vector<1x8x188xf32> to vector<8x188xf32>
    %c0_18 = arith.constant 0 : index
    %c2_19 = arith.constant 2 : index
    %c0_20 = arith.constant 0 : index
    %c0_21 = arith.constant 0 : index
    %16 = vector.load %arg2[%c0_18, %c2_19, %c0_20, %c0_21] : memref<3x3x8x8xf32, #tpu.memory_space<vmem>>, vector<1x1x8x8xf32>
    %17 = vector.shape_cast %16 : vector<1x1x8x8xf32> to vector<8x8xf32>
    %cst_22 = arith.constant dense<0.000000e+00> : vector<8x188xf32>
    %18 = tpu.matmul %17, %15, %cst_22 {dimension_numbers = #tpu.dot_dimension_numbers<[1], [0], [0], [1], [0, 0, 1, 1], [], []>} : vector<8x8xf32>, vector<8x188xf32>, vector<8x188xf32> -> vector<8x188xf32>
    %19 = arith.addf %13, %18 : vector<8x188xf32>
    %c0_23 = arith.constant 0 : index
    %c0_24 = arith.constant 0 : index
    %c16 = arith.constant 16 : index
    %20 = vector.load %arg1[%c0_23, %c0_24, %c16] : memref<2x8x222xf32, #tpu.memory_space<vmem>>, vector<1x8x188xf32>
    %21 = vector.shape_cast %20 : vector<1x8x188xf32> to vector<8x188xf32>
    %c1_25 = arith.constant 1 : index
    %c0_26 = arith.constant 0 : index
    %c0_27 = arith.constant 0 : index
    %c0_28 = arith.constant 0 : index
    %22 = vector.load %arg2[%c1_25, %c0_26, %c0_27, %c0_28] : memref<3x3x8x8xf32, #tpu.memory_space<vmem>>, vector<1x1x8x8xf32>
    %23 = vector.shape_cast %22 : vector<1x1x8x8xf32> to vector<8x8xf32>
    %cst_29 = arith.constant dense<0.000000e+00> : vector<8x188xf32>
    %24 = tpu.matmul %23, %21, %cst_29 {dimension_numbers = #tpu.dot_dimension_numbers<[1], [0], [0], [1], [0, 0, 1, 1], [], []>} : vector<8x8xf32>, vector<8x188xf32>, vector<8x188xf32> -> vector<8x188xf32>
    %25 = arith.addf %19, %24 : vector<8x188xf32>
    %c0_30 = arith.constant 0 : index
    %c0_31 = arith.constant 0 : index
    %c17 = arith.constant 17 : index
    %26 = vector.load %arg1[%c0_30, %c0_31, %c17] : memref<2x8x222xf32, #tpu.memory_space<vmem>>, vector<1x8x188xf32>
    %27 = vector.shape_cast %26 : vector<1x8x188xf32> to vector<8x188xf32>
    %c1_32 = arith.constant 1 : index
    %c1_33 = arith.constant 1 : index
    %c0_34 = arith.constant 0 : index
    %c0_35 = arith.constant 0 : index
    %28 = vector.load %arg2[%c1_32, %c1_33, %c0_34, %c0_35] : memref<3x3x8x8xf32, #tpu.memory_space<vmem>>, vector<1x1x8x8xf32>
    %29 = vector.shape_cast %28 : vector<1x1x8x8xf32> to vector<8x8xf32>
    %cst_36 = arith.constant dense<0.000000e+00> : vector<8x188xf32>
    %30 = tpu.matmul %29, %27, %cst_36 {dimension_numbers = #tpu.dot_dimension_numbers<[1], [0], [0], [1], [0, 0, 1, 1], [], []>} : vector<8x8xf32>, vector<8x188xf32>, vector<8x188xf32> -> vector<8x188xf32>
    %31 = arith.addf %25, %30 : vector<8x188xf32>
    %c0_37 = arith.constant 0 : index
    %c0_38 = arith.constant 0 : index
    %c18 = arith.constant 18 : index
    %32 = vector.load %arg1[%c0_37, %c0_38, %c18] : memref<2x8x222xf32, #tpu.memory_space<vmem>>, vector<1x8x188xf32>
    %33 = vector.shape_cast %32 : vector<1x8x188xf32> to vector<8x188xf32>
    %c1_39 = arith.constant 1 : index
    %c2_40 = arith.constant 2 : index
    %c0_41 = arith.constant 0 : index
    %c0_42 = arith.constant 0 : index
    %34 = vector.load %arg2[%c1_39, %c2_40, %c0_41, %c0_42] : memref<3x3x8x8xf32, #tpu.memory_space<vmem>>, vector<1x1x8x8xf32>
    %35 = vector.shape_cast %34 : vector<1x1x8x8xf32> to vector<8x8xf32>
    %cst_43 = arith.constant dense<0.000000e+00> : vector<8x188xf32>
    %36 = tpu.matmul %35, %33, %cst_43 {dimension_numbers = #tpu.dot_dimension_numbers<[1], [0], [0], [1], [0, 0, 1, 1], [], []>} : vector<8x8xf32>, vector<8x188xf32>, vector<8x188xf32> -> vector<8x188xf32>
    %37 = arith.addf %31, %36 : vector<8x188xf32>
    %c0_44 = arith.constant 0 : index
    %c0_45 = arith.constant 0 : index
    %c32 = arith.constant 32 : index
    %38 = vector.load %arg1[%c0_44, %c0_45, %c32] : memref<2x8x222xf32, #tpu.memory_space<vmem>>, vector<1x8x188xf32>
    %39 = vector.shape_cast %38 : vector<1x8x188xf32> to vector<8x188xf32>
    %c2_46 = arith.constant 2 : index
    %c0_47 = arith.constant 0 : index
    %c0_48 = arith.constant 0 : index
    %c0_49 = arith.constant 0 : index
    %40 = vector.load %arg2[%c2_46, %c0_47, %c0_48, %c0_49] : memref<3x3x8x8xf32, #tpu.memory_space<vmem>>, vector<1x1x8x8xf32>
    %41 = vector.shape_cast %40 : vector<1x1x8x8xf32> to vector<8x8xf32>
    %cst_50 = arith.constant dense<0.000000e+00> : vector<8x188xf32>
    %42 = tpu.matmul %41, %39, %cst_50 {dimension_numbers = #tpu.dot_dimension_numbers<[1], [0], [0], [1], [0, 0, 1, 1], [], []>} : vector<8x8xf32>, vector<8x188xf32>, vector<8x188xf32> -> vector<8x188xf32>
    %43 = arith.addf %37, %42 : vector<8x188xf32>
    %c0_51 = arith.constant 0 : index
    %c0_52 = arith.constant 0 : index
    %c33 = arith.constant 33 : index
    %44 = vector.load %arg1[%c0_51, %c0_52, %c33] : memref<2x8x222xf32, #tpu.memory_space<vmem>>, vector<1x8x188xf32>
    %45 = vector.shape_cast %44 : vector<1x8x188xf32> to vector<8x188xf32>
    %c2_53 = arith.constant 2 : index
    %c1_54 = arith.constant 1 : index
    %c0_55 = arith.constant 0 : index
    %c0_56 = arith.constant 0 : index
    %46 = vector.load %arg2[%c2_53, %c1_54, %c0_55, %c0_56] : memref<3x3x8x8xf32, #tpu.memory_space<vmem>>, vector<1x1x8x8xf32>
    %47 = vector.shape_cast %46 : vector<1x1x8x8xf32> to vector<8x8xf32>
    %cst_57 = arith.constant dense<0.000000e+00> : vector<8x188xf32>
    %48 = tpu.matmul %47, %45, %cst_57 {dimension_numbers = #tpu.dot_dimension_numbers<[1], [0], [0], [1], [0, 0, 1, 1], [], []>} : vector<8x8xf32>, vector<8x188xf32>, vector<8x188xf32> -> vector<8x188xf32>
    %49 = arith.addf %43, %48 : vector<8x188xf32>
    %c0_58 = arith.constant 0 : index
    %c0_59 = arith.constant 0 : index
    %c34 = arith.constant 34 : index
    %50 = vector.load %arg1[%c0_58, %c0_59, %c34] : memref<2x8x222xf32, #tpu.memory_space<vmem>>, vector<1x8x188xf32>
    %51 = vector.shape_cast %50 : vector<1x8x188xf32> to vector<8x188xf32>
    %c2_60 = arith.constant 2 : index
    %c2_61 = arith.constant 2 : index
    %c0_62 = arith.constant 0 : index
    %c0_63 = arith.constant 0 : index
    %52 = vector.load %arg2[%c2_60, %c2_61, %c0_62, %c0_63] : memref<3x3x8x8xf32, #tpu.memory_space<vmem>>, vector<1x1x8x8xf32>
    %53 = vector.shape_cast %52 : vector<1x1x8x8xf32> to vector<8x8xf32>
    %cst_64 = arith.constant dense<0.000000e+00> : vector<8x188xf32>
    %54 = tpu.matmul %53, %51, %cst_64 {dimension_numbers = #tpu.dot_dimension_numbers<[1], [0], [0], [1], [0, 0, 1, 1], [], []>} : vector<8x8xf32>, vector<8x188xf32>, vector<8x188xf32> -> vector<8x188xf32>
    %55 = arith.addf %49, %54 : vector<8x188xf32>
    %56 = vector.broadcast %0 : vector<8x1xf32> to vector<8x188xf32>
    %57 = arith.addf %55, %56 : vector<8x188xf32>
    %c0_65 = arith.constant 0 : index
    %c0_66 = arith.constant 0 : index
    %c0_67 = arith.constant 0 : index
    %58 = vector.load %arg4[%c0_65, %c0_66, %c0_67] : memref<2x8x188xf32, #tpu.memory_space<vmem>>, vector<1x8x188xf32>
    %59 = vector.shape_cast %58 : vector<1x8x188xf32> to vector<8x188xf32>
    %60 = vector.shape_cast %57 : vector<8x188xf32> to vector<1x8x188xf32>
    tpu.vector_store %arg4[%c0_65, %c0_66, %c0_67], %60 {strides = array<i32>} : memref<2x8x188xf32, #tpu.memory_space<vmem>>, vector<1x8x188xf32>,
    %cst_68 = arith.constant 0.000000e+00 : f32
    %61 = vector.broadcast %cst_68 : f32 to vector<8x188xf32>
    %c1_69 = arith.constant 1 : index
    %c0_70 = arith.constant 0 : index
    %c0_71 = arith.constant 0 : index
    %62 = vector.load %arg1[%c1_69, %c0_70, %c0_71] : memref<2x8x222xf32, #tpu.memory_space<vmem>>, vector<1x8x188xf32>
    %63 = vector.shape_cast %62 : vector<1x8x188xf32> to vector<8x188xf32>
    %c0_72 = arith.constant 0 : index
    %c0_73 = arith.constant 0 : index
    %c0_74 = arith.constant 0 : index
    %c0_75 = arith.constant 0 : index
    %64 = vector.load %arg2[%c0_72, %c0_73, %c0_74, %c0_75] : memref<3x3x8x8xf32, #tpu.memory_space<vmem>>, vector<1x1x8x8xf32>
    %65 = vector.shape_cast %64 : vector<1x1x8x8xf32> to vector<8x8xf32>
    %cst_76 = arith.constant dense<0.000000e+00> : vector<8x188xf32>
    %66 = tpu.matmul %65, %63, %cst_76 {dimension_numbers = #tpu.dot_dimension_numbers<[1], [0], [0], [1], [0, 0, 1, 1], [], []>} : vector<8x8xf32>, vector<8x188xf32>, vector<8x188xf32> -> vector<8x188xf32>
    %67 = arith.addf %61, %66 : vector<8x188xf32>
    %c1_77 = arith.constant 1 : index
    %c0_78 = arith.constant 0 : index
    %c1_79 = arith.constant 1 : index
    %68 = vector.load %arg1[%c1_77, %c0_78, %c1_79] : memref<2x8x222xf32, #tpu.memory_space<vmem>>, vector<1x8x188xf32>
    %69 = vector.shape_cast %68 : vector<1x8x188xf32> to vector<8x188xf32>
    %c0_80 = arith.constant 0 : index
    %c1_81 = arith.constant 1 : index
    %c0_82 = arith.constant 0 : index
    %c0_83 = arith.constant 0 : index
    %70 = vector.load %arg2[%c0_80, %c1_81, %c0_82, %c0_83] : memref<3x3x8x8xf32, #tpu.memory_space<vmem>>, vector<1x1x8x8xf32>
    %71 = vector.shape_cast %70 : vector<1x1x8x8xf32> to vector<8x8xf32>
    %cst_84 = arith.constant dense<0.000000e+00> : vector<8x188xf32>
    %72 = tpu.matmul %71, %69, %cst_84 {dimension_numbers = #tpu.dot_dimension_numbers<[1], [0], [0], [1], [0, 0, 1, 1], [], []>} : vector<8x8xf32>, vector<8x188xf32>, vector<8x188xf32> -> vector<8x188xf32>
    %73 = arith.addf %67, %72 : vector<8x188xf32>
    %c1_85 = arith.constant 1 : index
    %c0_86 = arith.constant 0 : index
    %c2_87 = arith.constant 2 : index
    %74 = vector.load %arg1[%c1_85, %c0_86, %c2_87] : memref<2x8x222xf32, #tpu.memory_space<vmem>>, vector<1x8x188xf32>
    %75 = vector.shape_cast %74 : vector<1x8x188xf32> to vector<8x188xf32>
    %c0_88 = arith.constant 0 : index
    %c2_89 = arith.constant 2 : index
    %c0_90 = arith.constant 0 : index
    %c0_91 = arith.constant 0 : index
    %76 = vector.load %arg2[%c0_88, %c2_89, %c0_90, %c0_91] : memref<3x3x8x8xf32, #tpu.memory_space<vmem>>, vector<1x1x8x8xf32>
    %77 = vector.shape_cast %76 : vector<1x1x8x8xf32> to vector<8x8xf32>
    %cst_92 = arith.constant dense<0.000000e+00> : vector<8x188xf32>
    %78 = tpu.matmul %77, %75, %cst_92 {dimension_numbers = #tpu.dot_dimension_numbers<[1], [0], [0], [1], [0, 0, 1, 1], [], []>} : vector<8x8xf32>, vector<8x188xf32>, vector<8x188xf32> -> vector<8x188xf32>
    %79 = arith.addf %73, %78 : vector<8x188xf32>
    %c1_93 = arith.constant 1 : index
    %c0_94 = arith.constant 0 : index
    %c16_95 = arith.constant 16 : index
    %80 = vector.load %arg1[%c1_93, %c0_94, %c16_95] : memref<2x8x222xf32, #tpu.memory_space<vmem>>, vector<1x8x188xf32>
    %81 = vector.shape_cast %80 : vector<1x8x188xf32> to vector<8x188xf32>
    %c1_96 = arith.constant 1 : index
    %c0_97 = arith.constant 0 : index
    %c0_98 = arith.constant 0 : index
    %c0_99 = arith.constant 0 : index
    %82 = vector.load %arg2[%c1_96, %c0_97, %c0_98, %c0_99] : memref<3x3x8x8xf32, #tpu.memory_space<vmem>>, vector<1x1x8x8xf32>
    %83 = vector.shape_cast %82 : vector<1x1x8x8xf32> to vector<8x8xf32>
    %cst_100 = arith.constant dense<0.000000e+00> : vector<8x188xf32>
    %84 = tpu.matmul %83, %81, %cst_100 {dimension_numbers = #tpu.dot_dimension_numbers<[1], [0], [0], [1], [0, 0, 1, 1], [], []>} : vector<8x8xf32>, vector<8x188xf32>, vector<8x188xf32> -> vector<8x188xf32>
    %85 = arith.addf %79, %84 : vector<8x188xf32>
    %c1_101 = arith.constant 1 : index
    %c0_102 = arith.constant 0 : index
    %c17_103 = arith.constant 17 : index
    %86 = vector.load %arg1[%c1_101, %c0_102, %c17_103] : memref<2x8x222xf32, #tpu.memory_space<vmem>>, vector<1x8x188xf32>
    %87 = vector.shape_cast %86 : vector<1x8x188xf32> to vector<8x188xf32>
    %c1_104 = arith.constant 1 : index
    %c1_105 = arith.constant 1 : index
    %c0_106 = arith.constant 0 : index
    %c0_107 = arith.constant 0 : index
    %88 = vector.load %arg2[%c1_104, %c1_105, %c0_106, %c0_107] : memref<3x3x8x8xf32, #tpu.memory_space<vmem>>, vector<1x1x8x8xf32>
    %89 = vector.shape_cast %88 : vector<1x1x8x8xf32> to vector<8x8xf32>
    %cst_108 = arith.constant dense<0.000000e+00> : vector<8x188xf32>
    %90 = tpu.matmul %89, %87, %cst_108 {dimension_numbers = #tpu.dot_dimension_numbers<[1], [0], [0], [1], [0, 0, 1, 1], [], []>} : vector<8x8xf32>, vector<8x188xf32>, vector<8x188xf32> -> vector<8x188xf32>
    %91 = arith.addf %85, %90 : vector<8x188xf32>
    %c1_109 = arith.constant 1 : index
    %c0_110 = arith.constant 0 : index
    %c18_111 = arith.constant 18 : index
    %92 = vector.load %arg1[%c1_109, %c0_110, %c18_111] : memref<2x8x222xf32, #tpu.memory_space<vmem>>, vector<1x8x188xf32>
    %93 = vector.shape_cast %92 : vector<1x8x188xf32> to vector<8x188xf32>
    %c1_112 = arith.constant 1 : index
    %c2_113 = arith.constant 2 : index
    %c0_114 = arith.constant 0 : index
    %c0_115 = arith.constant 0 : index
    %94 = vector.load %arg2[%c1_112, %c2_113, %c0_114, %c0_115] : memref<3x3x8x8xf32, #tpu.memory_space<vmem>>, vector<1x1x8x8xf32>
    %95 = vector.shape_cast %94 : vector<1x1x8x8xf32> to vector<8x8xf32>
    %cst_116 = arith.constant dense<0.000000e+00> : vector<8x188xf32>
    %96 = tpu.matmul %95, %93, %cst_116 {dimension_numbers = #tpu.dot_dimension_numbers<[1], [0], [0], [1], [0, 0, 1, 1], [], []>} : vector<8x8xf32>, vector<8x188xf32>, vector<8x188xf32> -> vector<8x188xf32>
    %97 = arith.addf %91, %96 : vector<8x188xf32>
    %c1_117 = arith.constant 1 : index
    %c0_118 = arith.constant 0 : index
    %c32_119 = arith.constant 32 : index
    %98 = vector.load %arg1[%c1_117, %c0_118, %c32_119] : memref<2x8x222xf32, #tpu.memory_space<vmem>>, vector<1x8x188xf32>
    %99 = vector.shape_cast %98 : vector<1x8x188xf32> to vector<8x188xf32>
    %c2_120 = arith.constant 2 : index
    %c0_121 = arith.constant 0 : index
    %c0_122 = arith.constant 0 : index
    %c0_123 = arith.constant 0 : index
    %100 = vector.load %arg2[%c2_120, %c0_121, %c0_122, %c0_123] : memref<3x3x8x8xf32, #tpu.memory_space<vmem>>, vector<1x1x8x8xf32>
    %101 = vector.shape_cast %100 : vector<1x1x8x8xf32> to vector<8x8xf32>
    %cst_124 = arith.constant dense<0.000000e+00> : vector<8x188xf32>
    %102 = tpu.matmul %101, %99, %cst_124 {dimension_numbers = #tpu.dot_dimension_numbers<[1], [0], [0], [1], [0, 0, 1, 1], [], []>} : vector<8x8xf32>, vector<8x188xf32>, vector<8x188xf32> -> vector<8x188xf32>
    %103 = arith.addf %97, %102 : vector<8x188xf32>
    %c1_125 = arith.constant 1 : index
    %c0_126 = arith.constant 0 : index
    %c33_127 = arith.constant 33 : index
    %104 = vector.load %arg1[%c1_125, %c0_126, %c33_127] : memref<2x8x222xf32, #tpu.memory_space<vmem>>, vector<1x8x188xf32>
    %105 = vector.shape_cast %104 : vector<1x8x188xf32> to vector<8x188xf32>
    %c2_128 = arith.constant 2 : index
    %c1_129 = arith.constant 1 : index
    %c0_130 = arith.constant 0 : index
    %c0_131 = arith.constant 0 : index
    %106 = vector.load %arg2[%c2_128, %c1_129, %c0_130, %c0_131] : memref<3x3x8x8xf32, #tpu.memory_space<vmem>>, vector<1x1x8x8xf32>
    %107 = vector.shape_cast %106 : vector<1x1x8x8xf32> to vector<8x8xf32>
    %cst_132 = arith.constant dense<0.000000e+00> : vector<8x188xf32>
    %108 = tpu.matmul %107, %105, %cst_132 {dimension_numbers = #tpu.dot_dimension_numbers<[1], [0], [0], [1], [0, 0, 1, 1], [], []>} : vector<8x8xf32>, vector<8x188xf32>, vector<8x188xf32> -> vector<8x188xf32>
    %109 = arith.addf %103, %108 : vector<8x188xf32>
    %c1_133 = arith.constant 1 : index
    %c0_134 = arith.constant 0 : index
    %c34_135 = arith.constant 34 : index
    %110 = vector.load %arg1[%c1_133, %c0_134, %c34_135] : memref<2x8x222xf32, #tpu.memory_space<vmem>>, vector<1x8x188xf32>
    %111 = vector.shape_cast %110 : vector<1x8x188xf32> to vector<8x188xf32>
    %c2_136 = arith.constant 2 : index
    %c2_137 = arith.constant 2 : index
    %c0_138 = arith.constant 0 : index
    %c0_139 = arith.constant 0 : index
    %112 = vector.load %arg2[%c2_136, %c2_137, %c0_138, %c0_139] : memref<3x3x8x8xf32, #tpu.memory_space<vmem>>, vector<1x1x8x8xf32>
    %113 = vector.shape_cast %112 : vector<1x1x8x8xf32> to vector<8x8xf32>
    %cst_140 = arith.constant dense<0.000000e+00> : vector<8x188xf32>
    %114 = tpu.matmul %113, %111, %cst_140 {dimension_numbers = #tpu.dot_dimension_numbers<[1], [0], [0], [1], [0, 0, 1, 1], [], []>} : vector<8x8xf32>, vector<8x188xf32>, vector<8x188xf32> -> vector<8x188xf32>
    %115 = arith.addf %109, %114 : vector<8x188xf32>
    %116 = vector.broadcast %0 : vector<8x1xf32> to vector<8x188xf32>
    %117 = arith.addf %115, %116 : vector<8x188xf32>
    %c1_141 = arith.constant 1 : index
    %c0_142 = arith.constant 0 : index
    %c0_143 = arith.constant 0 : index
    %118 = vector.load %arg4[%c1_141, %c0_142, %c0_143] : memref<2x8x188xf32, #tpu.memory_space<vmem>>, vector<1x8x188xf32>
    %119 = vector.shape_cast %118 : vector<1x8x188xf32> to vector<8x188xf32>
    %120 = vector.shape_cast %117 : vector<8x188xf32> to vector<1x8x188xf32>
    tpu.vector_store %arg4[%c1_141, %c0_142, %c0_143], %120 {strides = array<i32>} : memref<2x8x188xf32, #tpu.memory_space<vmem>>, vector<1x8x188xf32>,
    return
  }
  func.func @transform_0(%arg0: i32) -> (i32, i32, i32) {
    %c0_i32 = arith.constant 0 : i32
    %c0_i32_0 = arith.constant 0 : i32
    %c0_i32_1 = arith.constant 0 : i32
    return %arg0, %c0_i32, %c0_i32_0 : i32, i32, i32
  }
  func.func @transform_1(%arg0: i32) -> (i32, i32, i32, i32) {
    %c0_i32 = arith.constant 0 : i32
    %c0_i32_0 = arith.constant 0 : i32
    %c0_i32_1 = arith.constant 0 : i32
    %c0_i32_2 = arith.constant 0 : i32
    %c0_i32_3 = arith.constant 0 : i32
    return %c0_i32, %c0_i32_0, %c0_i32_1, %c0_i32_2 : i32, i32, i32, i32
  }
  func.func @transform_2(%arg0: i32) -> (i32, i32) {
    %c0_i32 = arith.constant 0 : i32
    %c0_i32_0 = arith.constant 0 : i32
    %c0_i32_1 = arith.constant 0 : i32
    return %c0_i32, %c0_i32_0 : i32, i32
  }
  func.func @transform_3(%arg0: i32) -> (i32, i32, i32) {
    %c0_i32 = arith.constant 0 : i32
    %c0_i32_0 = arith.constant 0 : i32
    %c0_i32_1 = arith.constant 0 : i32
    return %arg0, %c0_i32, %c0_i32_0 : i32, i32, i32
  }
}

</mosaic_0001>

<llo_original>
// kernel: bottom_block_forward.3
$region0: #{bottom_block_forward.3}
  #allocation0 [shape = 'u32[]', space=smem, size = 0x4, offset = 0x4, fixed_abs, tag = 'smem constant byte address 0x4 - core index']
  #allocation1 [shape = 'u32[144,128]{1,0:T(1,128)}', space=vmem, size = 0x12000, scoped, tag = 'internal scratch']
  %s0 = inlined_call_operand.vmem [shape: f32[2,4,256], index: 0, kind: input, shape index: {}]
  %s1 = inlined_call_operand.vmem [shape: f32[4,1], index: 1, kind: output, shape index: {0}]
  %s2 = inlined_call_operand.vmem [shape: f32[4,1], index: 2, kind: output, shape index: {1}]
  %3 = xla_tuple %s1, %s2
  %s4 = sld [smem:[#allocation0]]
  $region26: #{bottom_block_forward.3} parent=0
    _
  %s6 = ssub.s32 1, %s4
  %s7 = scalar_select 0, %s6, %s4
  // Predicated region
  $region2: #{bottom_block_forward.3} parent=0 // pred_check
    _
  $region3: #{bottom_block_forward.3} parent=0 // pred_check_branch
    %9 = sbr.rel (0) target = $region5
  $region4: #{bottom_block_forward.3} parent=0 // pred_region
    _
  $region5: #{bottom_block_forward.3} parent=0 // pred_fallthru
    _
  %p10 = scmp.eq.s32.totalorder 0, 0
  // Predicated region
  $region6: #{bottom_block_forward.3} parent=0 // pred_check
    %p11 = pneg %p10
  $region7: #{bottom_block_forward.3} parent=0 // pred_check_branch
    %13 = sbr.rel (%p11) target = $region9
  $region8: #{bottom_block_forward.3} parent=0 // pred_region
    %vm14 = vcmask 3072
    %15 = vst.msk [vmem:[%s1] sm:$0xf] %vm14, 0.0
    %16 = vst.msk [vmem:[%s2] sm:$0xf] %vm14, 0.0
  $region9: #{bottom_block_forward.3} parent=0 // pred_fallthru
    _
  %v17 = vld [vmem:[%s0] sm:$0xff]
  %v18 = vld [vmem:[%s0 + $0x8] sm:$0xff]
  %v21 = vcombine.high %v17, %v17
  %v22 = vcombine.high %v18, %v18
  %vm25 = vcmask 1043456
  %v26 = vsel %vm25, %v17, 0.0
  %v27 = vsel %vm25, %v18, 0.0
  %v28 = vadd.f32 %v26, %v27
  %v29 = vsel %vm25, %v21, 0.0
  %v30 = vsel %vm25, %v22, 0.0
  %v31 = vadd.f32 %v29, %v30
  %v32 = vmul.f32 %v17, %v17
  %v33 = vmul.f32 %v18, %v18
  %v36 = vcombine.high %v32, %v32
  %v37 = vcombine.high %v33, %v33
  %v40 = vsel %vm25, %v32, 0.0
  %v41 = vsel %vm25, %v33, 0.0
  %v42 = vadd.f32 %v40, %v41
  %v43 = vsel %vm25, %v36, 0.0
  %v44 = vsel %vm25, %v37, 0.0
  %v45 = vadd.f32 %v43, %v44
  %v46 = vld [vmem:[%s1] sm:$0xf]
  %v47 = vsel %vm25, %v28, 0.0
  %v48 = vsel %vm25, %v31, 0.0
  %v49 = vadd.f32 %v47, %v48
  %50 = vadd.xlane.f32.xlu0 %v49
  %v51 = vpop.xlane.xlu0 %50
  %v52 = vadd.f32 %v46, %v51
  %vm53 = vcmask 3072
  %54 = vst.msk [vmem:[%s1] sm:$0xf] %vm53, %v52
  %v55 = vld [vmem:[%s2] sm:$0xf]
  %v56 = vsel %vm25, %v42, 0.0
  %v57 = vsel %vm25, %v45, 0.0
  %v58 = vadd.f32 %v56, %v57
  %59 = vadd.xlane.f32.xlu0 %v58
  %v60 = vpop.xlane.xlu0 %59
  %v61 = vadd.f32 %v55, %v60
  %62 = vst.msk [vmem:[%s2] sm:$0xf] %vm53, %v61
  // Predicated region
  $region10: #{bottom_block_forward.3} parent=0 // pred_check
    _
  $region11: #{bottom_block_forward.3} parent=0 // pred_check_branch
    %64 = sbr.rel (0) target = $region13
  $region12: #{bottom_block_forward.3} parent=0 // pred_region
    _
  $region13: #{bottom_block_forward.3} parent=0 // pred_fallthru
    _
  // Predicated region
  $region14: #{bottom_block_forward.3} parent=0 // pred_check
    _
  $region15: #{bottom_block_forward.3} parent=0 // pred_check_branch
    %66 = sbr.rel (0) target = $region17
  $region16: #{bottom_block_forward.3} parent=0 // pred_region
    _
  $region17: #{bottom_block_forward.3} parent=0 // pred_fallthru
    _
  // Predicated region
  $region18: #{bottom_block_forward.3} parent=0 // pred_check
    _
  $region19: #{bottom_block_forward.3} parent=0 // pred_check_branch
    %68 = sbr.rel (0) target = $region21
  $region20: #{bottom_block_forward.3} parent=0 // pred_region
    _
  $region21: #{bottom_block_forward.3} parent=0 // pred_fallthru
    _
  // Predicated region
  $region22: #{bottom_block_forward.3} parent=0 // pred_check
    _
  $region23: #{bottom_block_forward.3} parent=0 // pred_check_branch
    %70 = sbr.rel (0) target = $region25
  $region24: #{bottom_block_forward.3} parent=0 // pred_region
    _
  $region25: #{bottom_block_forward.3} parent=0 // pred_fallthru
    _

// kernel: bottom_block_forward.5
$region0: #{bottom_block_forward.5}
  #allocation0 [shape = 'u32[]', space=smem, size = 0x4, offset = 0x4, fixed_abs, tag = 'smem constant byte address 0x4 - core index']
  #allocation1 [shape = 'u32[144,128]{1,0:T(1,128)}', space=vmem, size = 0x12000, scoped, tag = 'internal scratch']
  %s0 = inlined_call_operand.vmem [shape: f32[2,8,222], index: 0, kind: input, shape index: {}]
  %s1 = inlined_call_operand.vmem [shape: f32[3,3,8,8], index: 1, kind: input, shape index: {}]
  %s2 = inlined_call_operand.vmem [shape: f32[8,1], index: 2, kind: input, shape index: {}]
  %s3 = inlined_call_operand.vmem [shape: f32[2,8,188], index: 3, kind: output, shape index: {}]
  %s4 = sld [smem:[#allocation0]]
  $region22: #{bottom_block_forward.5} parent=0
    _
  %s6 = ssub.s32 1, %s4
  %s7 = scalar_select 0, %s6, %s4
  // Predicated region
  $region2: #{bottom_block_forward.5} parent=0 // pred_check
    _
  $region3: #{bottom_block_forward.5} parent=0 // pred_check_branch
    %9 = sbr.rel (0) target = $region5
  $region4: #{bottom_block_forward.5} parent=0 // pred_region
    _
  $region5: #{bottom_block_forward.5} parent=0 // pred_fallthru
    _
  // Predicated region
  $region6: #{bottom_block_forward.5} parent=0 // pred_check
    _
  $region7: #{bottom_block_forward.5} parent=0 // pred_check_branch
    %11 = sbr.rel (0) target = $region9
  $region8: #{bottom_block_forward.5} parent=0 // pred_region
    _
  $region9: #{bottom_block_forward.5} parent=0 // pred_fallthru
    _
  // Predicated region
  $region10: #{bottom_block_forward.5} parent=0 // pred_check
    _
  $region11: #{bottom_block_forward.5} parent=0 // pred_check_branch
    %13 = sbr.rel (0) target = $region13
  $region12: #{bottom_block_forward.5} parent=0 // pred_region
    _
  $region13: #{bottom_block_forward.5} parent=0 // pred_fallthru
    _
  %v14 = vld [vmem:[%s2] sm:$0xff]
  %v15 = vld [vmem:[%s0] sm:$0xff]
  %v16 = vld [vmem:[%s0 + $0x8] sm:$0xff]
  %v17 = vld [vmem:[%s1] sm:$0xff]
  %s18 = scalar_lea.vmem %s1, 8
  %v19 = vld [vmem:[%s18] sm:$0xff]
  %22 = vrot.lane.b32.xlu0 %v15, 127
  %v23 = vpop.permute.xlu0 %22
  %24 = vrot.lane.b32.xlu0 %v16, 127
  %v25 = vpop.permute.xlu0 %24
  %vm26 = vcmask 1039360
  %v27 = vsel %vm26, %v23, %v25
  %vm30 = vcmask 64512
  %v32 = vsel %vm30, %v19, 0
  %34 = vmatprep.subr.mxu0 %v25
  %35 = vmatpush1.msra.mxu0 %v27
  %36 = vmatprep.subr.mxu0 0.0
  %37 = vmatpush1.msra.mxu0 0.0
  %38 = vmatprep.subr.mxu0 0.0
  %39 = vmatpush1.msra.mxu0 0.0
  %40 = vmatprep.subr.mxu0 0.0
  %41 = vmatpush1.msra.mxu0 0.0
  %42 = vmatprep.subr.mxu0 0.0
  %43 = vmatpush1.msra.mxu0 0.0
  %44 = vmatprep.subr.mxu0 0.0
  %45 = vmatpush1.msra.mxu0 0.0
  %46 = vmatprep.subr.mxu0 0.0
  %47 = vmatpush1.msra.mxu0 0.0
  %48 = vmatprep.subr.mxu0 0.0
  %49 = vmatpush1.msra.mxu0 0.0
  %50 = vmatprep.subr.mxu0 0.0
  %51 = vmatpush1.msra.mxu0 0.0
  %52 = vmatprep.subr.mxu0 0.0
  %53 = vmatpush1.msra.mxu0 0.0
  %54 = vmatprep.subr.mxu0 0.0
  %55 = vmatpush1.msra.mxu0 0.0
  %56 = vmatprep.subr.mxu0 0.0
  %57 = vmatpush1.msra.mxu0 0.0
  %58 = vmatprep.subr.mxu0 0.0
  %59 = vmatpush1.msra.mxu0 0.0
  %60 = vmatprep.subr.mxu0 0.0
  %61 = vmatpush1.msra.mxu0 0.0
  %62 = vmatprep.subr.mxu0 0.0
  %63 = vmatpush1.msra.mxu0 0.0
  %64 = vmatprep.subr.mxu0 0.0
  %65 = vmatpush1.msra.mxu0 0.0
  %66 = vmatprep.subr.mxu0 0.0
  %67 = vmatpush1.msra.mxu0 0.0
  %68 = vmatprep.subr.mxu0 0.0
  %69 = vmatpush1.msra.mxu0 0.0
  %70 = vmatprep.subr.mxu0 0.0
  %71 = vmatpush1.msra.mxu0 0.0
  %72 = vmatprep.subr.mxu0 0.0
  %73 = vmatpush1.msra.mxu0 0.0
  %74 = vmatprep.subr.mxu0 0.0
  %75 = vmatpush1.msra.mxu0 0.0
  %76 = vmatprep.subr.mxu0 0.0
  %77 = vmatpush1.msra.mxu0 0.0
  %78 = vmatprep.subr.mxu0 0.0
  %79 = vmatpush1.msra.mxu0 0.0
  %80 = vmatprep.subr.mxu0 0.0
  %81 = vmatpush1.msra.mxu0 0.0
  %82 = vmatprep.subr.mxu0 0.0
  %83 = vmatpush1.msra.mxu0 0.0
  %84 = vmatprep.subr.mxu0 0.0
  %85 = vmatpush1.msra.mxu0 0.0
  %86 = vmatprep.subr.mxu0 0.0
  %87 = vmatpush1.msra.mxu0 0.0
  %88 = vmatprep.subr.mxu0 0.0
  %89 = vmatpush1.msra.mxu0 0.0
  %90 = vmatprep.subr.mxu0 0.0
  %91 = vmatpush1.msra.mxu0 0.0
  %92 = vmatprep.subr.mxu0 0.0
  %93 = vmatpush1.msra.mxu0 0.0
  %94 = vmatprep.subr.mxu0 0.0
  %95 = vmatpush1.msra.mxu0 0.0
  %96 = vmatprep.subr.mxu0 0.0
  %97 = vmatpush1.msra.mxu0 0.0
  %98 = vmatprep.mubr.f32.mxu0 0.0
  %99 = vmatmul.mubr.f32.gmra.mrb[0].mxu0 %v32
  %v100 = vpop.f32.mrb[0].mxu0
  %v101 = vadd.f32 0.0, %v100
  %v102 = vpop.f32.mrb[0].mxu0
  %v103 = vadd.f32 0.0, %v102
  %104 = vdwg.mxu0
  %v106 = vsel %vm30, %v17, 0
  %108 = vmatprep.subr.mxu0 %v16
  %109 = vmatpush1.msra.mxu0 %v15
  %110 = vmatprep.subr.mxu0 0.0
  %111 = vmatpush1.msra.mxu0 0.0
  %112 = vmatprep.subr.mxu0 0.0
  %113 = vmatpush1.msra.mxu0 0.0
  %114 = vmatprep.subr.mxu0 0.0
  %115 = vmatpush1.msra.mxu0 0.0
  %116 = vmatprep.subr.mxu0 0.0
  %117 = vmatpush1.msra.mxu0 0.0
  %118 = vmatprep.subr.mxu0 0.0
  %119 = vmatpush1.msra.mxu0 0.0
  %120 = vmatprep.subr.mxu0 0.0
  %121 = vmatpush1.msra.mxu0 0.0
  %122 = vmatprep.subr.mxu0 0.0
  %123 = vmatpush1.msra.mxu0 0.0
  %124 = vmatprep.subr.mxu0 0.0
  %125 = vmatpush1.msra.mxu0 0.0
  %126 = vmatprep.subr.mxu0 0.0
  %127 = vmatpush1.msra.mxu0 0.0
  %128 = vmatprep.subr.mxu0 0.0
  %129 = vmatpush1.msra.mxu0 0.0
  %130 = vmatprep.subr.mxu0 0.0
  %131 = vmatpush1.msra.mxu0 0.0
  %132 = vmatprep.subr.mxu0 0.0
  %133 = vmatpush1.msra.mxu0 0.0
  %134 = vmatprep.subr.mxu0 0.0
  %135 = vmatpush1.msra.mxu0 0.0
  %136 = vmatprep.subr.mxu0 0.0
  %137 = vmatpush1.msra.mxu0 0.0
  %138 = vmatprep.subr.mxu0 0.0
  %139 = vmatpush1.msra.mxu0 0.0
  %140 = vmatprep.subr.mxu0 0.0
  %141 = vmatpush1.msra.mxu0 0.0
  %142 = vmatprep.subr.mxu0 0.0
  %143 = vmatpush1.msra.mxu0 0.0
  %144 = vmatprep.subr.mxu0 0.0
  %145 = vmatpush1.msra.mxu0 0.0
  %146 = vmatprep.subr.mxu0 0.0
  %147 = vmatpush1.msra.mxu0 0.0
  %148 = vmatprep.subr.mxu0 0.0
  %149 = vmatpush1.msra.mxu0 0.0
  %150 = vmatprep.subr.mxu0 0.0
  %151 = vmatpush1.msra.mxu0 0.0
  %152 = vmatprep.subr.mxu0 0.0
  %153 = vmatpush1.msra.mxu0 0.0
  %154 = vmatprep.subr.mxu0 0.0
  %155 = vmatpush1.msra.mxu0 0.0
  %156 = vmatprep.subr.mxu0 0.0
  %157 = vmatpush1.msra.mxu0 0.0
  %158 = vmatprep.subr.mxu0 0.0
  %159 = vmatpush1.msra.mxu0 0.0
  %160 = vmatprep.subr.mxu0 0.0
  %161 = vmatpush1.msra.mxu0 0.0
  %162 = vmatprep.subr.mxu0 0.0
  %163 = vmatpush1.msra.mxu0 0.0
  %164 = vmatprep.subr.mxu0 0.0
  %165 = vmatpush1.msra.mxu0 0.0
  %166 = vmatprep.subr.mxu0 0.0
  %167 = vmatpush1.msra.mxu0 0.0
  %168 = vmatprep.subr.mxu0 0.0
  %169 = vmatpush1.msra.mxu0 0.0
  %170 = vmatprep.subr.mxu0 0.0
  %171 = vmatpush1.msra.mxu0 0.0
  %172 = vmatprep.mubr.f32.mxu0 0.0
  %173 = vmatmul.mubr.f32.gmra.mrb[0].mxu0 %v106
  %v174 = vpop.f32.mrb[0].mxu0
  %v175 = vadd.f32 %v101, %v174
  %v176 = vpop.f32.mrb[0].mxu0
  %v177 = vadd.f32 %v103, %v176
  %178 = vdwg.mxu0
  %s179 = scalar_lea.vmem %s1, 16
  %v180 = vld [vmem:[%s179] sm:$0xff]
  %181 = vrot.lane.b32.xlu0 %v15, 126
  %v182 = vpop.permute.xlu0 %181
  %183 = vrot.lane.b32.xlu0 %v16, 126
  %v184 = vpop.permute.xlu0 %183
  %vm185 = vcmask 1031168
  %v186 = vsel %vm185, %v182, %v184
  %v190 = vsel %vm30, %v180, 0
  %192 = vmatprep.subr.mxu0 %v184
  %193 = vmatpush1.msra.mxu0 %v186
  %194 = vmatprep.subr.mxu0 0.0
  %195 = vmatpush1.msra.mxu0 0.0
  %196 = vmatprep.subr.mxu0 0.0
  %197 = vmatpush1.msra.mxu0 0.0
  %198 = vmatprep.subr.mxu0 0.0
  %199 = vmatpush1.msra.mxu0 0.0
  %200 = vmatprep.subr.mxu0 0.0
  %201 = vmatpush1.msra.mxu0 0.0
  %202 = vmatprep.subr.mxu0 0.0
  %203 = vmatpush1.msra.mxu0 0.0
  %204 = vmatprep.subr.mxu0 0.0
  %205 = vmatpush1.msra.mxu0 0.0
  %206 = vmatprep.subr.mxu0 0.0
  %207 = vmatpush1.msra.mxu0 0.0
  %208 = vmatprep.subr.mxu0 0.0
  %209 = vmatpush1.msra.mxu0 0.0
  %210 = vmatprep.subr.mxu0 0.0
  %211 = vmatpush1.msra.mxu0 0.0
  %212 = vmatprep.subr.mxu0 0.0
  %213 = vmatpush1.msra.mxu0 0.0
  %214 = vmatprep.subr.mxu0 0.0
  %215 = vmatpush1.msra.mxu0 0.0
  %216 = vmatprep.subr.mxu0 0.0
  %217 = vmatpush1.msra.mxu0 0.0
  %218 = vmatprep.subr.mxu0 0.0
  %219 = vmatpush1.msra.mxu0 0.0
  %220 = vmatprep.subr.mxu0 0.0
  %221 = vmatpush1.msra.mxu0 0.0
  %222 = vmatprep.subr.mxu0 0.0
  %223 = vmatpush1.msra.mxu0 0.0
  %224 = vmatprep.subr.mxu0 0.0
  %225 = vmatpush1.msra.mxu0 0.0
  %226 = vmatprep.subr.mxu0 0.0
  %227 = vmatpush1.msra.mxu0 0.0
  %228 = vmatprep.subr.mxu0 0.0
  %229 = vmatpush1.msra.mxu0 0.0
  %230 = vmatprep.subr.mxu0 0.0
  %231 = vmatpush1.msra.mxu0 0.0
  %232 = vmatprep.subr.mxu0 0.0
  %233 = vmatpush1.msra.mxu0 0.0
  %234 = vmatprep.subr.mxu0 0.0
  %235 = vmatpush1.msra.mxu0 0.0
  %236 = vmatprep.subr.mxu0 0.0
  %237 = vmatpush1.msra.mxu0 0.0
  %238 = vmatprep.subr.mxu0 0.0
  %239 = vmatpush1.msra.mxu0 0.0
  %240 = vmatprep.subr.mxu0 0.0
  %241 = vmatpush1.msra.mxu0 0.0
  %242 = vmatprep.subr.mxu0 0.0
  %243 = vmatpush1.msra.mxu0 0.0
  %244 = vmatprep.subr.mxu0 0.0
  %245 = vmatpush1.msra.mxu0 0.0
  %246 = vmatprep.subr.mxu0 0.0
  %247 = vmatpush1.msra.mxu0 0.0
  %248 = vmatprep.subr.mxu0 0.0
  %249 = vmatpush1.msra.mxu0 0.0
  %250 = vmatprep.subr.mxu0 0.0
  %251 = vmatpush1.msra.mxu0 0.0
  %252 = vmatprep.subr.mxu0 0.0
  %253 = vmatpush1.msra.mxu0 0.0
  %254 = vmatprep.subr.mxu0 0.0
  %255 = vmatpush1.msra.mxu0 0.0
  %256 = vmatprep.mubr.f32.mxu0 0.0
  %257 = vmatmul.mubr.f32.gmra.mrb[0].mxu0 %v190
  %v258 = vpop.f32.mrb[0].mxu0
  %v259 = vadd.f32 0.0, %v258
  %v260 = vpop.f32.mrb[0].mxu0
  %v261 = vadd.f32 0.0, %v260
  %262 = vdwg.mxu0
  %v263 = vadd.f32 %v175, %v259
  %v264 = vadd.f32 %v177, %v261
  %s265 = scalar_lea.vmem %s1, 24
  %v266 = vld [vmem:[%s265] sm:$0xff]
  %267 = vrot.lane.b32.xlu0 %v15, 112
  %v268 = vpop.permute.xlu0 %267
  %269 = vrot.lane.b32.xlu0 %v16, 112
  %v270 = vpop.permute.xlu0 %269
  %vm271 = vcmask 916480
  %v272 = vsel %vm271, %v268, %v270
  %v276 = vsel %vm30, %v266, 0
  %278 = vmatprep.subr.mxu0 %v270
  %279 = vmatpush1.msra.mxu0 %v272
  %280 = vmatprep.subr.mxu0 0.0
  %281 = vmatpush1.msra.mxu0 0.0
  %282 = vmatprep.subr.mxu0 0.0
  %283 = vmatpush1.msra.mxu0 0.0
  %284 = vmatprep.subr.mxu0 0.0
  %285 = vmatpush1.msra.mxu0 0.0
  %286 = vmatprep.subr.mxu0 0.0
  %287 = vmatpush1.msra.mxu0 0.0
  %288 = vmatprep.subr.mxu0 0.0
  %289 = vmatpush1.msra.mxu0 0.0
  %290 = vmatprep.subr.mxu0 0.0
  %291 = vmatpush1.msra.mxu0 0.0
  %292 = vmatprep.subr.mxu0 0.0
  %293 = vmatpush1.msra.mxu0 0.0
  %294 = vmatprep.subr.mxu0 0.0
  %295 = vmatpush1.msra.mxu0 0.0
  %296 = vmatprep.subr.mxu0 0.0
  %297 = vmatpush1.msra.mxu0 0.0
  %298 = vmatprep.subr.mxu0 0.0
  %299 = vmatpush1.msra.mxu0 0.0
  %300 = vmatprep.subr.mxu0 0.0
  %301 = vmatpush1.msra.mxu0 0.0
  %302 = vmatprep.subr.mxu0 0.0
  %303 = vmatpush1.msra.mxu0 0.0
  %304 = vmatprep.subr.mxu0 0.0
  %305 = vmatpush1.msra.mxu0 0.0
  %306 = vmatprep.subr.mxu0 0.0
  %307 = vmatpush1.msra.mxu0 0.0
  %308 = vmatprep.subr.mxu0 0.0
  %309 = vmatpush1.msra.mxu0 0.0
  %310 = vmatprep.subr.mxu0 0.0
  %311 = vmatpush1.msra.mxu0 0.0
  %312 = vmatprep.subr.mxu0 0.0
  %313 = vmatpush1.msra.mxu0 0.0
  %314 = vmatprep.subr.mxu0 0.0
  %315 = vmatpush1.msra.mxu0 0.0
  %316 = vmatprep.subr.mxu0 0.0
  %317 = vmatpush1.msra.mxu0 0.0
  %318 = vmatprep.subr.mxu0 0.0
  %319 = vmatpush1.msra.mxu0 0.0
  %320 = vmatprep.subr.mxu0 0.0
  %321 = vmatpush1.msra.mxu0 0.0
  %322 = vmatprep.subr.mxu0 0.0
  %323 = vmatpush1.msra.mxu0 0.0
  %324 = vmatprep.subr.mxu0 0.0
  %325 = vmatpush1.msra.mxu0 0.0
  %326 = vmatprep.subr.mxu0 0.0
  %327 = vmatpush1.msra.mxu0 0.0
  %328 = vmatprep.subr.mxu0 0.0
  %329 = vmatpush1.msra.mxu0 0.0
  %330 = vmatprep.subr.mxu0 0.0
  %331 = vmatpush1.msra.mxu0 0.0
  %332 = vmatprep.subr.mxu0 0.0
  %333 = vmatpush1.msra.mxu0 0.0
  %334 = vmatprep.subr.mxu0 0.0
  %335 = vmatpush1.msra.mxu0 0.0
  %336 = vmatprep.subr.mxu0 0.0
  %337 = vmatpush1.msra.mxu0 0.0
  %338 = vmatprep.subr.mxu0 0.0
  %339 = vmatpush1.msra.mxu0 0.0
  %340 = vmatprep.subr.mxu0 0.0
  %341 = vmatpush1.msra.mxu0 0.0
  %342 = vmatprep.mubr.f32.mxu0 0.0
  %343 = vmatmul.mubr.f32.gmra.mrb[0].mxu0 %v276
  %v344 = vpop.f32.mrb[0].mxu0
  %v345 = vadd.f32 0.0, %v344
  %v346 = vpop.f32.mrb[0].mxu0
  %v347 = vadd.f32 0.0, %v346
  %348 = vdwg.mxu0
  %v349 = vadd.f32 %v263, %v345
  %v350 = vadd.f32 %v264, %v347
  %s351 = scalar_lea.vmem %s1, 32
  %v352 = vld [vmem:[%s351] sm:$0xff]
  %353 = vrot.lane.b32.xlu0 %v15, 111
  %v354 = vpop.permute.xlu0 %353
  %355 = vrot.lane.b32.xlu0 %v16, 111
  %v356 = vpop.permute.xlu0 %355
  %vm357 = vcmask 908288
  %v358 = vsel %vm357, %v354, %v356
  %v362 = vsel %vm30, %v352, 0
  %364 = vmatprep.subr.mxu0 %v356
  %365 = vmatpush1.msra.mxu0 %v358
  %366 = vmatprep.subr.mxu0 0.0
  %367 = vmatpush1.msra.mxu0 0.0
  %368 = vmatprep.subr.mxu0 0.0
  %369 = vmatpush1.msra.mxu0 0.0
  %370 = vmatprep.subr.mxu0 0.0
  %371 = vmatpush1.msra.mxu0 0.0
  %372 = vmatprep.subr.mxu0 0.0
  %373 = vmatpush1.msra.mxu0 0.0
  %374 = vmatprep.subr.mxu0 0.0
  %375 = vmatpush1.msra.mxu0 0.0
  %376 = vmatprep.subr.mxu0 0.0
  %377 = vmatpush1.msra.mxu0 0.0
  %378 = vmatprep.subr.mxu0 0.0
  %379 = vmatpush1.msra.mxu0 0.0
  %380 = vmatprep.subr.mxu0 0.0
  %381 = vmatpush1.msra.mxu0 0.0
  %382 = vmatprep.subr.mxu0 0.0
  %383 = vmatpush1.msra.mxu0 0.0
  %384 = vmatprep.subr.mxu0 0.0
  %385 = vmatpush1.msra.mxu0 0.0
  %386 = vmatprep.subr.mxu0 0.0
  %387 = vmatpush1.msra.mxu0 0.0
  %388 = vmatprep.subr.mxu0 0.0
  %389 = vmatpush1.msra.mxu0 0.0
  %390 = vmatprep.subr.mxu0 0.0
  %391 = vmatpush1.msra.mxu0 0.0
  %392 = vmatprep.subr.mxu0 0.0
  %393 = vmatpush1.msra.mxu0 0.0
  %394 = vmatprep.subr.mxu0 0.0
  %395 = vmatpush1.msra.mxu0 0.0
  %396 = vmatprep.subr.mxu0 0.0
  %397 = vmatpush1.msra.mxu0 0.0
  %398 = vmatprep.subr.mxu0 0.0
  %399 = vmatpush1.msra.mxu0 0.0
  %400 = vmatprep.subr.mxu0 0.0
  %401 = vmatpush1.msra.mxu0 0.0
  %402 = vmatprep.subr.mxu0 0.0
  %403 = vmatpush1.msra.mxu0 0.0
  %404 = vmatprep.subr.mxu0 0.0
  %405 = vmatpush1.msra.mxu0 0.0
  %406 = vmatprep.subr.mxu0 0.0
  %407 = vmatpush1.msra.mxu0 0.0
  %408 = vmatprep.subr.mxu0 0.0
  %409 = vmatpush1.msra.mxu0 0.0
  %410 = vmatprep.subr.mxu0 0.0
  %411 = vmatpush1.msra.mxu0 0.0
  %412 = vmatprep.subr.mxu0 0.0
  %413 = vmatpush1.msra.mxu0 0.0
  %414 = vmatprep.subr.mxu0 0.0
  %415 = vmatpush1.msra.mxu0 0.0
  %416 = vmatprep.subr.mxu0 0.0
  %417 = vmatpush1.msra.mxu0 0.0
  %418 = vmatprep.subr.mxu0 0.0
  %419 = vmatpush1.msra.mxu0 0.0
  %420 = vmatprep.subr.mxu0 0.0
  %421 = vmatpush1.msra.mxu0 0.0
  %422 = vmatprep.subr.mxu0 0.0
  %423 = vmatpush1.msra.mxu0 0.0
  %424 = vmatprep.subr.mxu0 0.0
  %425 = vmatpush1.msra.mxu0 0.0
  %426 = vmatprep.subr.mxu0 0.0
  %427 = vmatpush1.msra.mxu0 0.0
  %428 = vmatprep.mubr.f32.mxu0 0.0
  %429 = vmatmul.mubr.f32.gmra.mrb[0].mxu0 %v362
  %v430 = vpop.f32.mrb[0].mxu0
  %v431 = vadd.f32 0.0, %v430
  %v432 = vpop.f32.mrb[0].mxu0
  %v433 = vadd.f32 0.0, %v432
  %434 = vdwg.mxu0
  %v435 = vadd.f32 %v349, %v431
  %v436 = vadd.f32 %v350, %v433
  %s437 = scalar_lea.vmem %s1, 40
  %v438 = vld [vmem:[%s437] sm:$0xff]
  %439 = vrot.lane.b32.xlu0 %v15, 110
  %v440 = vpop.permute.xlu0 %439
  %441 = vrot.lane.b32.xlu0 %v16, 110
  %v442 = vpop.permute.xlu0 %441
  %vm443 = vcmask 900096
  %v444 = vsel %vm443, %v440, %v442
  %v448 = vsel %vm30, %v438, 0
  %450 = vmatprep.subr.mxu0 %v442
  %451 = vmatpush1.msra.mxu0 %v444
  %452 = vmatprep.subr.mxu0 0.0
  %453 = vmatpush1.msra.mxu0 0.0
  %454 = vmatprep.subr.mxu0 0.0
  %455 = vmatpush1.msra.mxu0 0.0
  %456 = vmatprep.subr.mxu0 0.0
  %457 = vmatpush1.msra.mxu0 0.0
  %458 = vmatprep.subr.mxu0 0.0
  %459 = vmatpush1.msra.mxu0 0.0
  %460 = vmatprep.subr.mxu0 0.0
  %461 = vmatpush1.msra.mxu0 0.0
  %462 = vmatprep.subr.mxu0 0.0
  %463 = vmatpush1.msra.mxu0 0.0
  %464 = vmatprep.subr.mxu0 0.0
  %465 = vmatpush1.msra.mxu0 0.0
  %466 = vmatprep.subr.mxu0 0.0
  %467 = vmatpush1.msra.mxu0 0.0
  %468 = vmatprep.subr.mxu0 0.0
  %469 = vmatpush1.msra.mxu0 0.0
  %470 = vmatprep.subr.mxu0 0.0
  %471 = vmatpush1.msra.mxu0 0.0
  %472 = vmatprep.subr.mxu0 0.0
  %473 = vmatpush1.msra.mxu0 0.0
  %474 = vmatprep.subr.mxu0 0.0
  %475 = vmatpush1.msra.mxu0 0.0
  %476 = vmatprep.subr.mxu0 0.0
  %477 = vmatpush1.msra.mxu0 0.0
  %478 = vmatprep.subr.mxu0 0.0
  %479 = vmatpush1.msra.mxu0 0.0
  %480 = vmatprep.subr.mxu0 0.0
  %481 = vmatpush1.msra.mxu0 0.0
  %482 = vmatprep.subr.mxu0 0.0
  %483 = vmatpush1.msra.mxu0 0.0
  %484 = vmatprep.subr.mxu0 0.0
  %485 = vmatpush1.msra.mxu0 0.0
  %486 = vmatprep.subr.mxu0 0.0
  %487 = vmatpush1.msra.mxu0 0.0
  %488 = vmatprep.subr.mxu0 0.0
  %489 = vmatpush1.msra.mxu0 0.0
  %490 = vmatprep.subr.mxu0 0.0
  %491 = vmatpush1.msra.mxu0 0.0
  %492 = vmatprep.subr.mxu0 0.0
  %493 = vmatpush1.msra.mxu0 0.0
  %494 = vmatprep.subr.mxu0 0.0
  %495 = vmatpush1.msra.mxu0 0.0
  %496 = vmatprep.subr.mxu0 0.0
  %497 = vmatpush1.msra.mxu0 0.0
  %498 = vmatprep.subr.mxu0 0.0
  %499 = vmatpush1.msra.mxu0 0.0
  %500 = vmatprep.subr.mxu0 0.0
  %501 = vmatpush1.msra.mxu0 0.0
  %502 = vmatprep.subr.mxu0 0.0
  %503 = vmatpush1.msra.mxu0 0.0
  %504 = vmatprep.subr.mxu0 0.0
  %505 = vmatpush1.msra.mxu0 0.0
  %506 = vmatprep.subr.mxu0 0.0
  %507 = vmatpush1.msra.mxu0 0.0
  %508 = vmatprep.subr.mxu0 0.0
  %509 = vmatpush1.msra.mxu0 0.0
  %510 = vmatprep.subr.mxu0 0.0
  %511 = vmatpush1.msra.mxu0 0.0
  %512 = vmatprep.subr.mxu0 0.0
  %513 = vmatpush1.msra.mxu0 0.0
  %514 = vmatprep.mubr.f32.mxu0 0.0
  %515 = vmatmul.mubr.f32.gmra.mrb[0].mxu0 %v448
  %v516 = vpop.f32.mrb[0].mxu0
  %v517 = vadd.f32 0.0, %v516
  %v518 = vpop.f32.mrb[0].mxu0
  %v519 = vadd.f32 0.0, %v518
  %520 = vdwg.mxu0
  %v521 = vadd.f32 %v435, %v517
  %v522 = vadd.f32 %v436, %v519
  %s523 = scalar_lea.vmem %s1, 48
  %v524 = vld [vmem:[%s523] sm:$0xff]
  %525 = vrot.lane.b32.xlu0 %v15, 96
  %v526 = vpop.permute.xlu0 %525
  %527 = vrot.lane.b32.xlu0 %v16, 96
  %v528 = vpop.permute.xlu0 %527
  %vm529 = vcmask 785408
  %v530 = vsel %vm529, %v526, %v528
  %v534 = vsel %vm30, %v524, 0
  %536 = vmatprep.subr.mxu0 %v528
  %537 = vmatpush1.msra.mxu0 %v530
  %538 = vmatprep.subr.mxu0 0.0
  %539 = vmatpush1.msra.mxu0 0.0
  %540 = vmatprep.subr.mxu0 0.0
  %541 = vmatpush1.msra.mxu0 0.0
  %542 = vmatprep.subr.mxu0 0.0
  %543 = vmatpush1.msra.mxu0 0.0
  %544 = vmatprep.subr.mxu0 0.0
  %545 = vmatpush1.msra.mxu0 0.0
  %546 = vmatprep.subr.mxu0 0.0
  %547 = vmatpush1.msra.mxu0 0.0
  %548 = vmatprep.subr.mxu0 0.0
  %549 = vmatpush1.msra.mxu0 0.0
  %550 = vmatprep.subr.mxu0 0.0
  %551 = vmatpush1.msra.mxu0 0.0
  %552 = vmatprep.subr.mxu0 0.0
  %553 = vmatpush1.msra.mxu0 0.0
  %554 = vmatprep.subr.mxu0 0.0
  %555 = vmatpush1.msra.mxu0 0.0
  %556 = vmatprep.subr.mxu0 0.0
  %557 = vmatpush1.msra.mxu0 0.0
  %558 = vmatprep.subr.mxu0 0.0
  %559 = vmatpush1.msra.mxu0 0.0
  %560 = vmatprep.subr.mxu0 0.0
  %561 = vmatpush1.msra.mxu0 0.0
  %562 = vmatprep.subr.mxu0 0.0
  %563 = vmatpush1.msra.mxu0 0.0
  %564 = vmatprep.subr.mxu0 0.0
  %565 = vmatpush1.msra.mxu0 0.0
  %566 = vmatprep.subr.mxu0 0.0
  %567 = vmatpush1.msra.mxu0 0.0
  %568 = vmatprep.subr.mxu0 0.0
  %569 = vmatpush1.msra.mxu0 0.0
  %570 = vmatprep.subr.mxu0 0.0
  %571 = vmatpush1.msra.mxu0 0.0
  %572 = vmatprep.subr.mxu0 0.0
  %573 = vmatpush1.msra.mxu0 0.0
  %574 = vmatprep.subr.mxu0 0.0
  %575 = vmatpush1.msra.mxu0 0.0
  %576 = vmatprep.subr.mxu0 0.0
  %577 = vmatpush1.msra.mxu0 0.0
  %578 = vmatprep.subr.mxu0 0.0
  %579 = vmatpush1.msra.mxu0 0.0
  %580 = vmatprep.subr.mxu0 0.0
  %581 = vmatpush1.msra.mxu0 0.0
  %582 = vmatprep.subr.mxu0 0.0
  %583 = vmatpush1.msra.mxu0 0.0
  %584 = vmatprep.subr.mxu0 0.0
  %585 = vmatpush1.msra.mxu0 0.0
  %586 = vmatprep.subr.mxu0 0.0
  %587 = vmatpush1.msra.mxu0 0.0
  %588 = vmatprep.subr.mxu0 0.0
  %589 = vmatpush1.msra.mxu0 0.0
  %590 = vmatprep.subr.mxu0 0.0
  %591 = vmatpush1.msra.mxu0 0.0
  %592 = vmatprep.subr.mxu0 0.0
  %593 = vmatpush1.msra.mxu0 0.0
  %594 = vmatprep.subr.mxu0 0.0
  %595 = vmatpush1.msra.mxu0 0.0
  %596 = vmatprep.subr.mxu0 0.0
  %597 = vmatpush1.msra.mxu0 0.0
  %598 = vmatprep.subr.mxu0 0.0
  %599 = vmatpush1.msra.mxu0 0.0
  %600 = vmatprep.mubr.f32.mxu0 0.0
  %601 = vmatmul.mubr.f32.gmra.mrb[0].mxu0 %v534
  %v602 = vpop.f32.mrb[0].mxu0
  %v603 = vadd.f32 0.0, %v602
  %v604 = vpop.f32.mrb[0].mxu0
  %v605 = vadd.f32 0.0, %v604
  %606 = vdwg.mxu0
  %v607 = vadd.f32 %v521, %v603
  %v608 = vadd.f32 %v522, %v605
  %s609 = scalar_lea.vmem %s1, 56
  %v610 = vld [vmem:[%s609] sm:$0xff]
  %611 = vrot.lane.b32.xlu0 %v15, 95
  %v612 = vpop.permute.xlu0 %611
  %613 = vrot.lane.b32.xlu0 %v16, 95
  %v614 = vpop.permute.xlu0 %613
  %vm615 = vcmask 777216
  %v616 = vsel %vm615, %v612, %v614
  %v620 = vsel %vm30, %v610, 0
  %622 = vmatprep.subr.mxu0 %v614
  %623 = vmatpush1.msra.mxu0 %v616
  %624 = vmatprep.subr.mxu0 0.0
  %625 = vmatpush1.msra.mxu0 0.0
  %626 = vmatprep.subr.mxu0 0.0
  %627 = vmatpush1.msra.mxu0 0.0
  %628 = vmatprep.subr.mxu0 0.0
  %629 = vmatpush1.msra.mxu0 0.0
  %630 = vmatprep.subr.mxu0 0.0
  %631 = vmatpush1.msra.mxu0 0.0
  %632 = vmatprep.subr.mxu0 0.0
  %633 = vmatpush1.msra.mxu0 0.0
  %634 = vmatprep.subr.mxu0 0.0
  %635 = vmatpush1.msra.mxu0 0.0
  %636 = vmatprep.subr.mxu0 0.0
  %637 = vmatpush1.msra.mxu0 0.0
  %638 = vmatprep.subr.mxu0 0.0
  %639 = vmatpush1.msra.mxu0 0.0
  %640 = vmatprep.subr.mxu0 0.0
  %641 = vmatpush1.msra.mxu0 0.0
  %642 = vmatprep.subr.mxu0 0.0
  %643 = vmatpush1.msra.mxu0 0.0
  %644 = vmatprep.subr.mxu0 0.0
  %645 = vmatpush1.msra.mxu0 0.0
  %646 = vmatprep.subr.mxu0 0.0
  %647 = vmatpush1.msra.mxu0 0.0
  %648 = vmatprep.subr.mxu0 0.0
  %649 = vmatpush1.msra.mxu0 0.0
  %650 = vmatprep.subr.mxu0 0.0
  %651 = vmatpush1.msra.mxu0 0.0
  %652 = vmatprep.subr.mxu0 0.0
  %653 = vmatpush1.msra.mxu0 0.0
  %654 = vmatprep.subr.mxu0 0.0
  %655 = vmatpush1.msra.mxu0 0.0
  %656 = vmatprep.subr.mxu0 0.0
  %657 = vmatpush1.msra.mxu0 0.0
  %658 = vmatprep.subr.mxu0 0.0
  %659 = vmatpush1.msra.mxu0 0.0
  %660 = vmatprep.subr.mxu0 0.0
  %661 = vmatpush1.msra.mxu0 0.0
  %662 = vmatprep.subr.mxu0 0.0
  %663 = vmatpush1.msra.mxu0 0.0
  %664 = vmatprep.subr.mxu0 0.0
  %665 = vmatpush1.msra.mxu0 0.0
  %666 = vmatprep.subr.mxu0 0.0
  %667 = vmatpush1.msra.mxu0 0.0
  %668 = vmatprep.subr.mxu0 0.0
  %669 = vmatpush1.msra.mxu0 0.0
  %670 = vmatprep.subr.mxu0 0.0
  %671 = vmatpush1.msra.mxu0 0.0
  %672 = vmatprep.subr.mxu0 0.0
  %673 = vmatpush1.msra.mxu0 0.0
  %674 = vmatprep.subr.mxu0 0.0
  %675 = vmatpush1.msra.mxu0 0.0
  %676 = vmatprep.subr.mxu0 0.0
  %677 = vmatpush1.msra.mxu0 0.0
  %678 = vmatprep.subr.mxu0 0.0
  %679 = vmatpush1.msra.mxu0 0.0
  %680 = vmatprep.subr.mxu0 0.0
  %681 = vmatpush1.msra.mxu0 0.0
  %682 = vmatprep.subr.mxu0 0.0
  %683 = vmatpush1.msra.mxu0 0.0
  %684 = vmatprep.subr.mxu0 0.0
  %685 = vmatpush1.msra.mxu0 0.0
  %686 = vmatprep.mubr.f32.mxu0 0.0
  %687 = vmatmul.mubr.f32.gmra.mrb[0].mxu0 %v620
  %v688 = vpop.f32.mrb[0].mxu0
  %v689 = vadd.f32 0.0, %v688
  %v690 = vpop.f32.mrb[0].mxu0
  %v691 = vadd.f32 0.0, %v690
  %692 = vdwg.mxu0
  %v693 = vadd.f32 %v607, %v689
  %v694 = vadd.f32 %v608, %v691
  %s695 = scalar_lea.vmem %s1, 64
  %v696 = vld [vmem:[%s695] sm:$0xff]
  %697 = vrot.lane.b32.xlu0 %v15, 94
  %v698 = vpop.permute.xlu0 %697
  %699 = vrot.lane.b32.xlu0 %v16, 94
  %v700 = vpop.permute.xlu0 %699
  %vm701 = vcmask 769024
  %v702 = vsel %vm701, %v698, %v700
  %v706 = vsel %vm30, %v696, 0
  %708 = vmatprep.subr.mxu0 %v700
  %709 = vmatpush1.msra.mxu0 %v702
  %710 = vmatprep.subr.mxu0 0.0
  %711 = vmatpush1.msra.mxu0 0.0
  %712 = vmatprep.subr.mxu0 0.0
  %713 = vmatpush1.msra.mxu0 0.0
  %714 = vmatprep.subr.mxu0 0.0
  %715 = vmatpush1.msra.mxu0 0.0
  %716 = vmatprep.subr.mxu0 0.0
  %717 = vmatpush1.msra.mxu0 0.0
  %718 = vmatprep.subr.mxu0 0.0
  %719 = vmatpush1.msra.mxu0 0.0
  %720 = vmatprep.subr.mxu0 0.0
  %721 = vmatpush1.msra.mxu0 0.0
  %722 = vmatprep.subr.mxu0 0.0
  %723 = vmatpush1.msra.mxu0 0.0
  %724 = vmatprep.subr.mxu0 0.0
  %725 = vmatpush1.msra.mxu0 0.0
  %726 = vmatprep.subr.mxu0 0.0
  %727 = vmatpush1.msra.mxu0 0.0
  %728 = vmatprep.subr.mxu0 0.0
  %729 = vmatpush1.msra.mxu0 0.0
  %730 = vmatprep.subr.mxu0 0.0
  %731 = vmatpush1.msra.mxu0 0.0
  %732 = vmatprep.subr.mxu0 0.0
  %733 = vmatpush1.msra.mxu0 0.0
  %734 = vmatprep.subr.mxu0 0.0
  %735 = vmatpush1.msra.mxu0 0.0
  %736 = vmatprep.subr.mxu0 0.0
  %737 = vmatpush1.msra.mxu0 0.0
  %738 = vmatprep.subr.mxu0 0.0
  %739 = vmatpush1.msra.mxu0 0.0
  %740 = vmatprep.subr.mxu0 0.0
  %741 = vmatpush1.msra.mxu0 0.0
  %742 = vmatprep.subr.mxu0 0.0
  %743 = vmatpush1.msra.mxu0 0.0
  %744 = vmatprep.subr.mxu0 0.0
  %745 = vmatpush1.msra.mxu0 0.0
  %746 = vmatprep.subr.mxu0 0.0
  %747 = vmatpush1.msra.mxu0 0.0
  %748 = vmatprep.subr.mxu0 0.0
  %749 = vmatpush1.msra.mxu0 0.0
  %750 = vmatprep.subr.mxu0 0.0
  %751 = vmatpush1.msra.mxu0 0.0
  %752 = vmatprep.subr.mxu0 0.0
  %753 = vmatpush1.msra.mxu0 0.0
  %754 = vmatprep.subr.mxu0 0.0
  %755 = vmatpush1.msra.mxu0 0.0
  %756 = vmatprep.subr.mxu0 0.0
  %757 = vmatpush1.msra.mxu0 0.0
  %758 = vmatprep.subr.mxu0 0.0
  %759 = vmatpush1.msra.mxu0 0.0
  %760 = vmatprep.subr.mxu0 0.0
  %761 = vmatpush1.msra.mxu0 0.0
  %762 = vmatprep.subr.mxu0 0.0
  %763 = vmatpush1.msra.mxu0 0.0
  %764 = vmatprep.subr.mxu0 0.0
  %765 = vmatpush1.msra.mxu0 0.0
  %766 = vmatprep.subr.mxu0 0.0
  %767 = vmatpush1.msra.mxu0 0.0
  %768 = vmatprep.subr.mxu0 0.0
  %769 = vmatpush1.msra.mxu0 0.0
  %770 = vmatprep.subr.mxu0 0.0
  %771 = vmatpush1.msra.mxu0 0.0
  %772 = vmatprep.mubr.f32.mxu0 0.0
  %773 = vmatmul.mubr.f32.gmra.mrb[0].mxu0 %v706
  %v774 = vpop.f32.mrb[0].mxu0
  %v775 = vadd.f32 0.0, %v774
  %v776 = vpop.f32.mrb[0].mxu0
  %v777 = vadd.f32 0.0, %v776
  %778 = vdwg.mxu0
  %v779 = vadd.f32 %v693, %v775
  %v780 = vadd.f32 %v694, %v777
  %782 = vset.pattern.permute.xlu0 0
  %783 = vperm.xlu0 %782, %v14
  %v784 = vpop.permute.xlu0 %783
  %v786 = vadd.f32 %v779, %v784
  %v787 = vadd.f32 %v780, %v784
  %788 = vst [vmem:[%s3] sm:$0xff] %v786
  %vm789 = vcmask 490496
  %790 = vst.msk [vmem:[%s3 + $0x8] sm:$0xff] %vm789, %v787
  %s791 = scalar_lea.vmem %s0, 16
  %v792 = vld [vmem:[%s791] sm:$0xff]
  %v793 = vld [vmem:[%s791 + $0x8] sm:$0xff]
  %v794 = vld [vmem:[%s1] sm:$0xff]
  %v795 = vld [vmem:[%s18] sm:$0xff]
  %798 = vrot.lane.b32.xlu0 %v792, 127
  %v799 = vpop.permute.xlu0 %798
  %800 = vrot.lane.b32.xlu0 %v793, 127
  %v801 = vpop.permute.xlu0 %800
  %v802 = vsel %vm26, %v799, %v801
  %v806 = vsel %vm30, %v795, 0
  %808 = vmatprep.subr.mxu0 %v801
  %809 = vmatpush1.msra.mxu0 %v802
  %810 = vmatprep.subr.mxu0 0.0
  %811 = vmatpush1.msra.mxu0 0.0
  %812 = vmatprep.subr.mxu0 0.0
  %813 = vmatpush1.msra.mxu0 0.0
  %814 = vmatprep.subr.mxu0 0.0
  %815 = vmatpush1.msra.mxu0 0.0
  %816 = vmatprep.subr.mxu0 0.0
  %817 = vmatpush1.msra.mxu0 0.0
  %818 = vmatprep.subr.mxu0 0.0
  %819 = vmatpush1.msra.mxu0 0.0
  %820 = vmatprep.subr.mxu0 0.0
  %821 = vmatpush1.msra.mxu0 0.0
  %822 = vmatprep.subr.mxu0 0.0
  %823 = vmatpush1.msra.mxu0 0.0
  %824 = vmatprep.subr.mxu0 0.0
  %825 = vmatpush1.msra.mxu0 0.0
  %826 = vmatprep.subr.mxu0 0.0
  %827 = vmatpush1.msra.mxu0 0.0
  %828 = vmatprep.subr.mxu0 0.0
  %829 = vmatpush1.msra.mxu0 0.0
  %830 = vmatprep.subr.mxu0 0.0
  %831 = vmatpush1.msra.mxu0 0.0
  %832 = vmatprep.subr.mxu0 0.0
  %833 = vmatpush1.msra.mxu0 0.0
  %834 = vmatprep.subr.mxu0 0.0
  %835 = vmatpush1.msra.mxu0 0.0
  %836 = vmatprep.subr.mxu0 0.0
  %837 = vmatpush1.msra.mxu0 0.0
  %838 = vmatprep.subr.mxu0 0.0
  %839 = vmatpush1.msra.mxu0 0.0
  %840 = vmatprep.subr.mxu0 0.0
  %841 = vmatpush1.msra.mxu0 0.0
  %842 = vmatprep.subr.mxu0 0.0
  %843 = vmatpush1.msra.mxu0 0.0
  %844 = vmatprep.subr.mxu0 0.0
  %845 = vmatpush1.msra.mxu0 0.0
  %846 = vmatprep.subr.mxu0 0.0
  %847 = vmatpush1.msra.mxu0 0.0
  %848 = vmatprep.subr.mxu0 0.0
  %849 = vmatpush1.msra.mxu0 0.0
  %850 = vmatprep.subr.mxu0 0.0
  %851 = vmatpush1.msra.mxu0 0.0
  %852 = vmatprep.subr.mxu0 0.0
  %853 = vmatpush1.msra.mxu0 0.0
  %854 = vmatprep.subr.mxu0 0.0
  %855 = vmatpush1.msra.mxu0 0.0
  %856 = vmatprep.subr.mxu0 0.0
  %857 = vmatpush1.msra.mxu0 0.0
  %858 = vmatprep.subr.mxu0 0.0
  %859 = vmatpush1.msra.mxu0 0.0
  %860 = vmatprep.subr.mxu0 0.0
  %861 = vmatpush1.msra.mxu0 0.0
  %862 = vmatprep.subr.mxu0 0.0
  %863 = vmatpush1.msra.mxu0 0.0
  %864 = vmatprep.subr.mxu0 0.0
  %865 = vmatpush1.msra.mxu0 0.0
  %866 = vmatprep.subr.mxu0 0.0
  %867 = vmatpush1.msra.mxu0 0.0
  %868 = vmatprep.subr.mxu0 0.0
  %869 = vmatpush1.msra.mxu0 0.0
  %870 = vmatprep.subr.mxu0 0.0
  %871 = vmatpush1.msra.mxu0 0.0
  %872 = vmatprep.mubr.f32.mxu0 0.0
  %873 = vmatmul.mubr.f32.gmra.mrb[0].mxu0 %v806
  %v874 = vpop.f32.mrb[0].mxu0
  %v875 = vadd.f32 0.0, %v874
  %v876 = vpop.f32.mrb[0].mxu0
  %v877 = vadd.f32 0.0, %v876
  %878 = vdwg.mxu0
  %v880 = vsel %vm30, %v794, 0
  %882 = vmatprep.subr.mxu0 %v793
  %883 = vmatpush1.msra.mxu0 %v792
  %884 = vmatprep.subr.mxu0 0.0
  %885 = vmatpush1.msra.mxu0 0.0
  %886 = vmatprep.subr.mxu0 0.0
  %887 = vmatpush1.msra.mxu0 0.0
  %888 = vmatprep.subr.mxu0 0.0
  %889 = vmatpush1.msra.mxu0 0.0
  %890 = vmatprep.subr.mxu0 0.0
  %891 = vmatpush1.msra.mxu0 0.0
  %892 = vmatprep.subr.mxu0 0.0
  %893 = vmatpush1.msra.mxu0 0.0
  %894 = vmatprep.subr.mxu0 0.0
  %895 = vmatpush1.msra.mxu0 0.0
  %896 = vmatprep.subr.mxu0 0.0
  %897 = vmatpush1.msra.mxu0 0.0
  %898 = vmatprep.subr.mxu0 0.0
  %899 = vmatpush1.msra.mxu0 0.0
  %900 = vmatprep.subr.mxu0 0.0
  %901 = vmatpush1.msra.mxu0 0.0
  %902 = vmatprep.subr.mxu0 0.0
  %903 = vmatpush1.msra.mxu0 0.0
  %904 = vmatprep.subr.mxu0 0.0
  %905 = vmatpush1.msra.mxu0 0.0
  %906 = vmatprep.subr.mxu0 0.0
  %907 = vmatpush1.msra.mxu0 0.0
  %908 = vmatprep.subr.mxu0 0.0
  %909 = vmatpush1.msra.mxu0 0.0
  %910 = vmatprep.subr.mxu0 0.0
  %911 = vmatpush1.msra.mxu0 0.0
  %912 = vmatprep.subr.mxu0 0.0
  %913 = vmatpush1.msra.mxu0 0.0
  %914 = vmatprep.subr.mxu0 0.0
  %915 = vmatpush1.msra.mxu0 0.0
  %916 = vmatprep.subr.mxu0 0.0
  %917 = vmatpush1.msra.mxu0 0.0
  %918 = vmatprep.subr.mxu0 0.0
  %919 = vmatpush1.msra.mxu0 0.0
  %920 = vmatprep.subr.mxu0 0.0
  %921 = vmatpush1.msra.mxu0 0.0
  %922 = vmatprep.subr.mxu0 0.0
  %923 = vmatpush1.msra.mxu0 0.0
  %924 = vmatprep.subr.mxu0 0.0
  %925 = vmatpush1.msra.mxu0 0.0
  %926 = vmatprep.subr.mxu0 0.0
  %927 = vmatpush1.msra.mxu0 0.0
  %928 = vmatprep.subr.mxu0 0.0
  %929 = vmatpush1.msra.mxu0 0.0
  %930 = vmatprep.subr.mxu0 0.0
  %931 = vmatpush1.msra.mxu0 0.0
  %932 = vmatprep.subr.mxu0 0.0
  %933 = vmatpush1.msra.mxu0 0.0
  %934 = vmatprep.subr.mxu0 0.0
  %935 = vmatpush1.msra.mxu0 0.0
  %936 = vmatprep.subr.mxu0 0.0
  %937 = vmatpush1.msra.mxu0 0.0
  %938 = vmatprep.subr.mxu0 0.0
  %939 = vmatpush1.msra.mxu0 0.0
  %940 = vmatprep.subr.mxu0 0.0
  %941 = vmatpush1.msra.mxu0 0.0
  %942 = vmatprep.subr.mxu0 0.0
  %943 = vmatpush1.msra.mxu0 0.0
  %944 = vmatprep.subr.mxu0 0.0
  %945 = vmatpush1.msra.mxu0 0.0
  %946 = vmatprep.mubr.f32.mxu0 0.0
  %947 = vmatmul.mubr.f32.gmra.mrb[0].mxu0 %v880
  %v948 = vpop.f32.mrb[0].mxu0
  %v949 = vadd.f32 %v875, %v948
  %v950 = vpop.f32.mrb[0].mxu0
  %v951 = vadd.f32 %v877, %v950
  %952 = vdwg.mxu0
  %v953 = vld [vmem:[%s179] sm:$0xff]
  %954 = vrot.lane.b32.xlu0 %v792, 126
  %v955 = vpop.permute.xlu0 %954
  %956 = vrot.lane.b32.xlu0 %v793, 126
  %v957 = vpop.permute.xlu0 %956
  %v958 = vsel %vm185, %v955, %v957
  %v962 = vsel %vm30, %v953, 0
  %964 = vmatprep.subr.mxu0 %v957
  %965 = vmatpush1.msra.mxu0 %v958
  %966 = vmatprep.subr.mxu0 0.0
  %967 = vmatpush1.msra.mxu0 0.0
  %968 = vmatprep.subr.mxu0 0.0
  %969 = vmatpush1.msra.mxu0 0.0
  %970 = vmatprep.subr.mxu0 0.0
  %971 = vmatpush1.msra.mxu0 0.0
  %972 = vmatprep.subr.mxu0 0.0
  %973 = vmatpush1.msra.mxu0 0.0
  %974 = vmatprep.subr.mxu0 0.0
  %975 = vmatpush1.msra.mxu0 0.0
  %976 = vmatprep.subr.mxu0 0.0
  %977 = vmatpush1.msra.mxu0 0.0
  %978 = vmatprep.subr.mxu0 0.0
  %979 = vmatpush1.msra.mxu0 0.0
  %980 = vmatprep.subr.mxu0 0.0
  %981 = vmatpush1.msra.mxu0 0.0
  %982 = vmatprep.subr.mxu0 0.0
  %983 = vmatpush1.msra.mxu0 0.0
  %984 = vmatprep.subr.mxu0 0.0
  %985 = vmatpush1.msra.mxu0 0.0
  %986 = vmatprep.subr.mxu0 0.0
  %987 = vmatpush1.msra.mxu0 0.0
  %988 = vmatprep.subr.mxu0 0.0
  %989 = vmatpush1.msra.mxu0 0.0
  %990 = vmatprep.subr.mxu0 0.0
  %991 = vmatpush1.msra.mxu0 0.0
  %992 = vmatprep.subr.mxu0 0.0
  %993 = vmatpush1.msra.mxu0 0.0
  %994 = vmatprep.subr.mxu0 0.0
  %995 = vmatpush1.msra.mxu0 0.0
  %996 = vmatprep.subr.mxu0 0.0
  %997 = vmatpush1.msra.mxu0 0.0
  %998 = vmatprep.subr.mxu0 0.0
  %999 = vmatpush1.msra.mxu0 0.0
  %1000 = vmatprep.subr.mxu0 0.0
  %1001 = vmatpush1.msra.mxu0 0.0
  %1002 = vmatprep.subr.mxu0 0.0
  %1003 = vmatpush1.msra.mxu0 0.0
  %1004 = vmatprep.subr.mxu0 0.0
  %1005 = vmatpush1.msra.mxu0 0.0
  %1006 = vmatprep.subr.mxu0 0.0
  %1007 = vmatpush1.msra.mxu0 0.0
  %1008 = vmatprep.subr.mxu0 0.0
  %1009 = vmatpush1.msra.mxu0 0.0
  %1010 = vmatprep.subr.mxu0 0.0
  %1011 = vmatpush1.msra.mxu0 0.0
  %1012 = vmatprep.subr.mxu0 0.0
  %1013 = vmatpush1.msra.mxu0 0.0
  %1014 = vmatprep.subr.mxu0 0.0
  %1015 = vmatpush1.msra.mxu0 0.0
  %1016 = vmatprep.subr.mxu0 0.0
  %1017 = vmatpush1.msra.mxu0 0.0
  %1018 = vmatprep.subr.mxu0 0.0
  %1019 = vmatpush1.msra.mxu0 0.0
  %1020 = vmatprep.subr.mxu0 0.0
  %1021 = vmatpush1.msra.mxu0 0.0
  %1022 = vmatprep.subr.mxu0 0.0
  %1023 = vmatpush1.msra.mxu0 0.0
  %1024 = vmatprep.subr.mxu0 0.0
  %1025 = vmatpush1.msra.mxu0 0.0
  %1026 = vmatprep.subr.mxu0 0.0
  %1027 = vmatpush1.msra.mxu0 0.0
  %1028 = vmatprep.mubr.f32.mxu0 0.0
  %1029 = vmatmul.mubr.f32.gmra.mrb[0].mxu0 %v962
  %v1030 = vpop.f32.mrb[0].mxu0
  %v1031 = vadd.f32 0.0, %v1030
  %v1032 = vpop.f32.mrb[0].mxu0
  %v1033 = vadd.f32 0.0, %v1032
  %1034 = vdwg.mxu0
  %v1035 = vadd.f32 %v949, %v1031
  %v1036 = vadd.f32 %v951, %v1033
  %v1037 = vld [vmem:[%s265] sm:$0xff]
  %1038 = vrot.lane.b32.xlu0 %v792, 112
  %v1039 = vpop.permute.xlu0 %1038
  %1040 = vrot.lane.b32.xlu0 %v793, 112
  %v1041 = vpop.permute.xlu0 %1040
  %v1042 = vsel %vm271, %v1039, %v1041
  %v1046 = vsel %vm30, %v1037, 0
  %1048 = vmatprep.subr.mxu0 %v1041
  %1049 = vmatpush1.msra.mxu0 %v1042
  %1050 = vmatprep.subr.mxu0 0.0
  %1051 = vmatpush1.msra.mxu0 0.0
  %1052 = vmatprep.subr.mxu0 0.0
  %1053 = vmatpush1.msra.mxu0 0.0
  %1054 = vmatprep.subr.mxu0 0.0
  %1055 = vmatpush1.msra.mxu0 0.0
  %1056 = vmatprep.subr.mxu0 0.0
  %1057 = vmatpush1.msra.mxu0 0.0
  %1058 = vmatprep.subr.mxu0 0.0
  %1059 = vmatpush1.msra.mxu0 0.0
  %1060 = vmatprep.subr.mxu0 0.0
  %1061 = vmatpush1.msra.mxu0 0.0
  %1062 = vmatprep.subr.mxu0 0.0
  %1063 = vmatpush1.msra.mxu0 0.0
  %1064 = vmatprep.subr.mxu0 0.0
  %1065 = vmatpush1.msra.mxu0 0.0
  %1066 = vmatprep.subr.mxu0 0.0
  %1067 = vmatpush1.msra.mxu0 0.0
  %1068 = vmatprep.subr.mxu0 0.0
  %1069 = vmatpush1.msra.mxu0 0.0
  %1070 = vmatprep.subr.mxu0 0.0
  %1071 = vmatpush1.msra.mxu0 0.0
  %1072 = vmatprep.subr.mxu0 0.0
  %1073 = vmatpush1.msra.mxu0 0.0
  %1074 = vmatprep.subr.mxu0 0.0
  %1075 = vmatpush1.msra.mxu0 0.0
  %1076 = vmatprep.subr.mxu0 0.0
  %1077 = vmatpush1.msra.mxu0 0.0
  %1078 = vmatprep.subr.mxu0 0.0
  %1079 = vmatpush1.msra.mxu0 0.0
  %1080 = vmatprep.subr.mxu0 0.0
  %1081 = vmatpush1.msra.mxu0 0.0
  %1082 = vmatprep.subr.mxu0 0.0
  %1083 = vmatpush1.msra.mxu0 0.0
  %1084 = vmatprep.subr.mxu0 0.0
  %1085 = vmatpush1.msra.mxu0 0.0
  %1086 = vmatprep.subr.mxu0 0.0
  %1087 = vmatpush1.msra.mxu0 0.0
  %1088 = vmatprep.subr.mxu0 0.0
  %1089 = vmatpush1.msra.mxu0 0.0
  %1090 = vmatprep.subr.mxu0 0.0
  %1091 = vmatpush1.msra.mxu0 0.0
  %1092 = vmatprep.subr.mxu0 0.0
  %1093 = vmatpush1.msra.mxu0 0.0
  %1094 = vmatprep.subr.mxu0 0.0
  %1095 = vmatpush1.msra.mxu0 0.0
  %1096 = vmatprep.subr.mxu0 0.0
  %1097 = vmatpush1.msra.mxu0 0.0
  %1098 = vmatprep.subr.mxu0 0.0
  %1099 = vmatpush1.msra.mxu0 0.0
  %1100 = vmatprep.subr.mxu0 0.0
  %1101 = vmatpush1.msra.mxu0 0.0
  %1102 = vmatprep.subr.mxu0 0.0
  %1103 = vmatpush1.msra.mxu0 0.0
  %1104 = vmatprep.subr.mxu0 0.0
  %1105 = vmatpush1.msra.mxu0 0.0
  %1106 = vmatprep.subr.mxu0 0.0
  %1107 = vmatpush1.msra.mxu0 0.0
  %1108 = vmatprep.subr.mxu0 0.0
  %1109 = vmatpush1.msra.mxu0 0.0
  %1110 = vmatprep.subr.mxu0 0.0
  %1111 = vmatpush1.msra.mxu0 0.0
  %1112 = vmatprep.mubr.f32.mxu0 0.0
  %1113 = vmatmul.mubr.f32.gmra.mrb[0].mxu0 %v1046
  %v1114 = vpop.f32.mrb[0].mxu0
  %v1115 = vadd.f32 0.0, %v1114
  %v1116 = vpop.f32.mrb[0].mxu0
  %v1117 = vadd.f32 0.0, %v1116
  %1118 = vdwg.mxu0
  %v1119 = vadd.f32 %v1035, %v1115
  %v1120 = vadd.f32 %v1036, %v1117
  %v1121 = vld [vmem:[%s351] sm:$0xff]
  %1122 = vrot.lane.b32.xlu0 %v792, 111
  %v1123 = vpop.permute.xlu0 %1122
  %1124 = vrot.lane.b32.xlu0 %v793, 111
  %v1125 = vpop.permute.xlu0 %1124
  %v1126 = vsel %vm357, %v1123, %v1125
  %v1130 = vsel %vm30, %v1121, 0
  %1132 = vmatprep.subr.mxu0 %v1125
  %1133 = vmatpush1.msra.mxu0 %v1126
  %1134 = vmatprep.subr.mxu0 0.0
  %1135 = vmatpush1.msra.mxu0 0.0
  %1136 = vmatprep.subr.mxu0 0.0
  %1137 = vmatpush1.msra.mxu0 0.0
  %1138 = vmatprep.subr.mxu0 0.0
  %1139 = vmatpush1.msra.mxu0 0.0
  %1140 = vmatprep.subr.mxu0 0.0
  %1141 = vmatpush1.msra.mxu0 0.0
  %1142 = vmatprep.subr.mxu0 0.0
  %1143 = vmatpush1.msra.mxu0 0.0
  %1144 = vmatprep.subr.mxu0 0.0
  %1145 = vmatpush1.msra.mxu0 0.0
  %1146 = vmatprep.subr.mxu0 0.0
  %1147 = vmatpush1.msra.mxu0 0.0
  %1148 = vmatprep.subr.mxu0 0.0
  %1149 = vmatpush1.msra.mxu0 0.0
  %1150 = vmatprep.subr.mxu0 0.0
  %1151 = vmatpush1.msra.mxu0 0.0
  %1152 = vmatprep.subr.mxu0 0.0
  %1153 = vmatpush1.msra.mxu0 0.0
  %1154 = vmatprep.subr.mxu0 0.0
  %1155 = vmatpush1.msra.mxu0 0.0
  %1156 = vmatprep.subr.mxu0 0.0
  %1157 = vmatpush1.msra.mxu0 0.0
  %1158 = vmatprep.subr.mxu0 0.0
  %1159 = vmatpush1.msra.mxu0 0.0
  %1160 = vmatprep.subr.mxu0 0.0
  %1161 = vmatpush1.msra.mxu0 0.0
  %1162 = vmatprep.subr.mxu0 0.0
  %1163 = vmatpush1.msra.mxu0 0.0
  %1164 = vmatprep.subr.mxu0 0.0
  %1165 = vmatpush1.msra.mxu0 0.0
  %1166 = vmatprep.subr.mxu0 0.0
  %1167 = vmatpush1.msra.mxu0 0.0
  %1168 = vmatprep.subr.mxu0 0.0
  %1169 = vmatpush1.msra.mxu0 0.0
  %1170 = vmatprep.subr.mxu0 0.0
  %1171 = vmatpush1.msra.mxu0 0.0
  %1172 = vmatprep.subr.mxu0 0.0
  %1173 = vmatpush1.msra.mxu0 0.0
  %1174 = vmatprep.subr.mxu0 0.0
  %1175 = vmatpush1.msra.mxu0 0.0
  %1176 = vmatprep.subr.mxu0 0.0
  %1177 = vmatpush1.msra.mxu0 0.0
  %1178 = vmatprep.subr.mxu0 0.0
  %1179 = vmatpush1.msra.mxu0 0.0
  %1180 = vmatprep.subr.mxu0 0.0
  %1181 = vmatpush1.msra.mxu0 0.0
  %1182 = vmatprep.subr.mxu0 0.0
  %1183 = vmatpush1.msra.mxu0 0.0
  %1184 = vmatprep.subr.mxu0 0.0
  %1185 = vmatpush1.msra.mxu0 0.0
  %1186 = vmatprep.subr.mxu0 0.0
  %1187 = vmatpush1.msra.mxu0 0.0
  %1188 = vmatprep.subr.mxu0 0.0
  %1189 = vmatpush1.msra.mxu0 0.0
  %1190 = vmatprep.subr.mxu0 0.0
  %1191 = vmatpush1.msra.mxu0 0.0
  %1192 = vmatprep.subr.mxu0 0.0
  %1193 = vmatpush1.msra.mxu0 0.0
  %1194 = vmatprep.subr.mxu0 0.0
  %1195 = vmatpush1.msra.mxu0 0.0
  %1196 = vmatprep.mubr.f32.mxu0 0.0
  %1197 = vmatmul.mubr.f32.gmra.mrb[0].mxu0 %v1130
  %v1198 = vpop.f32.mrb[0].mxu0
  %v1199 = vadd.f32 0.0, %v1198
  %v1200 = vpop.f32.mrb[0].mxu0
  %v1201 = vadd.f32 0.0, %v1200
  %1202 = vdwg.mxu0
  %v1203 = vadd.f32 %v1119, %v1199
  %v1204 = vadd.f32 %v1120, %v1201
  %v1205 = vld [vmem:[%s437] sm:$0xff]
  %1206 = vrot.lane.b32.xlu0 %v792, 110
  %v1207 = vpop.permute.xlu0 %1206
  %1208 = vrot.lane.b32.xlu0 %v793, 110
  %v1209 = vpop.permute.xlu0 %1208
  %v1210 = vsel %vm443, %v1207, %v1209
  %v1214 = vsel %vm30, %v1205, 0
  %1216 = vmatprep.subr.mxu0 %v1209
  %1217 = vmatpush1.msra.mxu0 %v1210
  %1218 = vmatprep.subr.mxu0 0.0
  %1219 = vmatpush1.msra.mxu0 0.0
  %1220 = vmatprep.subr.mxu0 0.0
  %1221 = vmatpush1.msra.mxu0 0.0
  %1222 = vmatprep.subr.mxu0 0.0
  %1223 = vmatpush1.msra.mxu0 0.0
  %1224 = vmatprep.subr.mxu0 0.0
  %1225 = vmatpush1.msra.mxu0 0.0
  %1226 = vmatprep.subr.mxu0 0.0
  %1227 = vmatpush1.msra.mxu0 0.0
  %1228 = vmatprep.subr.mxu0 0.0
  %1229 = vmatpush1.msra.mxu0 0.0
  %1230 = vmatprep.subr.mxu0 0.0
  %1231 = vmatpush1.msra.mxu0 0.0
  %1232 = vmatprep.subr.mxu0 0.0
  %1233 = vmatpush1.msra.mxu0 0.0
  %1234 = vmatprep.subr.mxu0 0.0
  %1235 = vmatpush1.msra.mxu0 0.0
  %1236 = vmatprep.subr.mxu0 0.0
  %1237 = vmatpush1.msra.mxu0 0.0
  %1238 = vmatprep.subr.mxu0 0.0
  %1239 = vmatpush1.msra.mxu0 0.0
  %1240 = vmatprep.subr.mxu0 0.0
  %1241 = vmatpush1.msra.mxu0 0.0
  %1242 = vmatprep.subr.mxu0 0.0
  %1243 = vmatpush1.msra.mxu0 0.0
  %1244 = vmatprep.subr.mxu0 0.0
  %1245 = vmatpush1.msra.mxu0 0.0
  %1246 = vmatprep.subr.mxu0 0.0
  %1247 = vmatpush1.msra.mxu0 0.0
  %1248 = vmatprep.subr.mxu0 0.0
  %1249 = vmatpush1.msra.mxu0 0.0
  %1250 = vmatprep.subr.mxu0 0.0
  %1251 = vmatpush1.msra.mxu0 0.0
  %1252 = vmatprep.subr.mxu0 0.0
  %1253 = vmatpush1.msra.mxu0 0.0
  %1254 = vmatprep.subr.mxu0 0.0
  %1255 = vmatpush1.msra.mxu0 0.0
  %1256 = vmatprep.subr.mxu0 0.0
  %1257 = vmatpush1.msra.mxu0 0.0
  %1258 = vmatprep.subr.mxu0 0.0
  %1259 = vmatpush1.msra.mxu0 0.0
  %1260 = vmatprep.subr.mxu0 0.0
  %1261 = vmatpush1.msra.mxu0 0.0
  %1262 = vmatprep.subr.mxu0 0.0
  %1263 = vmatpush1.msra.mxu0 0.0
  %1264 = vmatprep.subr.mxu0 0.0
  %1265 = vmatpush1.msra.mxu0 0.0
  %1266 = vmatprep.subr.mxu0 0.0
  %1267 = vmatpush1.msra.mxu0 0.0
  %1268 = vmatprep.subr.mxu0 0.0
  %1269 = vmatpush1.msra.mxu0 0.0
  %1270 = vmatprep.subr.mxu0 0.0
  %1271 = vmatpush1.msra.mxu0 0.0
  %1272 = vmatprep.subr.mxu0 0.0
  %1273 = vmatpush1.msra.mxu0 0.0
  %1274 = vmatprep.subr.mxu0 0.0
  %1275 = vmatpush1.msra.mxu0 0.0
  %1276 = vmatprep.subr.mxu0 0.0
  %1277 = vmatpush1.msra.mxu0 0.0
  %1278 = vmatprep.subr.mxu0 0.0
  %1279 = vmatpush1.msra.mxu0 0.0
  %1280 = vmatprep.mubr.f32.mxu0 0.0
  %1281 = vmatmul.mubr.f32.gmra.mrb[0].mxu0 %v1214
  %v1282 = vpop.f32.mrb[0].mxu0
  %v1283 = vadd.f32 0.0, %v1282
  %v1284 = vpop.f32.mrb[0].mxu0
  %v1285 = vadd.f32 0.0, %v1284
  %1286 = vdwg.mxu0
  %v1287 = vadd.f32 %v1203, %v1283
  %v1288 = vadd.f32 %v1204, %v1285
  %v1289 = vld [vmem:[%s523] sm:$0xff]
  %1290 = vrot.lane.b32.xlu0 %v792, 96
  %v1291 = vpop.permute.xlu0 %1290
  %1292 = vrot.lane.b32.xlu0 %v793, 96
  %v1293 = vpop.permute.xlu0 %1292
  %v1294 = vsel %vm529, %v1291, %v1293
  %v1298 = vsel %vm30, %v1289, 0
  %1300 = vmatprep.subr.mxu0 %v1293
  %1301 = vmatpush1.msra.mxu0 %v1294
  %1302 = vmatprep.subr.mxu0 0.0
  %1303 = vmatpush1.msra.mxu0 0.0
  %1304 = vmatprep.subr.mxu0 0.0
  %1305 = vmatpush1.msra.mxu0 0.0
  %1306 = vmatprep.subr.mxu0 0.0
  %1307 = vmatpush1.msra.mxu0 0.0
  %1308 = vmatprep.subr.mxu0 0.0
  %1309 = vmatpush1.msra.mxu0 0.0
  %1310 = vmatprep.subr.mxu0 0.0
  %1311 = vmatpush1.msra.mxu0 0.0
  %1312 = vmatprep.subr.mxu0 0.0
  %1313 = vmatpush1.msra.mxu0 0.0
  %1314 = vmatprep.subr.mxu0 0.0
  %1315 = vmatpush1.msra.mxu0 0.0
  %1316 = vmatprep.subr.mxu0 0.0
  %1317 = vmatpush1.msra.mxu0 0.0
  %1318 = vmatprep.subr.mxu0 0.0
  %1319 = vmatpush1.msra.mxu0 0.0
  %1320 = vmatprep.subr.mxu0 0.0
  %1321 = vmatpush1.msra.mxu0 0.0
  %1322 = vmatprep.subr.mxu0 0.0
  %1323 = vmatpush1.msra.mxu0 0.0
  %1324 = vmatprep.subr.mxu0 0.0
  %1325 = vmatpush1.msra.mxu0 0.0
  %1326 = vmatprep.subr.mxu0 0.0
  %1327 = vmatpush1.msra.mxu0 0.0
  %1328 = vmatprep.subr.mxu0 0.0
  %1329 = vmatpush1.msra.mxu0 0.0
  %1330 = vmatprep.subr.mxu0 0.0
  %1331 = vmatpush1.msra.mxu0 0.0
  %1332 = vmatprep.subr.mxu0 0.0
  %1333 = vmatpush1.msra.mxu0 0.0
  %1334 = vmatprep.subr.mxu0 0.0
  %1335 = vmatpush1.msra.mxu0 0.0
  %1336 = vmatprep.subr.mxu0 0.0
  %1337 = vmatpush1.msra.mxu0 0.0
  %1338 = vmatprep.subr.mxu0 0.0
  %1339 = vmatpush1.msra.mxu0 0.0
  %1340 = vmatprep.subr.mxu0 0.0
  %1341 = vmatpush1.msra.mxu0 0.0
  %1342 = vmatprep.subr.mxu0 0.0
  %1343 = vmatpush1.msra.mxu0 0.0
  %1344 = vmatprep.subr.mxu0 0.0
  %1345 = vmatpush1.msra.mxu0 0.0
  %1346 = vmatprep.subr.mxu0 0.0
  %1347 = vmatpush1.msra.mxu0 0.0
  %1348 = vmatprep.subr.mxu0 0.0
  %1349 = vmatpush1.msra.mxu0 0.0
  %1350 = vmatprep.subr.mxu0 0.0
  %1351 = vmatpush1.msra.mxu0 0.0
  %1352 = vmatprep.subr.mxu0 0.0
  %1353 = vmatpush1.msra.mxu0 0.0
  %1354 = vmatprep.subr.mxu0 0.0
  %1355 = vmatpush1.msra.mxu0 0.0
  %1356 = vmatprep.subr.mxu0 0.0
  %1357 = vmatpush1.msra.mxu0 0.0
  %1358 = vmatprep.subr.mxu0 0.0
  %1359 = vmatpush1.msra.mxu0 0.0
  %1360 = vmatprep.subr.mxu0 0.0
  %1361 = vmatpush1.msra.mxu0 0.0
  %1362 = vmatprep.subr.mxu0 0.0
  %1363 = vmatpush1.msra.mxu0 0.0
  %1364 = vmatprep.mubr.f32.mxu0 0.0
  %1365 = vmatmul.mubr.f32.gmra.mrb[0].mxu0 %v1298
  %v1366 = vpop.f32.mrb[0].mxu0
  %v1367 = vadd.f32 0.0, %v1366
  %v1368 = vpop.f32.mrb[0].mxu0
  %v1369 = vadd.f32 0.0, %v1368
  %1370 = vdwg.mxu0
  %v1371 = vadd.f32 %v1287, %v1367
  %v1372 = vadd.f32 %v1288, %v1369
  %v1373 = vld [vmem:[%s609] sm:$0xff]
  %1374 = vrot.lane.b32.xlu0 %v792, 95
  %v1375 = vpop.permute.xlu0 %1374
  %1376 = vrot.lane.b32.xlu0 %v793, 95
  %v1377 = vpop.permute.xlu0 %1376
  %v1378 = vsel %vm615, %v1375, %v1377
  %v1382 = vsel %vm30, %v1373, 0
  %1384 = vmatprep.subr.mxu0 %v1377
  %1385 = vmatpush1.msra.mxu0 %v1378
  %1386 = vmatprep.subr.mxu0 0.0
  %1387 = vmatpush1.msra.mxu0 0.0
  %1388 = vmatprep.subr.mxu0 0.0
  %1389 = vmatpush1.msra.mxu0 0.0
  %1390 = vmatprep.subr.mxu0 0.0
  %1391 = vmatpush1.msra.mxu0 0.0
  %1392 = vmatprep.subr.mxu0 0.0
  %1393 = vmatpush1.msra.mxu0 0.0
  %1394 = vmatprep.subr.mxu0 0.0
  %1395 = vmatpush1.msra.mxu0 0.0
  %1396 = vmatprep.subr.mxu0 0.0
  %1397 = vmatpush1.msra.mxu0 0.0
  %1398 = vmatprep.subr.mxu0 0.0
  %1399 = vmatpush1.msra.mxu0 0.0
  %1400 = vmatprep.subr.mxu0 0.0
  %1401 = vmatpush1.msra.mxu0 0.0
  %1402 = vmatprep.subr.mxu0 0.0
  %1403 = vmatpush1.msra.mxu0 0.0
  %1404 = vmatprep.subr.mxu0 0.0
  %1405 = vmatpush1.msra.mxu0 0.0
  %1406 = vmatprep.subr.mxu0 0.0
  %1407 = vmatpush1.msra.mxu0 0.0
  %1408 = vmatprep.subr.mxu0 0.0
  %1409 = vmatpush1.msra.mxu0 0.0
  %1410 = vmatprep.subr.mxu0 0.0
  %1411 = vmatpush1.msra.mxu0 0.0
  %1412 = vmatprep.subr.mxu0 0.0
  %1413 = vmatpush1.msra.mxu0 0.0
  %1414 = vmatprep.subr.mxu0 0.0
  %1415 = vmatpush1.msra.mxu0 0.0
  %1416 = vmatprep.subr.mxu0 0.0
  %1417 = vmatpush1.msra.mxu0 0.0
  %1418 = vmatprep.subr.mxu0 0.0
  %1419 = vmatpush1.msra.mxu0 0.0
  %1420 = vmatprep.subr.mxu0 0.0
  %1421 = vmatpush1.msra.mxu0 0.0
  %1422 = vmatprep.subr.mxu0 0.0
  %1423 = vmatpush1.msra.mxu0 0.0
  %1424 = vmatprep.subr.mxu0 0.0
  %1425 = vmatpush1.msra.mxu0 0.0
  %1426 = vmatprep.subr.mxu0 0.0
  %1427 = vmatpush1.msra.mxu0 0.0
  %1428 = vmatprep.subr.mxu0 0.0
  %1429 = vmatpush1.msra.mxu0 0.0
  %1430 = vmatprep.subr.mxu0 0.0
  %1431 = vmatpush1.msra.mxu0 0.0
  %1432 = vmatprep.subr.mxu0 0.0
  %1433 = vmatpush1.msra.mxu0 0.0
  %1434 = vmatprep.subr.mxu0 0.0
  %1435 = vmatpush1.msra.mxu0 0.0
  %1436 = vmatprep.subr.mxu0 0.0
  %1437 = vmatpush1.msra.mxu0 0.0
  %1438 = vmatprep.subr.mxu0 0.0
  %1439 = vmatpush1.msra.mxu0 0.0
  %1440 = vmatprep.subr.mxu0 0.0
  %1441 = vmatpush1.msra.mxu0 0.0
  %1442 = vmatprep.subr.mxu0 0.0
  %1443 = vmatpush1.msra.mxu0 0.0
  %1444 = vmatprep.subr.mxu0 0.0
  %1445 = vmatpush1.msra.mxu0 0.0
  %1446 = vmatprep.subr.mxu0 0.0
  %1447 = vmatpush1.msra.mxu0 0.0
  %1448 = vmatprep.mubr.f32.mxu0 0.0
  %1449 = vmatmul.mubr.f32.gmra.mrb[0].mxu0 %v1382
  %v1450 = vpop.f32.mrb[0].mxu0
  %v1451 = vadd.f32 0.0, %v1450
  %v1452 = vpop.f32.mrb[0].mxu0
  %v1453 = vadd.f32 0.0, %v1452
  %1454 = vdwg.mxu0
  %v1455 = vadd.f32 %v1371, %v1451
  %v1456 = vadd.f32 %v1372, %v1453
  %v1457 = vld [vmem:[%s695] sm:$0xff]
  %1458 = vrot.lane.b32.xlu0 %v792, 94
  %v1459 = vpop.permute.xlu0 %1458
  %1460 = vrot.lane.b32.xlu0 %v793, 94
  %v1461 = vpop.permute.xlu0 %1460
  %v1462 = vsel %vm701, %v1459, %v1461
  %v1466 = vsel %vm30, %v1457, 0
  %1468 = vmatprep.subr.mxu0 %v1461
  %1469 = vmatpush1.msra.mxu0 %v1462
  %1470 = vmatprep.subr.mxu0 0.0
  %1471 = vmatpush1.msra.mxu0 0.0
  %1472 = vmatprep.subr.mxu0 0.0
  %1473 = vmatpush1.msra.mxu0 0.0
  %1474 = vmatprep.subr.mxu0 0.0
  %1475 = vmatpush1.msra.mxu0 0.0
  %1476 = vmatprep.subr.mxu0 0.0
  %1477 = vmatpush1.msra.mxu0 0.0
  %1478 = vmatprep.subr.mxu0 0.0
  %1479 = vmatpush1.msra.mxu0 0.0
  %1480 = vmatprep.subr.mxu0 0.0
  %1481 = vmatpush1.msra.mxu0 0.0
  %1482 = vmatprep.subr.mxu0 0.0
  %1483 = vmatpush1.msra.mxu0 0.0
  %1484 = vmatprep.subr.mxu0 0.0
  %1485 = vmatpush1.msra.mxu0 0.0
  %1486 = vmatprep.subr.mxu0 0.0
  %1487 = vmatpush1.msra.mxu0 0.0
  %1488 = vmatprep.subr.mxu0 0.0
  %1489 = vmatpush1.msra.mxu0 0.0
  %1490 = vmatprep.subr.mxu0 0.0
  %1491 = vmatpush1.msra.mxu0 0.0
  %1492 = vmatprep.subr.mxu0 0.0
  %1493 = vmatpush1.msra.mxu0 0.0
  %1494 = vmatprep.subr.mxu0 0.0
  %1495 = vmatpush1.msra.mxu0 0.0
  %1496 = vmatprep.subr.mxu0 0.0
  %1497 = vmatpush1.msra.mxu0 0.0
  %1498 = vmatprep.subr.mxu0 0.0
  %1499 = vmatpush1.msra.mxu0 0.0
  %1500 = vmatprep.subr.mxu0 0.0
  %1501 = vmatpush1.msra.mxu0 0.0
  %1502 = vmatprep.subr.mxu0 0.0
  %1503 = vmatpush1.msra.mxu0 0.0
  %1504 = vmatprep.subr.mxu0 0.0
  %1505 = vmatpush1.msra.mxu0 0.0
  %1506 = vmatprep.subr.mxu0 0.0
  %1507 = vmatpush1.msra.mxu0 0.0
  %1508 = vmatprep.subr.mxu0 0.0
  %1509 = vmatpush1.msra.mxu0 0.0
  %1510 = vmatprep.subr.mxu0 0.0
  %1511 = vmatpush1.msra.mxu0 0.0
  %1512 = vmatprep.subr.mxu0 0.0
  %1513 = vmatpush1.msra.mxu0 0.0
  %1514 = vmatprep.subr.mxu0 0.0
  %1515 = vmatpush1.msra.mxu0 0.0
  %1516 = vmatprep.subr.mxu0 0.0
  %1517 = vmatpush1.msra.mxu0 0.0
  %1518 = vmatprep.subr.mxu0 0.0
  %1519 = vmatpush1.msra.mxu0 0.0
  %1520 = vmatprep.subr.mxu0 0.0
  %1521 = vmatpush1.msra.mxu0 0.0
  %1522 = vmatprep.subr.mxu0 0.0
  %1523 = vmatpush1.msra.mxu0 0.0
  %1524 = vmatprep.subr.mxu0 0.0
  %1525 = vmatpush1.msra.mxu0 0.0
  %1526 = vmatprep.subr.mxu0 0.0
  %1527 = vmatpush1.msra.mxu0 0.0
  %1528 = vmatprep.subr.mxu0 0.0
  %1529 = vmatpush1.msra.mxu0 0.0
  %1530 = vmatprep.subr.mxu0 0.0
  %1531 = vmatpush1.msra.mxu0 0.0
  %1532 = vmatprep.mubr.f32.mxu0 0.0
  %1533 = vmatmul.mubr.f32.gmra.mrb[0].mxu0 %v1466
  %v1534 = vpop.f32.mrb[0].mxu0
  %v1535 = vadd.f32 0.0, %v1534
  %v1536 = vpop.f32.mrb[0].mxu0
  %v1537 = vadd.f32 0.0, %v1536
  %1538 = vdwg.mxu0
  %v1539 = vadd.f32 %v1455, %v1535
  %v1540 = vadd.f32 %v1456, %v1537
  %v1541 = vadd.f32 %v1539, %v784
  %v1542 = vadd.f32 %v1540, %v784
  %s1543 = scalar_lea.vmem %s3, 16
  %1544 = vst [vmem:[%s1543] sm:$0xff] %v1541
  %1545 = vst.msk [vmem:[%s1543 + $0x8] sm:$0xff] %vm789, %v1542
  // Predicated region
  $region14: #{bottom_block_forward.5} parent=0 // pred_check
    _
  $region15: #{bottom_block_forward.5} parent=0 // pred_check_branch
    %1547 = sbr.rel (0) target = $region17
  $region16: #{bottom_block_forward.5} parent=0 // pred_region
    _
  $region17: #{bottom_block_forward.5} parent=0 // pred_fallthru
    _
  // Predicated region
  $region18: #{bottom_block_forward.5} parent=0 // pred_check
    _
  $region19: #{bottom_block_forward.5} parent=0 // pred_check_branch
    %1549 = sbr.rel (0) target = $region21
  $region20: #{bottom_block_forward.5} parent=0 // pred_region
    _
  $region21: #{bottom_block_forward.5} parent=0 // pred_fallthru
    _

// kernel: bottom_block_forward.4
$region0: #{bottom_block_forward.4}
  #allocation0 [shape = 'u32[]', space=smem, size = 0x4, offset = 0x4, fixed_abs, tag = 'smem constant byte address 0x4 - core index']
  #allocation1 [shape = 'u32[144,128]{1,0:T(1,128)}', space=vmem, size = 0x12000, scoped, tag = 'internal scratch']
  %s0 = inlined_call_operand.vmem [shape: f32[2,4,256], index: 0, kind: input, shape index: {}]
  %s1 = inlined_call_operand.vmem [shape: f32[3,3,8,4], index: 1, kind: input, shape index: {}]
  %s2 = inlined_call_operand.vmem [shape: f32[8,1], index: 2, kind: input, shape index: {}]
  %s3 = inlined_call_operand.vmem [shape: f32[2,8,222], index: 3, kind: output, shape index: {0}]
  %s4 = inlined_call_operand.vmem [shape: f32[8,1], index: 4, kind: output, shape index: {1}]
  %s5 = inlined_call_operand.vmem [shape: f32[8,1], index: 5, kind: output, shape index: {2}]
  %6 = xla_tuple %s3, %s4, %s5
  %s7 = sld [smem:[#allocation0]]
  $region42: #{bottom_block_forward.4} parent=0
    _
  %s9 = ssub.s32 1, %s7
  %s10 = scalar_select 0, %s9, %s7
  // Predicated region
  $region2: #{bottom_block_forward.4} parent=0 // pred_check
    _
  $region3: #{bottom_block_forward.4} parent=0 // pred_check_branch
    %12 = sbr.rel (0) target = $region5
  $region4: #{bottom_block_forward.4} parent=0 // pred_region
    _
  $region5: #{bottom_block_forward.4} parent=0 // pred_fallthru
    _
  // Predicated region
  $region6: #{bottom_block_forward.4} parent=0 // pred_check
    _
  $region7: #{bottom_block_forward.4} parent=0 // pred_check_branch
    %14 = sbr.rel (0) target = $region9
  $region8: #{bottom_block_forward.4} parent=0 // pred_region
    _
  $region9: #{bottom_block_forward.4} parent=0 // pred_fallthru
    _
  // Predicated region
  $region10: #{bottom_block_forward.4} parent=0 // pred_check
    _
  $region11: #{bottom_block_forward.4} parent=0 // pred_check_branch
    %16 = sbr.rel (0) target = $region13
  $region12: #{bottom_block_forward.4} parent=0 // pred_region
    _
  $region13: #{bottom_block_forward.4} parent=0 // pred_fallthru
    _
  %v17 = vld [vmem:[%s2] sm:$0xff]
  %p18 = scmp.eq.s32.totalorder 0, 0
  // Predicated region
  $region14: #{bottom_block_forward.4} parent=0 // pred_check
    %p19 = pneg %p18
  $region15: #{bottom_block_forward.4} parent=0 // pred_check_branch
    %21 = sbr.rel (%p19) target = $region17
  $region16: #{bottom_block_forward.4} parent=0 // pred_region
    %vm22 = vcmask 7168
    %23 = vst.msk [vmem:[%s4] sm:$0xff] %vm22, 0.0
    %24 = vst.msk [vmem:[%s5] sm:$0xff] %vm22, 0.0
  $region17: #{bottom_block_forward.4} parent=0 // pred_fallthru
    _
  %v25 = vlaneseq
  %v26 = vand.u32 %v25, 127
  %v27 = vadd.s32 %v26, 128
  %vm28 = vcmp.lt.s32.totalorder %v26, 0
  %v29 = vsub.s32 0, %v26
  %v30 = vsel %vm28, %v29, %v26
  %v31 = vshrl.u32 %v30, 4
  %v32 = vand.u32 %v30, 15
  %v33 = vsub.s32 0, %v32
  %v34 = vsel %vm28, %v33, %v32
  %vm35 = vcmp.lt.s32.totalorder %v27, 0
  %v36 = vsub.s32 0, %v27
  %v37 = vsel %vm35, %v36, %v27
  %v38 = vshrl.u32 %v37, 4
  %v39 = vand.u32 %v37, 15
  %v40 = vsub.s32 0, %v39
  %v41 = vsel %vm35, %v40, %v39
  %vm42 = vcmp.ne.s32.totalorder %v34, 0
  %vm43 = vcmp.ne.s32.totalorder %v41, 0
  %vm44 = vcmp.lt.s32.totalorder %v34, 0
  %vm45 = vcmp.lt.s32.totalorder %v41, 0
  %vm46 = vmand %vm44, %vm42
  %vm47 = vmand %vm45, %vm43
  %v48 = vadd.s32 %v34, 16
  %v49 = vadd.s32 %v41, 16
  %v50 = vsel %vm46, %v48, %v34
  %v51 = vsel %vm47, %v49, %v41
  %vm52 = vcmp.lt.s32.totalorder %v50, 14
  %vm53 = vcmp.lt.s32.totalorder %v51, 14
  %v54 = vsel %vm52, 1, 0
  %v55 = vsel %vm53, 1, 0
  %v56 = vcvt.s32.f32 %v54
  %v57 = vcvt.s32.f32 %v55
  %v58 = vld [vmem:[%s0] sm:$0xff]
  %v59 = vld [vmem:[%s1] sm:$0xff]
  %s60 = scalar_lea.vmem %s1, 8
  %v61 = vld [vmem:[%s60] sm:$0xff]
  %v63 = vcombine.high %v58, %v58
  %64 = vrot.lane.b32.xlu0 %v58, 127
  %v65 = vpop.permute.xlu0 %64
  %66 = vrot.lane.b32.xlu0 %v63, 127
  %v67 = vpop.permute.xlu0 %66
  %vm68 = vcmask 1039360
  %v69 = vsel %vm68, %v65, %v67
  %vm70 = vcmask 31744
  %v72 = vsel %vm70, %v61, 0
  %vm74 = vcmask 1043456
  %v75 = vsel %vm74, %v69, 0
  %v77 = vsel %vm74, %v67, 0
  %79 = vmatprep.subr.mxu0 %v77
  %80 = vmatpush1.msra.mxu0 %v75
  %81 = vmatprep.subr.mxu0 0.0
  %82 = vmatpush1.msra.mxu0 0.0
  %83 = vmatprep.subr.mxu0 0.0
  %84 = vmatpush1.msra.mxu0 0.0
  %85 = vmatprep.subr.mxu0 0.0
  %86 = vmatpush1.msra.mxu0 0.0
  %87 = vmatprep.subr.mxu0 0.0
  %88 = vmatpush1.msra.mxu0 0.0
  %89 = vmatprep.subr.mxu0 0.0
  %90 = vmatpush1.msra.mxu0 0.0
  %91 = vmatprep.subr.mxu0 0.0
  %92 = vmatpush1.msra.mxu0 0.0
  %93 = vmatprep.subr.mxu0 0.0
  %94 = vmatpush1.msra.mxu0 0.0
  %95 = vmatprep.subr.mxu0 0.0
  %96 = vmatpush1.msra.mxu0 0.0
  %97 = vmatprep.subr.mxu0 0.0
  %98 = vmatpush1.msra.mxu0 0.0
  %99 = vmatprep.subr.mxu0 0.0
  %100 = vmatpush1.msra.mxu0 0.0
  %101 = vmatprep.subr.mxu0 0.0
  %102 = vmatpush1.msra.mxu0 0.0
  %103 = vmatprep.subr.mxu0 0.0
  %104 = vmatpush1.msra.mxu0 0.0
  %105 = vmatprep.subr.mxu0 0.0
  %106 = vmatpush1.msra.mxu0 0.0
  %107 = vmatprep.subr.mxu0 0.0
  %108 = vmatpush1.msra.mxu0 0.0
  %109 = vmatprep.subr.mxu0 0.0
  %110 = vmatpush1.msra.mxu0 0.0
  %111 = vmatprep.subr.mxu0 0.0
  %112 = vmatpush1.msra.mxu0 0.0
  %113 = vmatprep.subr.mxu0 0.0
  %114 = vmatpush1.msra.mxu0 0.0
  %115 = vmatprep.subr.mxu0 0.0
  %116 = vmatpush1.msra.mxu0 0.0
  %117 = vmatprep.subr.mxu0 0.0
  %118 = vmatpush1.msra.mxu0 0.0
  %119 = vmatprep.subr.mxu0 0.0
  %120 = vmatpush1.msra.mxu0 0.0
  %121 = vmatprep.subr.mxu0 0.0
  %122 = vmatpush1.msra.mxu0 0.0
  %123 = vmatprep.subr.mxu0 0.0
  %124 = vmatpush1.msra.mxu0 0.0
  %125 = vmatprep.subr.mxu0 0.0
  %126 = vmatpush1.msra.mxu0 0.0
  %127 = vmatprep.subr.mxu0 0.0
  %128 = vmatpush1.msra.mxu0 0.0
  %129 = vmatprep.subr.mxu0 0.0
  %130 = vmatpush1.msra.mxu0 0.0
  %131 = vmatprep.subr.mxu0 0.0
  %132 = vmatpush1.msra.mxu0 0.0
  %133 = vmatprep.subr.mxu0 0.0
  %134 = vmatpush1.msra.mxu0 0.0
  %135 = vmatprep.subr.mxu0 0.0
  %136 = vmatpush1.msra.mxu0 0.0
  %137 = vmatprep.subr.mxu0 0.0
  %138 = vmatpush1.msra.mxu0 0.0
  %139 = vmatprep.subr.mxu0 0.0
  %140 = vmatpush1.msra.mxu0 0.0
  %141 = vmatprep.subr.mxu0 0.0
  %142 = vmatpush1.msra.mxu0 0.0
  %143 = vmatprep.mubr.f32.mxu0 0.0
  %144 = vmatmul.mubr.f32.gmra.mrb[0].mxu0 %v72
  %v145 = vpop.f32.mrb[0].mxu0
  %v146 = vadd.f32 0.0, %v145
  %v147 = vpop.f32.mrb[0].mxu0
  %v148 = vadd.f32 0.0, %v147
  %149 = vdwg.mxu0
  %v151 = vsel %vm70, %v59, 0
  %v153 = vsel %vm74, %v58, 0
  %v155 = vsel %vm74, %v63, 0
  %157 = vmatprep.subr.mxu0 %v155
  %158 = vmatpush1.msra.mxu0 %v153
  %159 = vmatprep.subr.mxu0 0.0
  %160 = vmatpush1.msra.mxu0 0.0
  %161 = vmatprep.subr.mxu0 0.0
  %162 = vmatpush1.msra.mxu0 0.0
  %163 = vmatprep.subr.mxu0 0.0
  %164 = vmatpush1.msra.mxu0 0.0
  %165 = vmatprep.subr.mxu0 0.0
  %166 = vmatpush1.msra.mxu0 0.0
  %167 = vmatprep.subr.mxu0 0.0
  %168 = vmatpush1.msra.mxu0 0.0
  %169 = vmatprep.subr.mxu0 0.0
  %170 = vmatpush1.msra.mxu0 0.0
  %171 = vmatprep.subr.mxu0 0.0
  %172 = vmatpush1.msra.mxu0 0.0
  %173 = vmatprep.subr.mxu0 0.0
  %174 = vmatpush1.msra.mxu0 0.0
  %175 = vmatprep.subr.mxu0 0.0
  %176 = vmatpush1.msra.mxu0 0.0
  %177 = vmatprep.subr.mxu0 0.0
  %178 = vmatpush1.msra.mxu0 0.0
  %179 = vmatprep.subr.mxu0 0.0
  %180 = vmatpush1.msra.mxu0 0.0
  %181 = vmatprep.subr.mxu0 0.0
  %182 = vmatpush1.msra.mxu0 0.0
  %183 = vmatprep.subr.mxu0 0.0
  %184 = vmatpush1.msra.mxu0 0.0
  %185 = vmatprep.subr.mxu0 0.0
  %186 = vmatpush1.msra.mxu0 0.0
  %187 = vmatprep.subr.mxu0 0.0
  %188 = vmatpush1.msra.mxu0 0.0
  %189 = vmatprep.subr.mxu0 0.0
  %190 = vmatpush1.msra.mxu0 0.0
  %191 = vmatprep.subr.mxu0 0.0
  %192 = vmatpush1.msra.mxu0 0.0
  %193 = vmatprep.subr.mxu0 0.0
  %194 = vmatpush1.msra.mxu0 0.0
  %195 = vmatprep.subr.mxu0 0.0
  %196 = vmatpush1.msra.mxu0 0.0
  %197 = vmatprep.subr.mxu0 0.0
  %198 = vmatpush1.msra.mxu0 0.0
  %199 = vmatprep.subr.mxu0 0.0
  %200 = vmatpush1.msra.mxu0 0.0
  %201 = vmatprep.subr.mxu0 0.0
  %202 = vmatpush1.msra.mxu0 0.0
  %203 = vmatprep.subr.mxu0 0.0
  %204 = vmatpush1.msra.mxu0 0.0
  %205 = vmatprep.subr.mxu0 0.0
  %206 = vmatpush1.msra.mxu0 0.0
  %207 = vmatprep.subr.mxu0 0.0
  %208 = vmatpush1.msra.mxu0 0.0
  %209 = vmatprep.subr.mxu0 0.0
  %210 = vmatpush1.msra.mxu0 0.0
  %211 = vmatprep.subr.mxu0 0.0
  %212 = vmatpush1.msra.mxu0 0.0
  %213 = vmatprep.subr.mxu0 0.0
  %214 = vmatpush1.msra.mxu0 0.0
  %215 = vmatprep.subr.mxu0 0.0
  %216 = vmatpush1.msra.mxu0 0.0
  %217 = vmatprep.subr.mxu0 0.0
  %218 = vmatpush1.msra.mxu0 0.0
  %219 = vmatprep.subr.mxu0 0.0
  %220 = vmatpush1.msra.mxu0 0.0
  %221 = vmatprep.mubr.f32.mxu0 0.0
  %222 = vmatmul.mubr.f32.gmra.mrb[0].mxu0 %v151
  %v223 = vpop.f32.mrb[0].mxu0
  %v224 = vadd.f32 %v146, %v223
  %v225 = vpop.f32.mrb[0].mxu0
  %v226 = vadd.f32 %v148, %v225
  %227 = vdwg.mxu0
  %v228 = vld [vmem:[%s0] sm:$0xff]
  %s229 = scalar_lea.vmem %s1, 16
  %v230 = vld [vmem:[%s229] sm:$0xff]
  %v232 = vcombine.high %v228, %v228
  %233 = vrot.lane.b32.xlu0 %v228, 126
  %v234 = vpop.permute.xlu0 %233
  %235 = vrot.lane.b32.xlu0 %v232, 126
  %v236 = vpop.permute.xlu0 %235
  %vm237 = vcmask 1031168
  %v238 = vsel %vm237, %v234, %v236
  %v240 = vsel %vm70, %v230, 0
  %v242 = vsel %vm74, %v238, 0
  %v244 = vsel %vm74, %v236, 0
  %246 = vmatprep.subr.mxu0 %v244
  %247 = vmatpush1.msra.mxu0 %v242
  %248 = vmatprep.subr.mxu0 0.0
  %249 = vmatpush1.msra.mxu0 0.0
  %250 = vmatprep.subr.mxu0 0.0
  %251 = vmatpush1.msra.mxu0 0.0
  %252 = vmatprep.subr.mxu0 0.0
  %253 = vmatpush1.msra.mxu0 0.0
  %254 = vmatprep.subr.mxu0 0.0
  %255 = vmatpush1.msra.mxu0 0.0
  %256 = vmatprep.subr.mxu0 0.0
  %257 = vmatpush1.msra.mxu0 0.0
  %258 = vmatprep.subr.mxu0 0.0
  %259 = vmatpush1.msra.mxu0 0.0
  %260 = vmatprep.subr.mxu0 0.0
  %261 = vmatpush1.msra.mxu0 0.0
  %262 = vmatprep.subr.mxu0 0.0
  %263 = vmatpush1.msra.mxu0 0.0
  %264 = vmatprep.subr.mxu0 0.0
  %265 = vmatpush1.msra.mxu0 0.0
  %266 = vmatprep.subr.mxu0 0.0
  %267 = vmatpush1.msra.mxu0 0.0
  %268 = vmatprep.subr.mxu0 0.0
  %269 = vmatpush1.msra.mxu0 0.0
  %270 = vmatprep.subr.mxu0 0.0
  %271 = vmatpush1.msra.mxu0 0.0
  %272 = vmatprep.subr.mxu0 0.0
  %273 = vmatpush1.msra.mxu0 0.0
  %274 = vmatprep.subr.mxu0 0.0
  %275 = vmatpush1.msra.mxu0 0.0
  %276 = vmatprep.subr.mxu0 0.0
  %277 = vmatpush1.msra.mxu0 0.0
  %278 = vmatprep.subr.mxu0 0.0
  %279 = vmatpush1.msra.mxu0 0.0
  %280 = vmatprep.subr.mxu0 0.0
  %281 = vmatpush1.msra.mxu0 0.0
  %282 = vmatprep.subr.mxu0 0.0
  %283 = vmatpush1.msra.mxu0 0.0
  %284 = vmatprep.subr.mxu0 0.0
  %285 = vmatpush1.msra.mxu0 0.0
  %286 = vmatprep.subr.mxu0 0.0
  %287 = vmatpush1.msra.mxu0 0.0
  %288 = vmatprep.subr.mxu0 0.0
  %289 = vmatpush1.msra.mxu0 0.0
  %290 = vmatprep.subr.mxu0 0.0
  %291 = vmatpush1.msra.mxu0 0.0
  %292 = vmatprep.subr.mxu0 0.0
  %293 = vmatpush1.msra.mxu0 0.0
  %294 = vmatprep.subr.mxu0 0.0
  %295 = vmatpush1.msra.mxu0 0.0
  %296 = vmatprep.subr.mxu0 0.0
  %297 = vmatpush1.msra.mxu0 0.0
  %298 = vmatprep.subr.mxu0 0.0
  %299 = vmatpush1.msra.mxu0 0.0
  %300 = vmatprep.subr.mxu0 0.0
  %301 = vmatpush1.msra.mxu0 0.0
  %302 = vmatprep.subr.mxu0 0.0
  %303 = vmatpush1.msra.mxu0 0.0
  %304 = vmatprep.subr.mxu0 0.0
  %305 = vmatpush1.msra.mxu0 0.0
  %306 = vmatprep.subr.mxu0 0.0
  %307 = vmatpush1.msra.mxu0 0.0
  %308 = vmatprep.subr.mxu0 0.0
  %309 = vmatpush1.msra.mxu0 0.0
  %310 = vmatprep.mubr.f32.mxu0 0.0
  %311 = vmatmul.mubr.f32.gmra.mrb[0].mxu0 %v240
  %v312 = vpop.f32.mrb[0].mxu0
  %v313 = vadd.f32 0.0, %v312
  %v314 = vpop.f32.mrb[0].mxu0
  %v315 = vadd.f32 0.0, %v314
  %316 = vdwg.mxu0
  %v317 = vadd.f32 %v224, %v313
  %v318 = vadd.f32 %v226, %v315
  %v319 = vld [vmem:[%s0] sm:$0xff]
  %s320 = scalar_lea.vmem %s1, 24
  %v321 = vld [vmem:[%s320] sm:$0xff]
  %v323 = vcombine.high %v319, %v319
  %324 = vrot.lane.b32.xlu0 %v319, 112
  %v325 = vpop.permute.xlu0 %324
  %326 = vrot.lane.b32.xlu0 %v323, 112
  %v327 = vpop.permute.xlu0 %326
  %vm328 = vcmask 916480
  %v329 = vsel %vm328, %v325, %v327
  %v331 = vsel %vm70, %v321, 0
  %v333 = vsel %vm74, %v329, 0
  %v335 = vsel %vm74, %v327, 0
  %337 = vmatprep.subr.mxu0 %v335
  %338 = vmatpush1.msra.mxu0 %v333
  %339 = vmatprep.subr.mxu0 0.0
  %340 = vmatpush1.msra.mxu0 0.0
  %341 = vmatprep.subr.mxu0 0.0
  %342 = vmatpush1.msra.mxu0 0.0
  %343 = vmatprep.subr.mxu0 0.0
  %344 = vmatpush1.msra.mxu0 0.0
  %345 = vmatprep.subr.mxu0 0.0
  %346 = vmatpush1.msra.mxu0 0.0
  %347 = vmatprep.subr.mxu0 0.0
  %348 = vmatpush1.msra.mxu0 0.0
  %349 = vmatprep.subr.mxu0 0.0
  %350 = vmatpush1.msra.mxu0 0.0
  %351 = vmatprep.subr.mxu0 0.0
  %352 = vmatpush1.msra.mxu0 0.0
  %353 = vmatprep.subr.mxu0 0.0
  %354 = vmatpush1.msra.mxu0 0.0
  %355 = vmatprep.subr.mxu0 0.0
  %356 = vmatpush1.msra.mxu0 0.0
  %357 = vmatprep.subr.mxu0 0.0
  %358 = vmatpush1.msra.mxu0 0.0
  %359 = vmatprep.subr.mxu0 0.0
  %360 = vmatpush1.msra.mxu0 0.0
  %361 = vmatprep.subr.mxu0 0.0
  %362 = vmatpush1.msra.mxu0 0.0
  %363 = vmatprep.subr.mxu0 0.0
  %364 = vmatpush1.msra.mxu0 0.0
  %365 = vmatprep.subr.mxu0 0.0
  %366 = vmatpush1.msra.mxu0 0.0
  %367 = vmatprep.subr.mxu0 0.0
  %368 = vmatpush1.msra.mxu0 0.0
  %369 = vmatprep.subr.mxu0 0.0
  %370 = vmatpush1.msra.mxu0 0.0
  %371 = vmatprep.subr.mxu0 0.0
  %372 = vmatpush1.msra.mxu0 0.0
  %373 = vmatprep.subr.mxu0 0.0
  %374 = vmatpush1.msra.mxu0 0.0
  %375 = vmatprep.subr.mxu0 0.0
  %376 = vmatpush1.msra.mxu0 0.0
  %377 = vmatprep.subr.mxu0 0.0
  %378 = vmatpush1.msra.mxu0 0.0
  %379 = vmatprep.subr.mxu0 0.0
  %380 = vmatpush1.msra.mxu0 0.0
  %381 = vmatprep.subr.mxu0 0.0
  %382 = vmatpush1.msra.mxu0 0.0
  %383 = vmatprep.subr.mxu0 0.0
  %384 = vmatpush1.msra.mxu0 0.0
  %385 = vmatprep.subr.mxu0 0.0
  %386 = vmatpush1.msra.mxu0 0.0
  %387 = vmatprep.subr.mxu0 0.0
  %388 = vmatpush1.msra.mxu0 0.0
  %389 = vmatprep.subr.mxu0 0.0
  %390 = vmatpush1.msra.mxu0 0.0
  %391 = vmatprep.subr.mxu0 0.0
  %392 = vmatpush1.msra.mxu0 0.0
  %393 = vmatprep.subr.mxu0 0.0
  %394 = vmatpush1.msra.mxu0 0.0
  %395 = vmatprep.subr.mxu0 0.0
  %396 = vmatpush1.msra.mxu0 0.0
  %397 = vmatprep.subr.mxu0 0.0
  %398 = vmatpush1.msra.mxu0 0.0
  %399 = vmatprep.subr.mxu0 0.0
  %400 = vmatpush1.msra.mxu0 0.0
  %401 = vmatprep.mubr.f32.mxu0 0.0
  %402 = vmatmul.mubr.f32.gmra.mrb[0].mxu0 %v331
  %v403 = vpop.f32.mrb[0].mxu0
  %v404 = vadd.f32 0.0, %v403
  %v405 = vpop.f32.mrb[0].mxu0
  %v406 = vadd.f32 0.0, %v405
  %407 = vdwg.mxu0
  %v408 = vadd.f32 %v317, %v404
  %v409 = vadd.f32 %v318, %v406
  %v410 = vld [vmem:[%s0] sm:$0xff]
  %s411 = scalar_lea.vmem %s1, 32
  %v412 = vld [vmem:[%s411] sm:$0xff]
  %v414 = vcombine.high %v410, %v410
  %415 = vrot.lane.b32.xlu0 %v410, 111
  %v416 = vpop.permute.xlu0 %415
  %417 = vrot.lane.b32.xlu0 %v414, 111
  %v418 = vpop.permute.xlu0 %417
  %vm419 = vcmask 908288
  %v420 = vsel %vm419, %v416, %v418
  %v422 = vsel %vm70, %v412, 0
  %v424 = vsel %vm74, %v420, 0
  %v426 = vsel %vm74, %v418, 0
  %428 = vmatprep.subr.mxu0 %v426
  %429 = vmatpush1.msra.mxu0 %v424
  %430 = vmatprep.subr.mxu0 0.0
  %431 = vmatpush1.msra.mxu0 0.0
  %432 = vmatprep.subr.mxu0 0.0
  %433 = vmatpush1.msra.mxu0 0.0
  %434 = vmatprep.subr.mxu0 0.0
  %435 = vmatpush1.msra.mxu0 0.0
  %436 = vmatprep.subr.mxu0 0.0
  %437 = vmatpush1.msra.mxu0 0.0
  %438 = vmatprep.subr.mxu0 0.0
  %439 = vmatpush1.msra.mxu0 0.0
  %440 = vmatprep.subr.mxu0 0.0
  %441 = vmatpush1.msra.mxu0 0.0
  %442 = vmatprep.subr.mxu0 0.0
  %443 = vmatpush1.msra.mxu0 0.0
  %444 = vmatprep.subr.mxu0 0.0
  %445 = vmatpush1.msra.mxu0 0.0
  %446 = vmatprep.subr.mxu0 0.0
  %447 = vmatpush1.msra.mxu0 0.0
  %448 = vmatprep.subr.mxu0 0.0
  %449 = vmatpush1.msra.mxu0 0.0
  %450 = vmatprep.subr.mxu0 0.0
  %451 = vmatpush1.msra.mxu0 0.0
  %452 = vmatprep.subr.mxu0 0.0
  %453 = vmatpush1.msra.mxu0 0.0
  %454 = vmatprep.subr.mxu0 0.0
  %455 = vmatpush1.msra.mxu0 0.0
  %456 = vmatprep.subr.mxu0 0.0
  %457 = vmatpush1.msra.mxu0 0.0
  %458 = vmatprep.subr.mxu0 0.0
  %459 = vmatpush1.msra.mxu0 0.0
  %460 = vmatprep.subr.mxu0 0.0
  %461 = vmatpush1.msra.mxu0 0.0
  %462 = vmatprep.subr.mxu0 0.0
  %463 = vmatpush1.msra.mxu0 0.0
  %464 = vmatprep.subr.mxu0 0.0
  %465 = vmatpush1.msra.mxu0 0.0
  %466 = vmatprep.subr.mxu0 0.0
  %467 = vmatpush1.msra.mxu0 0.0
  %468 = vmatprep.subr.mxu0 0.0
  %469 = vmatpush1.msra.mxu0 0.0
  %470 = vmatprep.subr.mxu0 0.0
  %471 = vmatpush1.msra.mxu0 0.0
  %472 = vmatprep.subr.mxu0 0.0
  %473 = vmatpush1.msra.mxu0 0.0
  %474 = vmatprep.subr.mxu0 0.0
  %475 = vmatpush1.msra.mxu0 0.0
  %476 = vmatprep.subr.mxu0 0.0
  %477 = vmatpush1.msra.mxu0 0.0
  %478 = vmatprep.subr.mxu0 0.0
  %479 = vmatpush1.msra.mxu0 0.0
  %480 = vmatprep.subr.mxu0 0.0
  %481 = vmatpush1.msra.mxu0 0.0
  %482 = vmatprep.subr.mxu0 0.0
  %483 = vmatpush1.msra.mxu0 0.0
  %484 = vmatprep.subr.mxu0 0.0
  %485 = vmatpush1.msra.mxu0 0.0
  %486 = vmatprep.subr.mxu0 0.0
  %487 = vmatpush1.msra.mxu0 0.0
  %488 = vmatprep.subr.mxu0 0.0
  %489 = vmatpush1.msra.mxu0 0.0
  %490 = vmatprep.subr.mxu0 0.0
  %491 = vmatpush1.msra.mxu0 0.0
  %492 = vmatprep.mubr.f32.mxu0 0.0
  %493 = vmatmul.mubr.f32.gmra.mrb[0].mxu0 %v422
  %v494 = vpop.f32.mrb[0].mxu0
  %v495 = vadd.f32 0.0, %v494
  %v496 = vpop.f32.mrb[0].mxu0
  %v497 = vadd.f32 0.0, %v496
  %498 = vdwg.mxu0
  %v499 = vadd.f32 %v408, %v495
  %v500 = vadd.f32 %v409, %v497
  %v501 = vld [vmem:[%s0] sm:$0xff]
  %s502 = scalar_lea.vmem %s1, 40
  %v503 = vld [vmem:[%s502] sm:$0xff]
  %v505 = vcombine.high %v501, %v501
  %506 = vrot.lane.b32.xlu0 %v501, 110
  %v507 = vpop.permute.xlu0 %506
  %508 = vrot.lane.b32.xlu0 %v505, 110
  %v509 = vpop.permute.xlu0 %508
  %vm510 = vcmask 900096
  %v511 = vsel %vm510, %v507, %v509
  %v513 = vsel %vm70, %v503, 0
  %v515 = vsel %vm74, %v511, 0
  %v517 = vsel %vm74, %v509, 0
  %519 = vmatprep.subr.mxu0 %v517
  %520 = vmatpush1.msra.mxu0 %v515
  %521 = vmatprep.subr.mxu0 0.0
  %522 = vmatpush1.msra.mxu0 0.0
  %523 = vmatprep.subr.mxu0 0.0
  %524 = vmatpush1.msra.mxu0 0.0
  %525 = vmatprep.subr.mxu0 0.0
  %526 = vmatpush1.msra.mxu0 0.0
  %527 = vmatprep.subr.mxu0 0.0
  %528 = vmatpush1.msra.mxu0 0.0
  %529 = vmatprep.subr.mxu0 0.0
  %530 = vmatpush1.msra.mxu0 0.0
  %531 = vmatprep.subr.mxu0 0.0
  %532 = vmatpush1.msra.mxu0 0.0
  %533 = vmatprep.subr.mxu0 0.0
  %534 = vmatpush1.msra.mxu0 0.0
  %535 = vmatprep.subr.mxu0 0.0
  %536 = vmatpush1.msra.mxu0 0.0
  %537 = vmatprep.subr.mxu0 0.0
  %538 = vmatpush1.msra.mxu0 0.0
  %539 = vmatprep.subr.mxu0 0.0
  %540 = vmatpush1.msra.mxu0 0.0
  %541 = vmatprep.subr.mxu0 0.0
  %542 = vmatpush1.msra.mxu0 0.0
  %543 = vmatprep.subr.mxu0 0.0
  %544 = vmatpush1.msra.mxu0 0.0
  %545 = vmatprep.subr.mxu0 0.0
  %546 = vmatpush1.msra.mxu0 0.0
  %547 = vmatprep.subr.mxu0 0.0
  %548 = vmatpush1.msra.mxu0 0.0
  %549 = vmatprep.subr.mxu0 0.0
  %550 = vmatpush1.msra.mxu0 0.0
  %551 = vmatprep.subr.mxu0 0.0
  %552 = vmatpush1.msra.mxu0 0.0
  %553 = vmatprep.subr.mxu0 0.0
  %554 = vmatpush1.msra.mxu0 0.0
  %555 = vmatprep.subr.mxu0 0.0
  %556 = vmatpush1.msra.mxu0 0.0
  %557 = vmatprep.subr.mxu0 0.0
  %558 = vmatpush1.msra.mxu0 0.0
  %559 = vmatprep.subr.mxu0 0.0
  %560 = vmatpush1.msra.mxu0 0.0
  %561 = vmatprep.subr.mxu0 0.0
  %562 = vmatpush1.msra.mxu0 0.0
  %563 = vmatprep.subr.mxu0 0.0
  %564 = vmatpush1.msra.mxu0 0.0
  %565 = vmatprep.subr.mxu0 0.0
  %566 = vmatpush1.msra.mxu0 0.0
  %567 = vmatprep.subr.mxu0 0.0
  %568 = vmatpush1.msra.mxu0 0.0
  %569 = vmatprep.subr.mxu0 0.0
  %570 = vmatpush1.msra.mxu0 0.0
  %571 = vmatprep.subr.mxu0 0.0
  %572 = vmatpush1.msra.mxu0 0.0
  %573 = vmatprep.subr.mxu0 0.0
  %574 = vmatpush1.msra.mxu0 0.0
  %575 = vmatprep.subr.mxu0 0.0
  %576 = vmatpush1.msra.mxu0 0.0
  %577 = vmatprep.subr.mxu0 0.0
  %578 = vmatpush1.msra.mxu0 0.0
  %579 = vmatprep.subr.mxu0 0.0
  %580 = vmatpush1.msra.mxu0 0.0
  %581 = vmatprep.subr.mxu0 0.0
  %582 = vmatpush1.msra.mxu0 0.0
  %583 = vmatprep.mubr.f32.mxu0 0.0
  %584 = vmatmul.mubr.f32.gmra.mrb[0].mxu0 %v513
  %v585 = vpop.f32.mrb[0].mxu0
  %v586 = vadd.f32 0.0, %v585
  %v587 = vpop.f32.mrb[0].mxu0
  %v588 = vadd.f32 0.0, %v587
  %589 = vdwg.mxu0
  %v590 = vadd.f32 %v499, %v586
  %v591 = vadd.f32 %v500, %v588
  %v592 = vld [vmem:[%s0] sm:$0xff]
  %s593 = scalar_lea.vmem %s1, 48
  %v594 = vld [vmem:[%s593] sm:$0xff]
  %v596 = vcombine.high %v592, %v592
  %597 = vrot.lane.b32.xlu0 %v592, 96
  %v598 = vpop.permute.xlu0 %597
  %599 = vrot.lane.b32.xlu0 %v596, 96
  %v600 = vpop.permute.xlu0 %599
  %vm601 = vcmask 785408
  %v602 = vsel %vm601, %v598, %v600
  %v604 = vsel %vm70, %v594, 0
  %v606 = vsel %vm74, %v602, 0
  %v608 = vsel %vm74, %v600, 0
  %610 = vmatprep.subr.mxu0 %v608
  %611 = vmatpush1.msra.mxu0 %v606
  %612 = vmatprep.subr.mxu0 0.0
  %613 = vmatpush1.msra.mxu0 0.0
  %614 = vmatprep.subr.mxu0 0.0
  %615 = vmatpush1.msra.mxu0 0.0
  %616 = vmatprep.subr.mxu0 0.0
  %617 = vmatpush1.msra.mxu0 0.0
  %618 = vmatprep.subr.mxu0 0.0
  %619 = vmatpush1.msra.mxu0 0.0
  %620 = vmatprep.subr.mxu0 0.0
  %621 = vmatpush1.msra.mxu0 0.0
  %622 = vmatprep.subr.mxu0 0.0
  %623 = vmatpush1.msra.mxu0 0.0
  %624 = vmatprep.subr.mxu0 0.0
  %625 = vmatpush1.msra.mxu0 0.0
  %626 = vmatprep.subr.mxu0 0.0
  %627 = vmatpush1.msra.mxu0 0.0
  %628 = vmatprep.subr.mxu0 0.0
  %629 = vmatpush1.msra.mxu0 0.0
  %630 = vmatprep.subr.mxu0 0.0
  %631 = vmatpush1.msra.mxu0 0.0
  %632 = vmatprep.subr.mxu0 0.0
  %633 = vmatpush1.msra.mxu0 0.0
  %634 = vmatprep.subr.mxu0 0.0
  %635 = vmatpush1.msra.mxu0 0.0
  %636 = vmatprep.subr.mxu0 0.0
  %637 = vmatpush1.msra.mxu0 0.0
  %638 = vmatprep.subr.mxu0 0.0
  %639 = vmatpush1.msra.mxu0 0.0
  %640 = vmatprep.subr.mxu0 0.0
  %641 = vmatpush1.msra.mxu0 0.0
  %642 = vmatprep.subr.mxu0 0.0
  %643 = vmatpush1.msra.mxu0 0.0
  %644 = vmatprep.subr.mxu0 0.0
  %645 = vmatpush1.msra.mxu0 0.0
  %646 = vmatprep.subr.mxu0 0.0
  %647 = vmatpush1.msra.mxu0 0.0
  %648 = vmatprep.subr.mxu0 0.0
  %649 = vmatpush1.msra.mxu0 0.0
  %650 = vmatprep.subr.mxu0 0.0
  %651 = vmatpush1.msra.mxu0 0.0
  %652 = vmatprep.subr.mxu0 0.0
  %653 = vmatpush1.msra.mxu0 0.0
  %654 = vmatprep.subr.mxu0 0.0
  %655 = vmatpush1.msra.mxu0 0.0
  %656 = vmatprep.subr.mxu0 0.0
  %657 = vmatpush1.msra.mxu0 0.0
  %658 = vmatprep.subr.mxu0 0.0
  %659 = vmatpush1.msra.mxu0 0.0
  %660 = vmatprep.subr.mxu0 0.0
  %661 = vmatpush1.msra.mxu0 0.0
  %662 = vmatprep.subr.mxu0 0.0
  %663 = vmatpush1.msra.mxu0 0.0
  %664 = vmatprep.subr.mxu0 0.0
  %665 = vmatpush1.msra.mxu0 0.0
  %666 = vmatprep.subr.mxu0 0.0
  %667 = vmatpush1.msra.mxu0 0.0
  %668 = vmatprep.subr.mxu0 0.0
  %669 = vmatpush1.msra.mxu0 0.0
  %670 = vmatprep.subr.mxu0 0.0
  %671 = vmatpush1.msra.mxu0 0.0
  %672 = vmatprep.subr.mxu0 0.0
  %673 = vmatpush1.msra.mxu0 0.0
  %674 = vmatprep.mubr.f32.mxu0 0.0
  %675 = vmatmul.mubr.f32.gmra.mrb[0].mxu0 %v604
  %v676 = vpop.f32.mrb[0].mxu0
  %v677 = vadd.f32 0.0, %v676
  %v678 = vpop.f32.mrb[0].mxu0
  %v679 = vadd.f32 0.0, %v678
  %680 = vdwg.mxu0
  %v681 = vadd.f32 %v590, %v677
  %v682 = vadd.f32 %v591, %v679
  %v683 = vld [vmem:[%s0] sm:$0xff]
  %s684 = scalar_lea.vmem %s1, 56
  %v685 = vld [vmem:[%s684] sm:$0xff]
  %v687 = vcombine.high %v683, %v683
  %688 = vrot.lane.b32.xlu0 %v683, 95
  %v689 = vpop.permute.xlu0 %688
  %690 = vrot.lane.b32.xlu0 %v687, 95
  %v691 = vpop.permute.xlu0 %690
  %vm692 = vcmask 777216
  %v693 = vsel %vm692, %v689, %v691
  %v695 = vsel %vm70, %v685, 0
  %v697 = vsel %vm74, %v693, 0
  %v699 = vsel %vm74, %v691, 0
  %701 = vmatprep.subr.mxu0 %v699
  %702 = vmatpush1.msra.mxu0 %v697
  %703 = vmatprep.subr.mxu0 0.0
  %704 = vmatpush1.msra.mxu0 0.0
  %705 = vmatprep.subr.mxu0 0.0
  %706 = vmatpush1.msra.mxu0 0.0
  %707 = vmatprep.subr.mxu0 0.0
  %708 = vmatpush1.msra.mxu0 0.0
  %709 = vmatprep.subr.mxu0 0.0
  %710 = vmatpush1.msra.mxu0 0.0
  %711 = vmatprep.subr.mxu0 0.0
  %712 = vmatpush1.msra.mxu0 0.0
  %713 = vmatprep.subr.mxu0 0.0
  %714 = vmatpush1.msra.mxu0 0.0
  %715 = vmatprep.subr.mxu0 0.0
  %716 = vmatpush1.msra.mxu0 0.0
  %717 = vmatprep.subr.mxu0 0.0
  %718 = vmatpush1.msra.mxu0 0.0
  %719 = vmatprep.subr.mxu0 0.0
  %720 = vmatpush1.msra.mxu0 0.0
  %721 = vmatprep.subr.mxu0 0.0
  %722 = vmatpush1.msra.mxu0 0.0
  %723 = vmatprep.subr.mxu0 0.0
  %724 = vmatpush1.msra.mxu0 0.0
  %725 = vmatprep.subr.mxu0 0.0
  %726 = vmatpush1.msra.mxu0 0.0
  %727 = vmatprep.subr.mxu0 0.0
  %728 = vmatpush1.msra.mxu0 0.0
  %729 = vmatprep.subr.mxu0 0.0
  %730 = vmatpush1.msra.mxu0 0.0
  %731 = vmatprep.subr.mxu0 0.0
  %732 = vmatpush1.msra.mxu0 0.0
  %733 = vmatprep.subr.mxu0 0.0
  %734 = vmatpush1.msra.mxu0 0.0
  %735 = vmatprep.subr.mxu0 0.0
  %736 = vmatpush1.msra.mxu0 0.0
  %737 = vmatprep.subr.mxu0 0.0
  %738 = vmatpush1.msra.mxu0 0.0
  %739 = vmatprep.subr.mxu0 0.0
  %740 = vmatpush1.msra.mxu0 0.0
  %741 = vmatprep.subr.mxu0 0.0
  %742 = vmatpush1.msra.mxu0 0.0
  %743 = vmatprep.subr.mxu0 0.0
  %744 = vmatpush1.msra.mxu0 0.0
  %745 = vmatprep.subr.mxu0 0.0
  %746 = vmatpush1.msra.mxu0 0.0
  %747 = vmatprep.subr.mxu0 0.0
  %748 = vmatpush1.msra.mxu0 0.0
  %749 = vmatprep.subr.mxu0 0.0
  %750 = vmatpush1.msra.mxu0 0.0
  %751 = vmatprep.subr.mxu0 0.0
  %752 = vmatpush1.msra.mxu0 0.0
  %753 = vmatprep.subr.mxu0 0.0
  %754 = vmatpush1.msra.mxu0 0.0
  %755 = vmatprep.subr.mxu0 0.0
  %756 = vmatpush1.msra.mxu0 0.0
  %757 = vmatprep.subr.mxu0 0.0
  %758 = vmatpush1.msra.mxu0 0.0
  %759 = vmatprep.subr.mxu0 0.0
  %760 = vmatpush1.msra.mxu0 0.0
  %761 = vmatprep.subr.mxu0 0.0
  %762 = vmatpush1.msra.mxu0 0.0
  %763 = vmatprep.subr.mxu0 0.0
  %764 = vmatpush1.msra.mxu0 0.0
  %765 = vmatprep.mubr.f32.mxu0 0.0
  %766 = vmatmul.mubr.f32.gmra.mrb[0].mxu0 %v695
  %v767 = vpop.f32.mrb[0].mxu0
  %v768 = vadd.f32 0.0, %v767
  %v769 = vpop.f32.mrb[0].mxu0
  %v770 = vadd.f32 0.0, %v769
  %771 = vdwg.mxu0
  %v772 = vadd.f32 %v681, %v768
  %v773 = vadd.f32 %v682, %v770
  %v774 = vld [vmem:[%s0] sm:$0xff]
  %s775 = scalar_lea.vmem %s1, 64
  %v776 = vld [vmem:[%s775] sm:$0xff]
  %v778 = vcombine.high %v774, %v774
  %779 = vrot.lane.b32.xlu0 %v774, 94
  %v780 = vpop.permute.xlu0 %779
  %781 = vrot.lane.b32.xlu0 %v778, 94
  %v782 = vpop.permute.xlu0 %781
  %vm783 = vcmask 769024
  %v784 = vsel %vm783, %v780, %v782
  %v786 = vsel %vm70, %v776, 0
  %v788 = vsel %vm74, %v784, 0
  %v790 = vsel %vm74, %v782, 0
  %792 = vmatprep.subr.mxu0 %v790
  %793 = vmatpush1.msra.mxu0 %v788
  %794 = vmatprep.subr.mxu0 0.0
  %795 = vmatpush1.msra.mxu0 0.0
  %796 = vmatprep.subr.mxu0 0.0
  %797 = vmatpush1.msra.mxu0 0.0
  %798 = vmatprep.subr.mxu0 0.0
  %799 = vmatpush1.msra.mxu0 0.0
  %800 = vmatprep.subr.mxu0 0.0
  %801 = vmatpush1.msra.mxu0 0.0
  %802 = vmatprep.subr.mxu0 0.0
  %803 = vmatpush1.msra.mxu0 0.0
  %804 = vmatprep.subr.mxu0 0.0
  %805 = vmatpush1.msra.mxu0 0.0
  %806 = vmatprep.subr.mxu0 0.0
  %807 = vmatpush1.msra.mxu0 0.0
  %808 = vmatprep.subr.mxu0 0.0
  %809 = vmatpush1.msra.mxu0 0.0
  %810 = vmatprep.subr.mxu0 0.0
  %811 = vmatpush1.msra.mxu0 0.0
  %812 = vmatprep.subr.mxu0 0.0
  %813 = vmatpush1.msra.mxu0 0.0
  %814 = vmatprep.subr.mxu0 0.0
  %815 = vmatpush1.msra.mxu0 0.0
  %816 = vmatprep.subr.mxu0 0.0
  %817 = vmatpush1.msra.mxu0 0.0
  %818 = vmatprep.subr.mxu0 0.0
  %819 = vmatpush1.msra.mxu0 0.0
  %820 = vmatprep.subr.mxu0 0.0
  %821 = vmatpush1.msra.mxu0 0.0
  %822 = vmatprep.subr.mxu0 0.0
  %823 = vmatpush1.msra.mxu0 0.0
  %824 = vmatprep.subr.mxu0 0.0
  %825 = vmatpush1.msra.mxu0 0.0
  %826 = vmatprep.subr.mxu0 0.0
  %827 = vmatpush1.msra.mxu0 0.0
  %828 = vmatprep.subr.mxu0 0.0
  %829 = vmatpush1.msra.mxu0 0.0
  %830 = vmatprep.subr.mxu0 0.0
  %831 = vmatpush1.msra.mxu0 0.0
  %832 = vmatprep.subr.mxu0 0.0
  %833 = vmatpush1.msra.mxu0 0.0
  %834 = vmatprep.subr.mxu0 0.0
  %835 = vmatpush1.msra.mxu0 0.0
  %836 = vmatprep.subr.mxu0 0.0
  %837 = vmatpush1.msra.mxu0 0.0
  %838 = vmatprep.subr.mxu0 0.0
  %839 = vmatpush1.msra.mxu0 0.0
  %840 = vmatprep.subr.mxu0 0.0
  %841 = vmatpush1.msra.mxu0 0.0
  %842 = vmatprep.subr.mxu0 0.0
  %843 = vmatpush1.msra.mxu0 0.0
  %844 = vmatprep.subr.mxu0 0.0
  %845 = vmatpush1.msra.mxu0 0.0
  %846 = vmatprep.subr.mxu0 0.0
  %847 = vmatpush1.msra.mxu0 0.0
  %848 = vmatprep.subr.mxu0 0.0
  %849 = vmatpush1.msra.mxu0 0.0
  %850 = vmatprep.subr.mxu0 0.0
  %851 = vmatpush1.msra.mxu0 0.0
  %852 = vmatprep.subr.mxu0 0.0
  %853 = vmatpush1.msra.mxu0 0.0
  %854 = vmatprep.subr.mxu0 0.0
  %855 = vmatpush1.msra.mxu0 0.0
  %856 = vmatprep.mubr.f32.mxu0 0.0
  %857 = vmatmul.mubr.f32.gmra.mrb[0].mxu0 %v786
  %v858 = vpop.f32.mrb[0].mxu0
  %v859 = vadd.f32 0.0, %v858
  %v860 = vpop.f32.mrb[0].mxu0
  %v861 = vadd.f32 0.0, %v860
  %862 = vdwg.mxu0
  %v863 = vadd.f32 %v772, %v859
  %v864 = vadd.f32 %v773, %v861
  %866 = vset.pattern.permute.xlu0 0
  %867 = vperm.xlu0 %866, %v17
  %v868 = vpop.permute.xlu0 %867
  %v870 = vadd.f32 %v863, %v868
  %v871 = vadd.f32 %v864, %v868
  %872 = vst [vmem:[%s3] sm:$0xff] %v870
  %873 = vst.msk [vmem:[%s3 + $0x8] sm:$0xff] %vm783, %v871
  %v874 = vmul.f32 %v870, %v56
  %v875 = vmul.f32 %v871, %v57
  %v876 = vld [vmem:[%s4] sm:$0xff]
  %v877 = vsel %vm783, %v875, 0.0
  %v878 = vadd.f32 %v874, %v877
  %879 = vadd.xlane.f32.xlu0 %v878
  %v880 = vpop.xlane.xlu0 %879
  %v881 = vadd.f32 %v876, %v880
  %vm882 = vcmask 7168
  %883 = vst.msk [vmem:[%s4] sm:$0xff] %vm882, %v881
  %v884 = vld [vmem:[%s5] sm:$0xff]
  %v885 = vmul.f32 %v874, %v874
  %v886 = vmul.f32 %v875, %v875
  %v887 = vsel %vm783, %v886, 0.0
  %v888 = vadd.f32 %v885, %v887
  %889 = vadd.xlane.f32.xlu0 %v888
  %v890 = vpop.xlane.xlu0 %889
  %v891 = vadd.f32 %v884, %v890
  %892 = vst.msk [vmem:[%s5] sm:$0xff] %vm882, %v891
  %s893 = scalar_lea.vmem %s0, 8
  %v894 = vld [vmem:[%s893] sm:$0xff]
  %v895 = vld [vmem:[%s1] sm:$0xff]
  %v896 = vld [vmem:[%s60] sm:$0xff]
  %v898 = vcombine.high %v894, %v894
  %899 = vrot.lane.b32.xlu0 %v894, 127
  %v900 = vpop.permute.xlu0 %899
  %901 = vrot.lane.b32.xlu0 %v898, 127
  %v902 = vpop.permute.xlu0 %901
  %v903 = vsel %vm68, %v900, %v902
  %v905 = vsel %vm70, %v896, 0
  %v907 = vsel %vm74, %v903, 0
  %v909 = vsel %vm74, %v902, 0
  %911 = vmatprep.subr.mxu0 %v909
  %912 = vmatpush1.msra.mxu0 %v907
  %913 = vmatprep.subr.mxu0 0.0
  %914 = vmatpush1.msra.mxu0 0.0
  %915 = vmatprep.subr.mxu0 0.0
  %916 = vmatpush1.msra.mxu0 0.0
  %917 = vmatprep.subr.mxu0 0.0
  %918 = vmatpush1.msra.mxu0 0.0
  %919 = vmatprep.subr.mxu0 0.0
  %920 = vmatpush1.msra.mxu0 0.0
  %921 = vmatprep.subr.mxu0 0.0
  %922 = vmatpush1.msra.mxu0 0.0
  %923 = vmatprep.subr.mxu0 0.0
  %924 = vmatpush1.msra.mxu0 0.0
  %925 = vmatprep.subr.mxu0 0.0
  %926 = vmatpush1.msra.mxu0 0.0
  %927 = vmatprep.subr.mxu0 0.0
  %928 = vmatpush1.msra.mxu0 0.0
  %929 = vmatprep.subr.mxu0 0.0
  %930 = vmatpush1.msra.mxu0 0.0
  %931 = vmatprep.subr.mxu0 0.0
  %932 = vmatpush1.msra.mxu0 0.0
  %933 = vmatprep.subr.mxu0 0.0
  %934 = vmatpush1.msra.mxu0 0.0
  %935 = vmatprep.subr.mxu0 0.0
  %936 = vmatpush1.msra.mxu0 0.0
  %937 = vmatprep.subr.mxu0 0.0
  %938 = vmatpush1.msra.mxu0 0.0
  %939 = vmatprep.subr.mxu0 0.0
  %940 = vmatpush1.msra.mxu0 0.0
  %941 = vmatprep.subr.mxu0 0.0
  %942 = vmatpush1.msra.mxu0 0.0
  %943 = vmatprep.subr.mxu0 0.0
  %944 = vmatpush1.msra.mxu0 0.0
  %945 = vmatprep.subr.mxu0 0.0
  %946 = vmatpush1.msra.mxu0 0.0
  %947 = vmatprep.subr.mxu0 0.0
  %948 = vmatpush1.msra.mxu0 0.0
  %949 = vmatprep.subr.mxu0 0.0
  %950 = vmatpush1.msra.mxu0 0.0
  %951 = vmatprep.subr.mxu0 0.0
  %952 = vmatpush1.msra.mxu0 0.0
  %953 = vmatprep.subr.mxu0 0.0
  %954 = vmatpush1.msra.mxu0 0.0
  %955 = vmatprep.subr.mxu0 0.0
  %956 = vmatpush1.msra.mxu0 0.0
  %957 = vmatprep.subr.mxu0 0.0
  %958 = vmatpush1.msra.mxu0 0.0
  %959 = vmatprep.subr.mxu0 0.0
  %960 = vmatpush1.msra.mxu0 0.0
  %961 = vmatprep.subr.mxu0 0.0
  %962 = vmatpush1.msra.mxu0 0.0
  %963 = vmatprep.subr.mxu0 0.0
  %964 = vmatpush1.msra.mxu0 0.0
  %965 = vmatprep.subr.mxu0 0.0
  %966 = vmatpush1.msra.mxu0 0.0
  %967 = vmatprep.subr.mxu0 0.0
  %968 = vmatpush1.msra.mxu0 0.0
  %969 = vmatprep.subr.mxu0 0.0
  %970 = vmatpush1.msra.mxu0 0.0
  %971 = vmatprep.subr.mxu0 0.0
  %972 = vmatpush1.msra.mxu0 0.0
  %973 = vmatprep.subr.mxu0 0.0
  %974 = vmatpush1.msra.mxu0 0.0
  %975 = vmatprep.mubr.f32.mxu0 0.0
  %976 = vmatmul.mubr.f32.gmra.mrb[0].mxu0 %v905
  %v977 = vpop.f32.mrb[0].mxu0
  %v978 = vadd.f32 0.0, %v977
  %v979 = vpop.f32.mrb[0].mxu0
  %v980 = vadd.f32 0.0, %v979
  %981 = vdwg.mxu0
  %v983 = vsel %vm70, %v895, 0
  %v985 = vsel %vm74, %v894, 0
  %v987 = vsel %vm74, %v898, 0
  %989 = vmatprep.subr.mxu0 %v987
  %990 = vmatpush1.msra.mxu0 %v985
  %991 = vmatprep.subr.mxu0 0.0
  %992 = vmatpush1.msra.mxu0 0.0
  %993 = vmatprep.subr.mxu0 0.0
  %994 = vmatpush1.msra.mxu0 0.0
  %995 = vmatprep.subr.mxu0 0.0
  %996 = vmatpush1.msra.mxu0 0.0
  %997 = vmatprep.subr.mxu0 0.0
  %998 = vmatpush1.msra.mxu0 0.0
  %999 = vmatprep.subr.mxu0 0.0
  %1000 = vmatpush1.msra.mxu0 0.0
  %1001 = vmatprep.subr.mxu0 0.0
  %1002 = vmatpush1.msra.mxu0 0.0
  %1003 = vmatprep.subr.mxu0 0.0
  %1004 = vmatpush1.msra.mxu0 0.0
  %1005 = vmatprep.subr.mxu0 0.0
  %1006 = vmatpush1.msra.mxu0 0.0
  %1007 = vmatprep.subr.mxu0 0.0
  %1008 = vmatpush1.msra.mxu0 0.0
  %1009 = vmatprep.subr.mxu0 0.0
  %1010 = vmatpush1.msra.mxu0 0.0
  %1011 = vmatprep.subr.mxu0 0.0
  %1012 = vmatpush1.msra.mxu0 0.0
  %1013 = vmatprep.subr.mxu0 0.0
  %1014 = vmatpush1.msra.mxu0 0.0
  %1015 = vmatprep.subr.mxu0 0.0
  %1016 = vmatpush1.msra.mxu0 0.0
  %1017 = vmatprep.subr.mxu0 0.0
  %1018 = vmatpush1.msra.mxu0 0.0
  %1019 = vmatprep.subr.mxu0 0.0
  %1020 = vmatpush1.msra.mxu0 0.0
  %1021 = vmatprep.subr.mxu0 0.0
  %1022 = vmatpush1.msra.mxu0 0.0
  %1023 = vmatprep.subr.mxu0 0.0
  %1024 = vmatpush1.msra.mxu0 0.0
  %1025 = vmatprep.subr.mxu0 0.0
  %1026 = vmatpush1.msra.mxu0 0.0
  %1027 = vmatprep.subr.mxu0 0.0
  %1028 = vmatpush1.msra.mxu0 0.0
  %1029 = vmatprep.subr.mxu0 0.0
  %1030 = vmatpush1.msra.mxu0 0.0
  %1031 = vmatprep.subr.mxu0 0.0
  %1032 = vmatpush1.msra.mxu0 0.0
  %1033 = vmatprep.subr.mxu0 0.0
  %1034 = vmatpush1.msra.mxu0 0.0
  %1035 = vmatprep.subr.mxu0 0.0
  %1036 = vmatpush1.msra.mxu0 0.0
  %1037 = vmatprep.subr.mxu0 0.0
  %1038 = vmatpush1.msra.mxu0 0.0
  %1039 = vmatprep.subr.mxu0 0.0
  %1040 = vmatpush1.msra.mxu0 0.0
  %1041 = vmatprep.subr.mxu0 0.0
  %1042 = vmatpush1.msra.mxu0 0.0
  %1043 = vmatprep.subr.mxu0 0.0
  %1044 = vmatpush1.msra.mxu0 0.0
  %1045 = vmatprep.subr.mxu0 0.0
  %1046 = vmatpush1.msra.mxu0 0.0
  %1047 = vmatprep.subr.mxu0 0.0
  %1048 = vmatpush1.msra.mxu0 0.0
  %1049 = vmatprep.subr.mxu0 0.0
  %1050 = vmatpush1.msra.mxu0 0.0
  %1051 = vmatprep.subr.mxu0 0.0
  %1052 = vmatpush1.msra.mxu0 0.0
  %1053 = vmatprep.mubr.f32.mxu0 0.0
  %1054 = vmatmul.mubr.f32.gmra.mrb[0].mxu0 %v983
  %v1055 = vpop.f32.mrb[0].mxu0
  %v1056 = vadd.f32 %v978, %v1055
  %v1057 = vpop.f32.mrb[0].mxu0
  %v1058 = vadd.f32 %v980, %v1057
  %1059 = vdwg.mxu0
  %v1060 = vld [vmem:[%s893] sm:$0xff]
  %v1061 = vld [vmem:[%s229] sm:$0xff]
  %v1063 = vcombine.high %v1060, %v1060
  %1064 = vrot.lane.b32.xlu0 %v1060, 126
  %v1065 = vpop.permute.xlu0 %1064
  %1066 = vrot.lane.b32.xlu0 %v1063, 126
  %v1067 = vpop.permute.xlu0 %1066
  %v1068 = vsel %vm237, %v1065, %v1067
  %v1070 = vsel %vm70, %v1061, 0
  %v1072 = vsel %vm74, %v1068, 0
  %v1074 = vsel %vm74, %v1067, 0
  %1076 = vmatprep.subr.mxu0 %v1074
  %1077 = vmatpush1.msra.mxu0 %v1072
  %1078 = vmatprep.subr.mxu0 0.0
  %1079 = vmatpush1.msra.mxu0 0.0
  %1080 = vmatprep.subr.mxu0 0.0
  %1081 = vmatpush1.msra.mxu0 0.0
  %1082 = vmatprep.subr.mxu0 0.0
  %1083 = vmatpush1.msra.mxu0 0.0
  %1084 = vmatprep.subr.mxu0 0.0
  %1085 = vmatpush1.msra.mxu0 0.0
  %1086 = vmatprep.subr.mxu0 0.0
  %1087 = vmatpush1.msra.mxu0 0.0
  %1088 = vmatprep.subr.mxu0 0.0
  %1089 = vmatpush1.msra.mxu0 0.0
  %1090 = vmatprep.subr.mxu0 0.0
  %1091 = vmatpush1.msra.mxu0 0.0
  %1092 = vmatprep.subr.mxu0 0.0
  %1093 = vmatpush1.msra.mxu0 0.0
  %1094 = vmatprep.subr.mxu0 0.0
  %1095 = vmatpush1.msra.mxu0 0.0
  %1096 = vmatprep.subr.mxu0 0.0
  %1097 = vmatpush1.msra.mxu0 0.0
  %1098 = vmatprep.subr.mxu0 0.0
  %1099 = vmatpush1.msra.mxu0 0.0
  %1100 = vmatprep.subr.mxu0 0.0
  %1101 = vmatpush1.msra.mxu0 0.0
  %1102 = vmatprep.subr.mxu0 0.0
  %1103 = vmatpush1.msra.mxu0 0.0
  %1104 = vmatprep.subr.mxu0 0.0
  %1105 = vmatpush1.msra.mxu0 0.0
  %1106 = vmatprep.subr.mxu0 0.0
  %1107 = vmatpush1.msra.mxu0 0.0
  %1108 = vmatprep.subr.mxu0 0.0
  %1109 = vmatpush1.msra.mxu0 0.0
  %1110 = vmatprep.subr.mxu0 0.0
  %1111 = vmatpush1.msra.mxu0 0.0
  %1112 = vmatprep.subr.mxu0 0.0
  %1113 = vmatpush1.msra.mxu0 0.0
  %1114 = vmatprep.subr.mxu0 0.0
  %1115 = vmatpush1.msra.mxu0 0.0
  %1116 = vmatprep.subr.mxu0 0.0
  %1117 = vmatpush1.msra.mxu0 0.0
  %1118 = vmatprep.subr.mxu0 0.0
  %1119 = vmatpush1.msra.mxu0 0.0
  %1120 = vmatprep.subr.mxu0 0.0
  %1121 = vmatpush1.msra.mxu0 0.0
  %1122 = vmatprep.subr.mxu0 0.0
  %1123 = vmatpush1.msra.mxu0 0.0
  %1124 = vmatprep.subr.mxu0 0.0
  %1125 = vmatpush1.msra.mxu0 0.0
  %1126 = vmatprep.subr.mxu0 0.0
  %1127 = vmatpush1.msra.mxu0 0.0
  %1128 = vmatprep.subr.mxu0 0.0
  %1129 = vmatpush1.msra.mxu0 0.0
  %1130 = vmatprep.subr.mxu0 0.0
  %1131 = vmatpush1.msra.mxu0 0.0
  %1132 = vmatprep.subr.mxu0 0.0
  %1133 = vmatpush1.msra.mxu0 0.0
  %1134 = vmatprep.subr.mxu0 0.0
  %1135 = vmatpush1.msra.mxu0 0.0
  %1136 = vmatprep.subr.mxu0 0.0
  %1137 = vmatpush1.msra.mxu0 0.0
  %1138 = vmatprep.subr.mxu0 0.0
  %1139 = vmatpush1.msra.mxu0 0.0
  %1140 = vmatprep.mubr.f32.mxu0 0.0
  %1141 = vmatmul.mubr.f32.gmra.mrb[0].mxu0 %v1070
  %v1142 = vpop.f32.mrb[0].mxu0
  %v1143 = vadd.f32 0.0, %v1142
  %v1144 = vpop.f32.mrb[0].mxu0
  %v1145 = vadd.f32 0.0, %v1144
  %1146 = vdwg.mxu0
  %v1147 = vadd.f32 %v1056, %v1143
  %v1148 = vadd.f32 %v1058, %v1145
  %v1149 = vld [vmem:[%s893] sm:$0xff]
  %v1150 = vld [vmem:[%s320] sm:$0xff]
  %v1152 = vcombine.high %v1149, %v1149
  %1153 = vrot.lane.b32.xlu0 %v1149, 112
  %v1154 = vpop.permute.xlu0 %1153
  %1155 = vrot.lane.b32.xlu0 %v1152, 112
  %v1156 = vpop.permute.xlu0 %1155
  %v1157 = vsel %vm328, %v1154, %v1156
  %v1159 = vsel %vm70, %v1150, 0
  %v1161 = vsel %vm74, %v1157, 0
  %v1163 = vsel %vm74, %v1156, 0
  %1165 = vmatprep.subr.mxu0 %v1163
  %1166 = vmatpush1.msra.mxu0 %v1161
  %1167 = vmatprep.subr.mxu0 0.0
  %1168 = vmatpush1.msra.mxu0 0.0
  %1169 = vmatprep.subr.mxu0 0.0
  %1170 = vmatpush1.msra.mxu0 0.0
  %1171 = vmatprep.subr.mxu0 0.0
  %1172 = vmatpush1.msra.mxu0 0.0
  %1173 = vmatprep.subr.mxu0 0.0
  %1174 = vmatpush1.msra.mxu0 0.0
  %1175 = vmatprep.subr.mxu0 0.0
  %1176 = vmatpush1.msra.mxu0 0.0
  %1177 = vmatprep.subr.mxu0 0.0
  %1178 = vmatpush1.msra.mxu0 0.0
  %1179 = vmatprep.subr.mxu0 0.0
  %1180 = vmatpush1.msra.mxu0 0.0
  %1181 = vmatprep.subr.mxu0 0.0
  %1182 = vmatpush1.msra.mxu0 0.0
  %1183 = vmatprep.subr.mxu0 0.0
  %1184 = vmatpush1.msra.mxu0 0.0
  %1185 = vmatprep.subr.mxu0 0.0
  %1186 = vmatpush1.msra.mxu0 0.0
  %1187 = vmatprep.subr.mxu0 0.0
  %1188 = vmatpush1.msra.mxu0 0.0
  %1189 = vmatprep.subr.mxu0 0.0
  %1190 = vmatpush1.msra.mxu0 0.0
  %1191 = vmatprep.subr.mxu0 0.0
  %1192 = vmatpush1.msra.mxu0 0.0
  %1193 = vmatprep.subr.mxu0 0.0
  %1194 = vmatpush1.msra.mxu0 0.0
  %1195 = vmatprep.subr.mxu0 0.0
  %1196 = vmatpush1.msra.mxu0 0.0
  %1197 = vmatprep.subr.mxu0 0.0
  %1198 = vmatpush1.msra.mxu0 0.0
  %1199 = vmatprep.subr.mxu0 0.0
  %1200 = vmatpush1.msra.mxu0 0.0
  %1201 = vmatprep.subr.mxu0 0.0
  %1202 = vmatpush1.msra.mxu0 0.0
  %1203 = vmatprep.subr.mxu0 0.0
  %1204 = vmatpush1.msra.mxu0 0.0
  %1205 = vmatprep.subr.mxu0 0.0
  %1206 = vmatpush1.msra.mxu0 0.0
  %1207 = vmatprep.subr.mxu0 0.0
  %1208 = vmatpush1.msra.mxu0 0.0
  %1209 = vmatprep.subr.mxu0 0.0
  %1210 = vmatpush1.msra.mxu0 0.0
  %1211 = vmatprep.subr.mxu0 0.0
  %1212 = vmatpush1.msra.mxu0 0.0
  %1213 = vmatprep.subr.mxu0 0.0
  %1214 = vmatpush1.msra.mxu0 0.0
  %1215 = vmatprep.subr.mxu0 0.0
  %1216 = vmatpush1.msra.mxu0 0.0
  %1217 = vmatprep.subr.mxu0 0.0
  %1218 = vmatpush1.msra.mxu0 0.0
  %1219 = vmatprep.subr.mxu0 0.0
  %1220 = vmatpush1.msra.mxu0 0.0
  %1221 = vmatprep.subr.mxu0 0.0
  %1222 = vmatpush1.msra.mxu0 0.0
  %1223 = vmatprep.subr.mxu0 0.0
  %1224 = vmatpush1.msra.mxu0 0.0
  %1225 = vmatprep.subr.mxu0 0.0
  %1226 = vmatpush1.msra.mxu0 0.0
  %1227 = vmatprep.subr.mxu0 0.0
  %1228 = vmatpush1.msra.mxu0 0.0
  %1229 = vmatprep.mubr.f32.mxu0 0.0
  %1230 = vmatmul.mubr.f32.gmra.mrb[0].mxu0 %v1159
  %v1231 = vpop.f32.mrb[0].mxu0
  %v1232 = vadd.f32 0.0, %v1231
  %v1233 = vpop.f32.mrb[0].mxu0
  %v1234 = vadd.f32 0.0, %v1233
  %1235 = vdwg.mxu0
  %v1236 = vadd.f32 %v1147, %v1232
  %v1237 = vadd.f32 %v1148, %v1234
  %v1238 = vld [vmem:[%s893] sm:$0xff]
  %v1239 = vld [vmem:[%s411] sm:$0xff]
  %v1241 = vcombine.high %v1238, %v1238
  %1242 = vrot.lane.b32.xlu0 %v1238, 111
  %v1243 = vpop.permute.xlu0 %1242
  %1244 = vrot.lane.b32.xlu0 %v1241, 111
  %v1245 = vpop.permute.xlu0 %1244
  %v1246 = vsel %vm419, %v1243, %v1245
  %v1248 = vsel %vm70, %v1239, 0
  %v1250 = vsel %vm74, %v1246, 0
  %v1252 = vsel %vm74, %v1245, 0
  %1254 = vmatprep.subr.mxu0 %v1252
  %1255 = vmatpush1.msra.mxu0 %v1250
  %1256 = vmatprep.subr.mxu0 0.0
  %1257 = vmatpush1.msra.mxu0 0.0
  %1258 = vmatprep.subr.mxu0 0.0
  %1259 = vmatpush1.msra.mxu0 0.0
  %1260 = vmatprep.subr.mxu0 0.0
  %1261 = vmatpush1.msra.mxu0 0.0
  %1262 = vmatprep.subr.mxu0 0.0
  %1263 = vmatpush1.msra.mxu0 0.0
  %1264 = vmatprep.subr.mxu0 0.0
  %1265 = vmatpush1.msra.mxu0 0.0
  %1266 = vmatprep.subr.mxu0 0.0
  %1267 = vmatpush1.msra.mxu0 0.0
  %1268 = vmatprep.subr.mxu0 0.0
  %1269 = vmatpush1.msra.mxu0 0.0
  %1270 = vmatprep.subr.mxu0 0.0
  %1271 = vmatpush1.msra.mxu0 0.0
  %1272 = vmatprep.subr.mxu0 0.0
  %1273 = vmatpush1.msra.mxu0 0.0
  %1274 = vmatprep.subr.mxu0 0.0
  %1275 = vmatpush1.msra.mxu0 0.0
  %1276 = vmatprep.subr.mxu0 0.0
  %1277 = vmatpush1.msra.mxu0 0.0
  %1278 = vmatprep.subr.mxu0 0.0
  %1279 = vmatpush1.msra.mxu0 0.0
  %1280 = vmatprep.subr.mxu0 0.0
  %1281 = vmatpush1.msra.mxu0 0.0
  %1282 = vmatprep.subr.mxu0 0.0
  %1283 = vmatpush1.msra.mxu0 0.0
  %1284 = vmatprep.subr.mxu0 0.0
  %1285 = vmatpush1.msra.mxu0 0.0
  %1286 = vmatprep.subr.mxu0 0.0
  %1287 = vmatpush1.msra.mxu0 0.0
  %1288 = vmatprep.subr.mxu0 0.0
  %1289 = vmatpush1.msra.mxu0 0.0
  %1290 = vmatprep.subr.mxu0 0.0
  %1291 = vmatpush1.msra.mxu0 0.0
  %1292 = vmatprep.subr.mxu0 0.0
  %1293 = vmatpush1.msra.mxu0 0.0
  %1294 = vmatprep.subr.mxu0 0.0
  %1295 = vmatpush1.msra.mxu0 0.0
  %1296 = vmatprep.subr.mxu0 0.0
  %1297 = vmatpush1.msra.mxu0 0.0
  %1298 = vmatprep.subr.mxu0 0.0
  %1299 = vmatpush1.msra.mxu0 0.0
  %1300 = vmatprep.subr.mxu0 0.0
  %1301 = vmatpush1.msra.mxu0 0.0
  %1302 = vmatprep.subr.mxu0 0.0
  %1303 = vmatpush1.msra.mxu0 0.0
  %1304 = vmatprep.subr.mxu0 0.0
  %1305 = vmatpush1.msra.mxu0 0.0
  %1306 = vmatprep.subr.mxu0 0.0
  %1307 = vmatpush1.msra.mxu0 0.0
  %1308 = vmatprep.subr.mxu0 0.0
  %1309 = vmatpush1.msra.mxu0 0.0
  %1310 = vmatprep.subr.mxu0 0.0
  %1311 = vmatpush1.msra.mxu0 0.0
  %1312 = vmatprep.subr.mxu0 0.0
  %1313 = vmatpush1.msra.mxu0 0.0
  %1314 = vmatprep.subr.mxu0 0.0
  %1315 = vmatpush1.msra.mxu0 0.0
  %1316 = vmatprep.subr.mxu0 0.0
  %1317 = vmatpush1.msra.mxu0 0.0
  %1318 = vmatprep.mubr.f32.mxu0 0.0
  %1319 = vmatmul.mubr.f32.gmra.mrb[0].mxu0 %v1248
  %v1320 = vpop.f32.mrb[0].mxu0
  %v1321 = vadd.f32 0.0, %v1320
  %v1322 = vpop.f32.mrb[0].mxu0
  %v1323 = vadd.f32 0.0, %v1322
  %1324 = vdwg.mxu0
  %v1325 = vadd.f32 %v1236, %v1321
  %v1326 = vadd.f32 %v1237, %v1323
  %v1327 = vld [vmem:[%s893] sm:$0xff]
  %v1328 = vld [vmem:[%s502] sm:$0xff]
  %v1330 = vcombine.high %v1327, %v1327
  %1331 = vrot.lane.b32.xlu0 %v1327, 110
  %v1332 = vpop.permute.xlu0 %1331
  %1333 = vrot.lane.b32.xlu0 %v1330, 110
  %v1334 = vpop.permute.xlu0 %1333
  %v1335 = vsel %vm510, %v1332, %v1334
  %v1337 = vsel %vm70, %v1328, 0
  %v1339 = vsel %vm74, %v1335, 0
  %v1341 = vsel %vm74, %v1334, 0
  %1343 = vmatprep.subr.mxu0 %v1341
  %1344 = vmatpush1.msra.mxu0 %v1339
  %1345 = vmatprep.subr.mxu0 0.0
  %1346 = vmatpush1.msra.mxu0 0.0
  %1347 = vmatprep.subr.mxu0 0.0
  %1348 = vmatpush1.msra.mxu0 0.0
  %1349 = vmatprep.subr.mxu0 0.0
  %1350 = vmatpush1.msra.mxu0 0.0
  %1351 = vmatprep.subr.mxu0 0.0
  %1352 = vmatpush1.msra.mxu0 0.0
  %1353 = vmatprep.subr.mxu0 0.0
  %1354 = vmatpush1.msra.mxu0 0.0
  %1355 = vmatprep.subr.mxu0 0.0
  %1356 = vmatpush1.msra.mxu0 0.0
  %1357 = vmatprep.subr.mxu0 0.0
  %1358 = vmatpush1.msra.mxu0 0.0
  %1359 = vmatprep.subr.mxu0 0.0
  %1360 = vmatpush1.msra.mxu0 0.0
  %1361 = vmatprep.subr.mxu0 0.0
  %1362 = vmatpush1.msra.mxu0 0.0
  %1363 = vmatprep.subr.mxu0 0.0
  %1364 = vmatpush1.msra.mxu0 0.0
  %1365 = vmatprep.subr.mxu0 0.0
  %1366 = vmatpush1.msra.mxu0 0.0
  %1367 = vmatprep.subr.mxu0 0.0
  %1368 = vmatpush1.msra.mxu0 0.0
  %1369 = vmatprep.subr.mxu0 0.0
  %1370 = vmatpush1.msra.mxu0 0.0
  %1371 = vmatprep.subr.mxu0 0.0
  %1372 = vmatpush1.msra.mxu0 0.0
  %1373 = vmatprep.subr.mxu0 0.0
  %1374 = vmatpush1.msra.mxu0 0.0
  %1375 = vmatprep.subr.mxu0 0.0
  %1376 = vmatpush1.msra.mxu0 0.0
  %1377 = vmatprep.subr.mxu0 0.0
  %1378 = vmatpush1.msra.mxu0 0.0
  %1379 = vmatprep.subr.mxu0 0.0
  %1380 = vmatpush1.msra.mxu0 0.0
  %1381 = vmatprep.subr.mxu0 0.0
  %1382 = vmatpush1.msra.mxu0 0.0
  %1383 = vmatprep.subr.mxu0 0.0
  %1384 = vmatpush1.msra.mxu0 0.0
  %1385 = vmatprep.subr.mxu0 0.0
  %1386 = vmatpush1.msra.mxu0 0.0
  %1387 = vmatprep.subr.mxu0 0.0
  %1388 = vmatpush1.msra.mxu0 0.0
  %1389 = vmatprep.subr.mxu0 0.0
  %1390 = vmatpush1.msra.mxu0 0.0
  %1391 = vmatprep.subr.mxu0 0.0
  %1392 = vmatpush1.msra.mxu0 0.0
  %1393 = vmatprep.subr.mxu0 0.0
  %1394 = vmatpush1.msra.mxu0 0.0
  %1395 = vmatprep.subr.mxu0 0.0
  %1396 = vmatpush1.msra.mxu0 0.0
  %1397 = vmatprep.subr.mxu0 0.0
  %1398 = vmatpush1.msra.mxu0 0.0
  %1399 = vmatprep.subr.mxu0 0.0
  %1400 = vmatpush1.msra.mxu0 0.0
  %1401 = vmatprep.subr.mxu0 0.0
  %1402 = vmatpush1.msra.mxu0 0.0
  %1403 = vmatprep.subr.mxu0 0.0
  %1404 = vmatpush1.msra.mxu0 0.0
  %1405 = vmatprep.subr.mxu0 0.0
  %1406 = vmatpush1.msra.mxu0 0.0
  %1407 = vmatprep.mubr.f32.mxu0 0.0
  %1408 = vmatmul.mubr.f32.gmra.mrb[0].mxu0 %v1337
  %v1409 = vpop.f32.mrb[0].mxu0
  %v1410 = vadd.f32 0.0, %v1409
  %v1411 = vpop.f32.mrb[0].mxu0
  %v1412 = vadd.f32 0.0, %v1411
  %1413 = vdwg.mxu0
  %v1414 = vadd.f32 %v1325, %v1410
  %v1415 = vadd.f32 %v1326, %v1412
  %v1416 = vld [vmem:[%s893] sm:$0xff]
  %v1417 = vld [vmem:[%s593] sm:$0xff]
  %v1419 = vcombine.high %v1416, %v1416
  %1420 = vrot.lane.b32.xlu0 %v1416, 96
  %v1421 = vpop.permute.xlu0 %1420
  %1422 = vrot.lane.b32.xlu0 %v1419, 96
  %v1423 = vpop.permute.xlu0 %1422
  %v1424 = vsel %vm601, %v1421, %v1423
  %v1426 = vsel %vm70, %v1417, 0
  %v1428 = vsel %vm74, %v1424, 0
  %v1430 = vsel %vm74, %v1423, 0
  %1432 = vmatprep.subr.mxu0 %v1430
  %1433 = vmatpush1.msra.mxu0 %v1428
  %1434 = vmatprep.subr.mxu0 0.0
  %1435 = vmatpush1.msra.mxu0 0.0
  %1436 = vmatprep.subr.mxu0 0.0
  %1437 = vmatpush1.msra.mxu0 0.0
  %1438 = vmatprep.subr.mxu0 0.0
  %1439 = vmatpush1.msra.mxu0 0.0
  %1440 = vmatprep.subr.mxu0 0.0
  %1441 = vmatpush1.msra.mxu0 0.0
  %1442 = vmatprep.subr.mxu0 0.0
  %1443 = vmatpush1.msra.mxu0 0.0
  %1444 = vmatprep.subr.mxu0 0.0
  %1445 = vmatpush1.msra.mxu0 0.0
  %1446 = vmatprep.subr.mxu0 0.0
  %1447 = vmatpush1.msra.mxu0 0.0
  %1448 = vmatprep.subr.mxu0 0.0
  %1449 = vmatpush1.msra.mxu0 0.0
  %1450 = vmatprep.subr.mxu0 0.0
  %1451 = vmatpush1.msra.mxu0 0.0
  %1452 = vmatprep.subr.mxu0 0.0
  %1453 = vmatpush1.msra.mxu0 0.0
  %1454 = vmatprep.subr.mxu0 0.0
  %1455 = vmatpush1.msra.mxu0 0.0
  %1456 = vmatprep.subr.mxu0 0.0
  %1457 = vmatpush1.msra.mxu0 0.0
  %1458 = vmatprep.subr.mxu0 0.0
  %1459 = vmatpush1.msra.mxu0 0.0
  %1460 = vmatprep.subr.mxu0 0.0
  %1461 = vmatpush1.msra.mxu0 0.0
  %1462 = vmatprep.subr.mxu0 0.0
  %1463 = vmatpush1.msra.mxu0 0.0
  %1464 = vmatprep.subr.mxu0 0.0
  %1465 = vmatpush1.msra.mxu0 0.0
  %1466 = vmatprep.subr.mxu0 0.0
  %1467 = vmatpush1.msra.mxu0 0.0
  %1468 = vmatprep.subr.mxu0 0.0
  %1469 = vmatpush1.msra.mxu0 0.0
  %1470 = vmatprep.subr.mxu0 0.0
  %1471 = vmatpush1.msra.mxu0 0.0
  %1472 = vmatprep.subr.mxu0 0.0
  %1473 = vmatpush1.msra.mxu0 0.0
  %1474 = vmatprep.subr.mxu0 0.0
  %1475 = vmatpush1.msra.mxu0 0.0
  %1476 = vmatprep.subr.mxu0 0.0
  %1477 = vmatpush1.msra.mxu0 0.0
  %1478 = vmatprep.subr.mxu0 0.0
  %1479 = vmatpush1.msra.mxu0 0.0
  %1480 = vmatprep.subr.mxu0 0.0
  %1481 = vmatpush1.msra.mxu0 0.0
  %1482 = vmatprep.subr.mxu0 0.0
  %1483 = vmatpush1.msra.mxu0 0.0
  %1484 = vmatprep.subr.mxu0 0.0
  %1485 = vmatpush1.msra.mxu0 0.0
  %1486 = vmatprep.subr.mxu0 0.0
  %1487 = vmatpush1.msra.mxu0 0.0
  %1488 = vmatprep.subr.mxu0 0.0
  %1489 = vmatpush1.msra.mxu0 0.0
  %1490 = vmatprep.subr.mxu0 0.0
  %1491 = vmatpush1.msra.mxu0 0.0
  %1492 = vmatprep.subr.mxu0 0.0
  %1493 = vmatpush1.msra.mxu0 0.0
  %1494 = vmatprep.subr.mxu0 0.0
  %1495 = vmatpush1.msra.mxu0 0.0
  %1496 = vmatprep.mubr.f32.mxu0 0.0
  %1497 = vmatmul.mubr.f32.gmra.mrb[0].mxu0 %v1426
  %v1498 = vpop.f32.mrb[0].mxu0
  %v1499 = vadd.f32 0.0, %v1498
  %v1500 = vpop.f32.mrb[0].mxu0
  %v1501 = vadd.f32 0.0, %v1500
  %1502 = vdwg.mxu0
  %v1503 = vadd.f32 %v1414, %v1499
  %v1504 = vadd.f32 %v1415, %v1501
  %v1505 = vld [vmem:[%s893] sm:$0xff]
  %v1506 = vld [vmem:[%s684] sm:$0xff]
  %v1508 = vcombine.high %v1505, %v1505
  %1509 = vrot.lane.b32.xlu0 %v1505, 95
  %v1510 = vpop.permute.xlu0 %1509
  %1511 = vrot.lane.b32.xlu0 %v1508, 95
  %v1512 = vpop.permute.xlu0 %1511
  %v1513 = vsel %vm692, %v1510, %v1512
  %v1515 = vsel %vm70, %v1506, 0
  %v1517 = vsel %vm74, %v1513, 0
  %v1519 = vsel %vm74, %v1512, 0
  %1521 = vmatprep.subr.mxu0 %v1519
  %1522 = vmatpush1.msra.mxu0 %v1517
  %1523 = vmatprep.subr.mxu0 0.0
  %1524 = vmatpush1.msra.mxu0 0.0
  %1525 = vmatprep.subr.mxu0 0.0
  %1526 = vmatpush1.msra.mxu0 0.0
  %1527 = vmatprep.subr.mxu0 0.0
  %1528 = vmatpush1.msra.mxu0 0.0
  %1529 = vmatprep.subr.mxu0 0.0
  %1530 = vmatpush1.msra.mxu0 0.0
  %1531 = vmatprep.subr.mxu0 0.0
  %1532 = vmatpush1.msra.mxu0 0.0
  %1533 = vmatprep.subr.mxu0 0.0
  %1534 = vmatpush1.msra.mxu0 0.0
  %1535 = vmatprep.subr.mxu0 0.0
  %1536 = vmatpush1.msra.mxu0 0.0
  %1537 = vmatprep.subr.mxu0 0.0
  %1538 = vmatpush1.msra.mxu0 0.0
  %1539 = vmatprep.subr.mxu0 0.0
  %1540 = vmatpush1.msra.mxu0 0.0
  %1541 = vmatprep.subr.mxu0 0.0
  %1542 = vmatpush1.msra.mxu0 0.0
  %1543 = vmatprep.subr.mxu0 0.0
  %1544 = vmatpush1.msra.mxu0 0.0
  %1545 = vmatprep.subr.mxu0 0.0
  %1546 = vmatpush1.msra.mxu0 0.0
  %1547 = vmatprep.subr.mxu0 0.0
  %1548 = vmatpush1.msra.mxu0 0.0
  %1549 = vmatprep.subr.mxu0 0.0
  %1550 = vmatpush1.msra.mxu0 0.0
  %1551 = vmatprep.subr.mxu0 0.0
  %1552 = vmatpush1.msra.mxu0 0.0
  %1553 = vmatprep.subr.mxu0 0.0
  %1554 = vmatpush1.msra.mxu0 0.0
  %1555 = vmatprep.subr.mxu0 0.0
  %1556 = vmatpush1.msra.mxu0 0.0
  %1557 = vmatprep.subr.mxu0 0.0
  %1558 = vmatpush1.msra.mxu0 0.0
  %1559 = vmatprep.subr.mxu0 0.0
  %1560 = vmatpush1.msra.mxu0 0.0
  %1561 = vmatprep.subr.mxu0 0.0
  %1562 = vmatpush1.msra.mxu0 0.0
  %1563 = vmatprep.subr.mxu0 0.0
  %1564 = vmatpush1.msra.mxu0 0.0
  %1565 = vmatprep.subr.mxu0 0.0
  %1566 = vmatpush1.msra.mxu0 0.0
  %1567 = vmatprep.subr.mxu0 0.0
  %1568 = vmatpush1.msra.mxu0 0.0
  %1569 = vmatprep.subr.mxu0 0.0
  %1570 = vmatpush1.msra.mxu0 0.0
  %1571 = vmatprep.subr.mxu0 0.0
  %1572 = vmatpush1.msra.mxu0 0.0
  %1573 = vmatprep.subr.mxu0 0.0
  %1574 = vmatpush1.msra.mxu0 0.0
  %1575 = vmatprep.subr.mxu0 0.0
  %1576 = vmatpush1.msra.mxu0 0.0
  %1577 = vmatprep.subr.mxu0 0.0
  %1578 = vmatpush1.msra.mxu0 0.0
  %1579 = vmatprep.subr.mxu0 0.0
  %1580 = vmatpush1.msra.mxu0 0.0
  %1581 = vmatprep.subr.mxu0 0.0
  %1582 = vmatpush1.msra.mxu0 0.0
  %1583 = vmatprep.subr.mxu0 0.0
  %1584 = vmatpush1.msra.mxu0 0.0
  %1585 = vmatprep.mubr.f32.mxu0 0.0
  %1586 = vmatmul.mubr.f32.gmra.mrb[0].mxu0 %v1515
  %v1587 = vpop.f32.mrb[0].mxu0
  %v1588 = vadd.f32 0.0, %v1587
  %v1589 = vpop.f32.mrb[0].mxu0
  %v1590 = vadd.f32 0.0, %v1589
  %1591 = vdwg.mxu0
  %v1592 = vadd.f32 %v1503, %v1588
  %v1593 = vadd.f32 %v1504, %v1590
  %v1594 = vld [vmem:[%s893] sm:$0xff]
  %v1595 = vld [vmem:[%s775] sm:$0xff]
  %v1597 = vcombine.high %v1594, %v1594
  %1598 = vrot.lane.b32.xlu0 %v1594, 94
  %v1599 = vpop.permute.xlu0 %1598
  %1600 = vrot.lane.b32.xlu0 %v1597, 94
  %v1601 = vpop.permute.xlu0 %1600
  %v1602 = vsel %vm783, %v1599, %v1601
  %v1604 = vsel %vm70, %v1595, 0
  %v1606 = vsel %vm74, %v1602, 0
  %v1608 = vsel %vm74, %v1601, 0
  %1610 = vmatprep.subr.mxu0 %v1608
  %1611 = vmatpush1.msra.mxu0 %v1606
  %1612 = vmatprep.subr.mxu0 0.0
  %1613 = vmatpush1.msra.mxu0 0.0
  %1614 = vmatprep.subr.mxu0 0.0
  %1615 = vmatpush1.msra.mxu0 0.0
  %1616 = vmatprep.subr.mxu0 0.0
  %1617 = vmatpush1.msra.mxu0 0.0
  %1618 = vmatprep.subr.mxu0 0.0
  %1619 = vmatpush1.msra.mxu0 0.0
  %1620 = vmatprep.subr.mxu0 0.0
  %1621 = vmatpush1.msra.mxu0 0.0
  %1622 = vmatprep.subr.mxu0 0.0
  %1623 = vmatpush1.msra.mxu0 0.0
  %1624 = vmatprep.subr.mxu0 0.0
  %1625 = vmatpush1.msra.mxu0 0.0
  %1626 = vmatprep.subr.mxu0 0.0
  %1627 = vmatpush1.msra.mxu0 0.0
  %1628 = vmatprep.subr.mxu0 0.0
  %1629 = vmatpush1.msra.mxu0 0.0
  %1630 = vmatprep.subr.mxu0 0.0
  %1631 = vmatpush1.msra.mxu0 0.0
  %1632 = vmatprep.subr.mxu0 0.0
  %1633 = vmatpush1.msra.mxu0 0.0
  %1634 = vmatprep.subr.mxu0 0.0
  %1635 = vmatpush1.msra.mxu0 0.0
  %1636 = vmatprep.subr.mxu0 0.0
  %1637 = vmatpush1.msra.mxu0 0.0
  %1638 = vmatprep.subr.mxu0 0.0
  %1639 = vmatpush1.msra.mxu0 0.0
  %1640 = vmatprep.subr.mxu0 0.0
  %1641 = vmatpush1.msra.mxu0 0.0
  %1642 = vmatprep.subr.mxu0 0.0
  %1643 = vmatpush1.msra.mxu0 0.0
  %1644 = vmatprep.subr.mxu0 0.0
  %1645 = vmatpush1.msra.mxu0 0.0
  %1646 = vmatprep.subr.mxu0 0.0
  %1647 = vmatpush1.msra.mxu0 0.0
  %1648 = vmatprep.subr.mxu0 0.0
  %1649 = vmatpush1.msra.mxu0 0.0
  %1650 = vmatprep.subr.mxu0 0.0
  %1651 = vmatpush1.msra.mxu0 0.0
  %1652 = vmatprep.subr.mxu0 0.0
  %1653 = vmatpush1.msra.mxu0 0.0
  %1654 = vmatprep.subr.mxu0 0.0
  %1655 = vmatpush1.msra.mxu0 0.0
  %1656 = vmatprep.subr.mxu0 0.0
  %1657 = vmatpush1.msra.mxu0 0.0
  %1658 = vmatprep.subr.mxu0 0.0
  %1659 = vmatpush1.msra.mxu0 0.0
  %1660 = vmatprep.subr.mxu0 0.0
  %1661 = vmatpush1.msra.mxu0 0.0
  %1662 = vmatprep.subr.mxu0 0.0
  %1663 = vmatpush1.msra.mxu0 0.0
  %1664 = vmatprep.subr.mxu0 0.0
  %1665 = vmatpush1.msra.mxu0 0.0
  %1666 = vmatprep.subr.mxu0 0.0
  %1667 = vmatpush1.msra.mxu0 0.0
  %1668 = vmatprep.subr.mxu0 0.0
  %1669 = vmatpush1.msra.mxu0 0.0
  %1670 = vmatprep.subr.mxu0 0.0
  %1671 = vmatpush1.msra.mxu0 0.0
  %1672 = vmatprep.subr.mxu0 0.0
  %1673 = vmatpush1.msra.mxu0 0.0
  %1674 = vmatprep.mubr.f32.mxu0 0.0
  %1675 = vmatmul.mubr.f32.gmra.mrb[0].mxu0 %v1604
  %v1676 = vpop.f32.mrb[0].mxu0
  %v1677 = vadd.f32 0.0, %v1676
  %v1678 = vpop.f32.mrb[0].mxu0
  %v1679 = vadd.f32 0.0, %v1678
  %1680 = vdwg.mxu0
  %v1681 = vadd.f32 %v1592, %v1677
  %v1682 = vadd.f32 %v1593, %v1679
  %v1683 = vadd.f32 %v1681, %v868
  %v1684 = vadd.f32 %v1682, %v868
  %s1685 = scalar_lea.vmem %s3, 16
  %1686 = vst [vmem:[%s1685] sm:$0xff] %v1683
  %1687 = vst.msk [vmem:[%s1685 + $0x8] sm:$0xff] %vm783, %v1684
  %v1688 = vmul.f32 %v1683, %v56
  %v1689 = vmul.f32 %v1684, %v57
  %v1690 = vld [vmem:[%s4] sm:$0xff]
  %v1691 = vsel %vm783, %v1689, 0.0
  %v1692 = vadd.f32 %v1688, %v1691
  %1693 = vadd.xlane.f32.xlu0 %v1692
  %v1694 = vpop.xlane.xlu0 %1693
  %v1695 = vadd.f32 %v1690, %v1694
  %1696 = vst.msk [vmem:[%s4] sm:$0xff] %vm882, %v1695
  %v1697 = vld [vmem:[%s5] sm:$0xff]
  %v1698 = vmul.f32 %v1688, %v1688
  %v1699 = vmul.f32 %v1689, %v1689
  %v1700 = vsel %vm783, %v1699, 0.0
  %v1701 = vadd.f32 %v1698, %v1700
  %1702 = vadd.xlane.f32.xlu0 %v1701
  %v1703 = vpop.xlane.xlu0 %1702
  %v1704 = vadd.f32 %v1697, %v1703
  %1705 = vst.msk [vmem:[%s5] sm:$0xff] %vm882, %v1704
  // Predicated region
  $region18: #{bottom_block_forward.4} parent=0 // pred_check
    _
  $region19: #{bottom_block_forward.4} parent=0 // pred_check_branch
    %1707 = sbr.rel (0) target = $region21
  $region20: #{bottom_block_forward.4} parent=0 // pred_region
    _
  $region21: #{bottom_block_forward.4} parent=0 // pred_fallthru
    _
  // Predicated region
  $region22: #{bottom_block_forward.4} parent=0 // pred_check
    _
  $region23: #{bottom_block_forward.4} parent=0 // pred_check_branch
    %1709 = sbr.rel (0) target = $region25
  $region24: #{bottom_block_forward.4} parent=0 // pred_region
    _
  $region25: #{bottom_block_forward.4} parent=0 // pred_fallthru
    _
  // Predicated region
  $region26: #{bottom_block_forward.4} parent=0 // pred_check
    _
  $region27: #{bottom_block_forward.4} parent=0 // pred_check_branch
    %1711 = sbr.rel (0) target = $region29
  $region28: #{bottom_block_forward.4} parent=0 // pred_region
    _
  $region29: #{bottom_block_forward.4} parent=0 // pred_fallthru
    _
  // Predicated region
  $region30: #{bottom_block_forward.4} parent=0 // pred_check
    _
  $region31: #{bottom_block_forward.4} parent=0 // pred_check_branch
    %1713 = sbr.rel (0) target = $region33
  $region32: #{bottom_block_forward.4} parent=0 // pred_region
    _
  $region33: #{bottom_block_forward.4} parent=0 // pred_fallthru
    _
  // Predicated region
  $region34: #{bottom_block_forward.4} parent=0 // pred_check
    _
  $region35: #{bottom_block_forward.4} parent=0 // pred_check_branch
    %1715 = sbr.rel (0) target = $region37
  $region36: #{bottom_block_forward.4} parent=0 // pred_region
    _
  $region37: #{bottom_block_forward.4} parent=0 // pred_fallthru
    _
  // Predicated region
  $region38: #{bottom_block_forward.4} parent=0 // pred_check
    _
  $region39: #{bottom_block_forward.4} parent=0 // pred_check_branch
    %1717 = sbr.rel (0) target = $region41
  $region40: #{bottom_block_forward.4} parent=0 // pred_region
    _
  $region41: #{bottom_block_forward.4} parent=0 // pred_fallthru
    _

</llo_original>
